<compile_context>
chip_gen: v6e
topology: v6e:2x2x1
jax: 0.10.0
libtpu: 0.0.40
codegen_flags: <defaults>
</compile_context>

<pallas_src>
import functools

import jax
import jax.numpy as jnp
from jax.experimental import pallas as pl
from jax.experimental.pallas import tpu as pltpu


def _round_up(x, m):
    return (x + m - 1) // m * m


def _pick_tile_128(dim, pref=256):
    """Lane/contraction tile: multiple of 128, prefer 256 (fills v6e/v7x MXU)."""
    r = _round_up(dim, 128)
    if r <= pref:
        return r
    return pref if r % pref == 0 else 128


# ----------------- batched tiled matmul + bias epilogue (P projections) -----------------

def _bmm_bias_kernel(x_ref, w_ref, b_ref, o_ref, acc_ref):
    @pl.when(pl.program_id(3) == 0)
    def _init():
        acc_ref[...] = jnp.zeros_like(acc_ref)

    acc_ref[...] += jnp.dot(x_ref[0], w_ref[0],
                            preferred_element_type=jnp.float32)

    @pl.when(pl.program_id(3) == pl.num_programs(3) - 1)
    def _store():
        o_ref[0] = (acc_ref[...] + b_ref[0]).astype(o_ref.dtype)


def pallas_linear_multi(xs, ws, bs, *, out_dtype=jnp.float32,
                        tm=512, tn=256, tk=256):
    """ys[p] = xs[p] @ ws[p] + bs[p] for all p in ONE pallas_call.

    All xs must share shape (M, K); ws: (K, N); bs: (N,).  Operands are cast to
    bf16 BEFORE padding (halves pad-copy bytes), accumulation is f32.  Grid is
    (P, M/tm, N/tn, K/tk) with the reduction axis last."""
    P = len(xs)
    M, K = xs[0].shape
    N = ws[0].shape[1]
    tm = min(tm, _round_up(M, 16))            # bf16 packs 16 rows / sublane group
    tn = _pick_tile_128(N, tn)
    tk = _pick_tile_128(K, tk)
    Mp, Np, Kp = _round_up(M, tm), _round_up(N, tn), _round_up(K, tk)

    xb = jnp.stack([jnp.pad(x.astype(jnp.bfloat16), ((0, Mp - M), (0, Kp - K)))
                    for x in xs])
    wb = jnp.stack([jnp.pad(w.astype(jnp.bfloat16), ((0, Kp - K), (0, Np - N)))
                    for w in ws])
    bb = jnp.stack([jnp.pad(b.astype(jnp.float32), (0, Np - N)).reshape(1, Np)
                    for b in bs])

    out = pl.pallas_call(
        _bmm_bias_kernel,
        out_shape=jax.ShapeDtypeStruct((P, Mp, Np), out_dtype),
        grid=(P, Mp // tm, Np // tn, Kp // tk),
        in_specs=[
            pl.BlockSpec((1, tm, tk), lambda p, i, j, k: (p, i, k)),
            pl.BlockSpec((1, tk, tn), lambda p, i, j, k: (p, k, j)),
            pl.BlockSpec((1, 1, tn), lambda p, i, j, k: (p, 0, j)),
        ],
        out_specs=pl.BlockSpec((1, tm, tn), lambda p, i, j, k: (p, i, j)),
        scratch_shapes=[pltpu.VMEM((tm, tn), jnp.float32)],
        compiler_params=pltpu.CompilerParams(
            dimension_semantics=("parallel", "parallel", "parallel", "arbitrary")),
    )(xb, wb, bb)
    return [out[p, :M, :N] for p in range(P)]


# ------------- depthwise 3x3 conv + BatchNorm (eval), multi-projection -------------

def _dwconv_bn_kernel(x_ref, *refs, taps, ho, wo, hr, n_proj):
    w_refs = refs[:n_proj]                  # each (k*k, 1, 1, tc): conv_w * bn_scale
    sh_refs = refs[n_proj:2 * n_proj]       # each (1, 1, tc): beta - mean * bn_scale
    o_refs = refs[2 * n_proj:]              # each (1, ho, wo, tc)

    x = x_ref[0]                            # bf16 phase-stacked map (no f32 full copy)
    accs = [None] * n_proj
    for t, (ph, di, dj) in enumerate(taps):
        base = ph * hr + di
        tap = x[base:base + ho, dj:dj + wo, :].astype(jnp.float32)   # per-tap upcast
        for n in range(n_proj):
            c = tap * w_refs[n][t]
            accs[n] = c if accs[n] is None else accs[n] + c
    for n in range(n_proj):
        o_refs[n][0] = (accs[n] + sh_refs[n][...]).astype(o_refs[n].dtype)


def pallas_dwconv_bn(x_sp, h, w, projs, *, stride, padding=1, ksize=3,
                     out_dtype=jnp.bfloat16):
    """Fused depthwise KxK conv (groups=C, no bias) + eval BatchNorm for one or
    more projections that share the same input (single HBM read of the map).

    x_sp : (B, h*w, C) tokens.
    projs: list of (w9, shift); w9: (K*K, 1, 1, C) = conv weight * bn_scale,
           shift: (1, 1, C) = beta - running_mean * bn_scale.
    Returns (list of (B, ho*wo, C), ho, wo)."""
    B, T, C = x_sp.shape
    s, k, p = stride, ksize, padding
    ho = (h + 2 * p - k) // s + 1
    wo = (w + 2 * p - k) // s + 1
    r = (k - 1) // s
    hr, wr = ho + r, wo + r

    # bf16 BEFORE pad (halves pad-copy bytes).  Space-to-depth phase
    # decomposition turns a strided conv tap into a unit-stride offset slice of
    # one phase; for stride==1 the padded map is already phase 0 (no extra copy).
    x_img = x_sp.reshape(B, h, w, C).astype(jnp.bfloat16)
    xp = jnp.pad(x_img, ((0, 0), (p, s * hr - h - p), (p, s * wr - w - p), (0, 0)))
    if s == 1:
        xph = xp                                                    # (B, hr, wr, C)
    else:
        phases = [xp[:, a::s, b::s, :][:, :hr, :wr, :]
                  for a in range(s) for b in range(s)]
        xph = jnp.concatenate(phases, axis=1)                       # (B, s*s*hr, wr, C)
    Hs = xph.shape[1]

    taps = tuple(((i % s) * s + (j % s), i // s, j // s)
                 for i in range(k) for j in range(k))
    n = len(projs)
    w_list = [wj for wj, _ in projs]
    s_list = [sh for _, sh in projs]

    # Channel-block grid axis: more parallel grid work + smaller per-step VMEM
    # (helps v7x's 2 TCs / 64 MiB).  Falls back to full C when not 128-aligned.
    if C % 256 == 0:
        tc = 256
    elif C % 128 == 0:
        tc = 128
    else:
        tc = C

    kern = functools.partial(_dwconv_bn_kernel, taps=taps, ho=ho, wo=wo, hr=hr,
                             n_proj=n)
    outs = pl.pallas_call(
        kern,
        out_shape=tuple(jax.ShapeDtypeStruct((B, ho, wo, C), out_dtype)
                        for _ in range(n)),
        grid=(B, C // tc),
        in_specs=(
            [pl.BlockSpec((1, Hs, wr, tc), lambda b, c: (b, 0, 0, c))]
            + [pl.BlockSpec((k * k, 1, 1, tc), lambda b, c: (0, 0, 0, c))
               for _ in range(n)]
            + [pl.BlockSpec((1, 1, tc), lambda b, c: (0, 0, c)) for _ in range(n)]
        ),
        out_specs=tuple(pl.BlockSpec((1, ho, wo, tc), lambda b, c: (b, 0, 0, c))
                        for _ in range(n)),
        compiler_params=pltpu.CompilerParams(
            dimension_semantics=("parallel", "parallel")),
    )(xph, *w_list, *s_list)
    if not isinstance(outs, (tuple, list)):
        outs = (outs,)
    return [o.reshape(B, ho * wo, C) for o in outs], ho, wo


# ----------------- multi-head attention + fused output projection -----------------

def _mha_proj_kernel(q_ref, k_ref, v_ref, pw_ref, pb_ref, o_ref, *, num_heads):
    D = q_ref.shape[-1]
    d = D // num_heads
    q = q_ref[0]             # (tq, D) bf16; softmax scale already folded into proj_q
    k = k_ref[0]             # (Tk, D) bf16
    v = v_ref[0]             # (Tk, D) bf16
    pw = pw_ref[...]         # (D, Np) bf16  (output-projection weight, head-major rows)
    acc = None
    for hI in range(num_heads):
        lo = hI * d
        # Head slices are taken from values already resident in vregs
        # (split-inside-vregs); only the non-zero-offset heads need a lane shuffle.
        s = jax.lax.dot_general(q[:, lo:lo + d], k[:, lo:lo + d],
                                (((1,), (1,)), ((), ())),
                                preferred_element_type=jnp.float32)      # (tq, Tk)
        s = s - jnp.max(s, axis=-1, keepdims=True)
        e = jnp.exp(s)
        p = e * pl.reciprocal(jnp.sum(e, axis=-1, keepdims=True), approx=True)
        ctx = jnp.dot(p.astype(v.dtype), v[:, lo:lo + d],
                      preferred_element_type=jnp.float32)                # (tq, d)
        # Fused output projection: contract this head's ctx with its proj_w rows.
        part = jnp.dot(ctx.astype(pw.dtype), pw[lo:lo + d, :],
                       preferred_element_type=jnp.float32)               # (tq, Np)
        acc = part if acc is None else acc + part
    # Single lane-dense (tq, Np) store.
    o_ref[0] = (acc + pb_ref[...]).astype(o_ref.dtype)


def pallas_mha_proj(q, k, v, proj_w, proj_b, num_heads, *, tile_q=512,
                    out_dtype=jnp.float32):
    """softmax(q k^T) v followed by the fused output projection.

    q: (B, Tq, D), k/v: (B, Tk, D) bf16; proj_w: (D, No), proj_b: (No,).
    Returns (B, Tq, No) in out_dtype.  All heads of a batch element are handled
    in one grid step; Tq is tiled so VMEM stays bounded for long sequences."""
    B, Tq, D = q.shape
    Tk = k.shape[1]
    No = proj_w.shape[1]
    assert D % num_heads == 0
    tq = min(tile_q, _round_up(Tq, 16))
    Tqp = _round_up(Tq, tq)
    Np = _round_up(No, 128)

    qp = jnp.pad(q, ((0, 0), (0, Tqp - Tq), (0, 0)))
    pwp = jnp.pad(proj_w.astype(jnp.bfloat16), ((0, 0), (0, Np - No)))
    pbp = jnp.pad(proj_b.astype(jnp.float32), (0, Np - No)).reshape(1, Np)

    out = pl.pallas_call(
        functools.partial(_mha_proj_kernel, num_heads=num_heads),
        out_shape=jax.ShapeDtypeStruct((B, Tqp, Np), out_dtype),
        grid=(B, Tqp // tq),
        in_specs=[
            pl.BlockSpec((1, tq, D), lambda b, i: (b, i, 0)),
            pl.BlockSpec((1, Tk, D), lambda b, i: (b, 0, 0)),
            pl.BlockSpec((1, Tk, D), lambda b, i: (b, 0, 0)),
            pl.BlockSpec((D, Np), lambda b, i: (0, 0)),
            pl.BlockSpec((1, Np), lambda b, i: (0, 0)),
        ],
        out_specs=pl.BlockSpec((1, tq, Np), lambda b, i: (b, i, 0)),
        compiler_params=pltpu.CompilerParams(
            dimension_semantics=("parallel", "parallel")),
    )(qp, k, v, pwp, pbp)
    return out[:, :Tq, :No]


# ------------------------------ module forward ------------------------------

def cvt_attention_forward(p, x, h, w, *, num_heads, with_cls_token=True,
                          stride_q=1, stride_kv=1, padding_q=1, padding_kv=1,
                          kernel_size=3, bn_eps=1e-5):
    """CvT Attention.forward (method='dw_bn', eval mode)."""
    B, T, C = x.shape
    dim = p['proj_w'].shape[0]
    scale = float(dim) ** (-0.5)       # NOTE: CvT scales by dim_out, not head_dim

    if with_cls_token:
        cls_tok, x_sp = x[:, :1, :], x[:, 1:, :]
    else:
        cls_tok, x_sp = None, x

    def folded(name):
        # Fold eval-mode BatchNorm (gamma, beta, running stats) into the depthwise
        # conv weight (per-channel scale) + an additive shift.
        conv_w = p[f'conv_{name}_w']                    # (C, 1, k, k) depthwise
        g, bb, mm, vv = (p[f'bn_{name}_g'], p[f'bn_{name}_b'],
                         p[f'bn_{name}_m'], p[f'bn_{name}_v'])
        bscale = g * jax.lax.rsqrt(vv + bn_eps)
        w_kkc = jnp.transpose(conv_w[:, 0, :, :], (1, 2, 0))            # (k, k, C)
        w9 = (w_kkc * bscale).reshape(kernel_size * kernel_size, 1, 1, C)
        shift = (bb - mm * bscale).reshape(1, 1, C)
        return w9, shift

    if stride_q == stride_kv and padding_q == padding_kv:
        (q_sp, k_sp, v_sp), _, _ = pallas_dwconv_bn(
            x_sp, h, w, [folded('q'), folded('k'), folded('v')],
            stride=stride_q, padding=padding_q, ksize=kernel_size)
    else:
        (q_sp,), _, _ = pallas_dwconv_bn(
            x_sp, h, w, [folded('q')],
            stride=stride_q, padding=padding_q, ksize=kernel_size)
        (k_sp, v_sp), _, _ = pallas_dwconv_bn(          # k & v: one shared input read
            x_sp, h, w, [folded('k'), folded('v')],
            stride=stride_kv, padding=padding_kv, ksize=kernel_size)

    def prepend_cls(t):
        if not with_cls_token:
            return t
        return jnp.concatenate([cls_tok.astype(t.dtype), t], axis=1)

    q_in, k_in, v_in = prepend_cls(q_sp), prepend_cls(k_sp), prepend_cls(v_sp)
    Tq, Tk = q_in.shape[1], k_in.shape[1]

    # Linear q/k/v projections, fused into as few launches as possible
    # (k & v always share one batched call; q joins when Tq == Tk).  The softmax
    # scale is folded exactly into proj_q's weight/bias.
    qw, qb = p['proj_q_w'].T * scale, p['proj_q_b'] * scale
    kw, kb = p['proj_k_w'].T, p['proj_k_b']
    vw, vb = p['proj_v_w'].T, p['proj_v_b']
    if Tq == Tk:
        q2d, k2d, v2d = pallas_linear_multi(
            [q_in.reshape(B * Tq, C), k_in.reshape(B * Tk, C),
             v_in.reshape(B * Tk, C)],
            [qw, kw, vw], [qb, kb, vb], out_dtype=jnp.bfloat16)
    else:
        (q2d,) = pallas_linear_multi([q_in.reshape(B * Tq, C)], [qw], [qb],
                                     out_dtype=jnp.bfloat16)
        k2d, v2d = pallas_linear_multi(
            [k_in.reshape(B * Tk, C), v_in.reshape(B * Tk, C)],
            [kw, vw], [kb, vb], out_dtype=jnp.bfloat16)
    q = q2d.reshape(B, Tq, dim)
    k = k2d.reshape(B, Tk, dim)
    v = v2d.reshape(B, Tk, dim)

    # Attention with the final `proj` fused into the kernel epilogue: the ctx
    # tensor never round-trips HBM and the store is a lane-dense (tq, dim) slab.
    out = pallas_mha_proj(q, k, v, p['proj_w'].T, p['proj_b'], num_heads)
    return out


# ------------------------------ parameter init ------------------------------

def init_attention_params(key, dim_in, dim_out, *, qkv_bias=True, kernel_size=3):
    keys = iter(jax.random.split(key, 32))

    def trunc(shape, std=0.02):
        return std * jax.random.truncated_normal(next(keys), -2.0, 2.0, shape,
                                                 jnp.float32)

    p = {}
    for name in ('q', 'k', 'v'):
        p[f'conv_{name}_w'] = trunc((dim_in, 1, kernel_size, kernel_size), std=0.1)
        p[f'bn_{name}_g'] = jnp.ones((dim_in,), jnp.float32) + trunc((dim_in,), std=0.05)
        p[f'bn_{name}_b'] = trunc((dim_in,), std=0.05)
        p[f'bn_{name}_m'] = trunc((dim_in,), std=0.05)                 # running_mean
        p[f'bn_{name}_v'] = jnp.ones((dim_in,), jnp.float32)           # running_var
        p[f'proj_{name}_w'] = trunc((dim_out, dim_in))
        p[f'proj_{name}_b'] = (trunc((dim_out,)) if qkv_bias
                               else jnp.zeros((dim_out,), jnp.float32))
    p['proj_w'] = trunc((dim_out, dim_out))
    p['proj_b'] = jnp.zeros((dim_out,), jnp.float32)
    return p


# ----------------------------------- main -----------------------------------

if __name__ == "__main__":
    key = jax.random.PRNGKey(0)
    pkey, xkey = jax.random.split(key)

    B, H, W = 2, 8, 8
    DIM, HEADS = 128, 2          # CvT-like: head_dim = 64
    WITH_CLS = True
    STRIDE_Q, STRIDE_KV = 1, 2   # CvT config: q keeps resolution, k/v downsampled

    params = init_attention_params(pkey, DIM, DIM, qkv_bias=True)
    T = H * W + (1 if WITH_CLS else 0)
    x = jax.random.normal(xkey, (B, T, DIM), jnp.float32)

    fwd = jax.jit(functools.partial(
        cvt_attention_forward, h=H, w=W, num_heads=HEADS,
        with_cls_token=WITH_CLS, stride_q=STRIDE_Q, stride_kv=STRIDE_KV,
        padding_q=1, padding_kv=1, kernel_size=3))

    out = fwd(params, x)
    jax.block_until_ready(out)
    assert out.shape == (B, T, DIM), out.shape
    assert bool(jnp.all(jnp.isfinite(out)))
    print("KERNEL_OK")
</pallas_src>

<mosaic_0001>
module attributes {stable_mosaic.version = 11 : i64} {
  func.func @_dwconv_bn_kernel(%arg0: i32, %arg1: i32, %arg2: memref<1x10x10x128xbf16, #tpu.memory_space<vmem>>, %arg3: memref<9x1x1x128xf32, #tpu.memory_space<vmem>>, %arg4: memref<1x1x128xf32, #tpu.memory_space<vmem>>, %arg5: memref<1x8x8x128xbf16, #tpu.memory_space<vmem>>) attributes {dimension_semantics = [#tpu.dimension_semantics<parallel>, #tpu.dimension_semantics<parallel>], iteration_bounds = array<i64: 2, 1>, scalar_prefetch = 0 : i64, scratch_operands = 0 : i64, tpu.core_type = #tpu.core_type<tc>, window_params = [{transform_indices = @transform_0, window_bounds = array<i64: 1, 10, 10, 128>}, {transform_indices = @transform_1, window_bounds = array<i64: 9, 1, 1, 128>}, {transform_indices = @transform_2, window_bounds = array<i64: 1, 1, 128>}, {transform_indices = @transform_3, window_bounds = array<i64: 1, 8, 8, 128>}]} {
    %c0 = arith.constant 0 : index
    %c0_0 = arith.constant 0 : index
    %c0_1 = arith.constant 0 : index
    %c0_2 = arith.constant 0 : index
    %0 = vector.load %arg2[%c0, %c0_0, %c0_1, %c0_2] : memref<1x10x10x128xbf16, #tpu.memory_space<vmem>>, vector<1x10x10x128xbf16>
    %1 = vector.shape_cast %0 : vector<1x10x10x128xbf16> to vector<10x10x128xbf16>
    %2 = vector.extract_strided_slice %1 {offsets = [0, 0, 0], sizes = [8, 8, 128], strides = [1, 1, 1]} : vector<10x10x128xbf16> to vector<8x8x128xbf16>
    %3 = arith.extf %2 : vector<8x8x128xbf16> to vector<8x8x128xf32>
    %c0_3 = arith.constant 0 : index
    %c0_4 = arith.constant 0 : index
    %c0_5 = arith.constant 0 : index
    %c0_6 = arith.constant 0 : index
    %4 = vector.load %arg3[%c0_3, %c0_4, %c0_5, %c0_6] : memref<9x1x1x128xf32, #tpu.memory_space<vmem>>, vector<1x1x1x128xf32>
    %5 = vector.shape_cast %4 : vector<1x1x1x128xf32> to vector<1x1x128xf32>
    %6 = vector.broadcast %5 : vector<1x1x128xf32> to vector<8x8x128xf32>
    %7 = arith.mulf %3, %6 : vector<8x8x128xf32>
    %8 = vector.extract_strided_slice %1 {offsets = [0, 1, 0], sizes = [8, 8, 128], strides = [1, 1, 1]} : vector<10x10x128xbf16> to vector<8x8x128xbf16>
    %9 = arith.extf %8 : vector<8x8x128xbf16> to vector<8x8x128xf32>
    %c1 = arith.constant 1 : index
    %c0_7 = arith.constant 0 : index
    %c0_8 = arith.constant 0 : index
    %c0_9 = arith.constant 0 : index
    %10 = vector.load %arg3[%c1, %c0_7, %c0_8, %c0_9] : memref<9x1x1x128xf32, #tpu.memory_space<vmem>>, vector<1x1x1x128xf32>
    %11 = vector.shape_cast %10 : vector<1x1x1x128xf32> to vector<1x1x128xf32>
    %12 = vector.broadcast %11 : vector<1x1x128xf32> to vector<8x8x128xf32>
    %13 = arith.mulf %9, %12 : vector<8x8x128xf32>
    %14 = arith.addf %7, %13 : vector<8x8x128xf32>
    %15 = vector.extract_strided_slice %1 {offsets = [0, 2, 0], sizes = [8, 8, 128], strides = [1, 1, 1]} : vector<10x10x128xbf16> to vector<8x8x128xbf16>
    %16 = arith.extf %15 : vector<8x8x128xbf16> to vector<8x8x128xf32>
    %c2 = arith.constant 2 : index
    %c0_10 = arith.constant 0 : index
    %c0_11 = arith.constant 0 : index
    %c0_12 = arith.constant 0 : index
    %17 = vector.load %arg3[%c2, %c0_10, %c0_11, %c0_12] : memref<9x1x1x128xf32, #tpu.memory_space<vmem>>, vector<1x1x1x128xf32>
    %18 = vector.shape_cast %17 : vector<1x1x1x128xf32> to vector<1x1x128xf32>
    %19 = vector.broadcast %18 : vector<1x1x128xf32> to vector<8x8x128xf32>
    %20 = arith.mulf %16, %19 : vector<8x8x128xf32>
    %21 = arith.addf %14, %20 : vector<8x8x128xf32>
    %22 = vector.extract_strided_slice %1 {offsets = [1, 0, 0], sizes = [8, 8, 128], strides = [1, 1, 1]} : vector<10x10x128xbf16> to vector<8x8x128xbf16>
    %23 = arith.extf %22 : vector<8x8x128xbf16> to vector<8x8x128xf32>
    %c3 = arith.constant 3 : index
    %c0_13 = arith.constant 0 : index
    %c0_14 = arith.constant 0 : index
    %c0_15 = arith.constant 0 : index
    %24 = vector.load %arg3[%c3, %c0_13, %c0_14, %c0_15] : memref<9x1x1x128xf32, #tpu.memory_space<vmem>>, vector<1x1x1x128xf32>
    %25 = vector.shape_cast %24 : vector<1x1x1x128xf32> to vector<1x1x128xf32>
    %26 = vector.broadcast %25 : vector<1x1x128xf32> to vector<8x8x128xf32>
    %27 = arith.mulf %23, %26 : vector<8x8x128xf32>
    %28 = arith.addf %21, %27 : vector<8x8x128xf32>
    %29 = vector.extract_strided_slice %1 {offsets = [1, 1, 0], sizes = [8, 8, 128], strides = [1, 1, 1]} : vector<10x10x128xbf16> to vector<8x8x128xbf16>
    %30 = arith.extf %29 : vector<8x8x128xbf16> to vector<8x8x128xf32>
    %c4 = arith.constant 4 : index
    %c0_16 = arith.constant 0 : index
    %c0_17 = arith.constant 0 : index
    %c0_18 = arith.constant 0 : index
    %31 = vector.load %arg3[%c4, %c0_16, %c0_17, %c0_18] : memref<9x1x1x128xf32, #tpu.memory_space<vmem>>, vector<1x1x1x128xf32>
    %32 = vector.shape_cast %31 : vector<1x1x1x128xf32> to vector<1x1x128xf32>
    %33 = vector.broadcast %32 : vector<1x1x128xf32> to vector<8x8x128xf32>
    %34 = arith.mulf %30, %33 : vector<8x8x128xf32>
    %35 = arith.addf %28, %34 : vector<8x8x128xf32>
    %36 = vector.extract_strided_slice %1 {offsets = [1, 2, 0], sizes = [8, 8, 128], strides = [1, 1, 1]} : vector<10x10x128xbf16> to vector<8x8x128xbf16>
    %37 = arith.extf %36 : vector<8x8x128xbf16> to vector<8x8x128xf32>
    %c5 = arith.constant 5 : index
    %c0_19 = arith.constant 0 : index
    %c0_20 = arith.constant 0 : index
    %c0_21 = arith.constant 0 : index
    %38 = vector.load %arg3[%c5, %c0_19, %c0_20, %c0_21] : memref<9x1x1x128xf32, #tpu.memory_space<vmem>>, vector<1x1x1x128xf32>
    %39 = vector.shape_cast %38 : vector<1x1x1x128xf32> to vector<1x1x128xf32>
    %40 = vector.broadcast %39 : vector<1x1x128xf32> to vector<8x8x128xf32>
    %41 = arith.mulf %37, %40 : vector<8x8x128xf32>
    %42 = arith.addf %35, %41 : vector<8x8x128xf32>
    %43 = vector.extract_strided_slice %1 {offsets = [2, 0, 0], sizes = [8, 8, 128], strides = [1, 1, 1]} : vector<10x10x128xbf16> to vector<8x8x128xbf16>
    %44 = arith.extf %43 : vector<8x8x128xbf16> to vector<8x8x128xf32>
    %c6 = arith.constant 6 : index
    %c0_22 = arith.constant 0 : index
    %c0_23 = arith.constant 0 : index
    %c0_24 = arith.constant 0 : index
    %45 = vector.load %arg3[%c6, %c0_22, %c0_23, %c0_24] : memref<9x1x1x128xf32, #tpu.memory_space<vmem>>, vector<1x1x1x128xf32>
    %46 = vector.shape_cast %45 : vector<1x1x1x128xf32> to vector<1x1x128xf32>
    %47 = vector.broadcast %46 : vector<1x1x128xf32> to vector<8x8x128xf32>
    %48 = arith.mulf %44, %47 : vector<8x8x128xf32>
    %49 = arith.addf %42, %48 : vector<8x8x128xf32>
    %50 = vector.extract_strided_slice %1 {offsets = [2, 1, 0], sizes = [8, 8, 128], strides = [1, 1, 1]} : vector<10x10x128xbf16> to vector<8x8x128xbf16>
    %51 = arith.extf %50 : vector<8x8x128xbf16> to vector<8x8x128xf32>
    %c7 = arith.constant 7 : index
    %c0_25 = arith.constant 0 : index
    %c0_26 = arith.constant 0 : index
    %c0_27 = arith.constant 0 : index
    %52 = vector.load %arg3[%c7, %c0_25, %c0_26, %c0_27] : memref<9x1x1x128xf32, #tpu.memory_space<vmem>>, vector<1x1x1x128xf32>
    %53 = vector.shape_cast %52 : vector<1x1x1x128xf32> to vector<1x1x128xf32>
    %54 = vector.broadcast %53 : vector<1x1x128xf32> to vector<8x8x128xf32>
    %55 = arith.mulf %51, %54 : vector<8x8x128xf32>
    %56 = arith.addf %49, %55 : vector<8x8x128xf32>
    %57 = vector.extract_strided_slice %1 {offsets = [2, 2, 0], sizes = [8, 8, 128], strides = [1, 1, 1]} : vector<10x10x128xbf16> to vector<8x8x128xbf16>
    %58 = arith.extf %57 : vector<8x8x128xbf16> to vector<8x8x128xf32>
    %c8 = arith.constant 8 : index
    %c0_28 = arith.constant 0 : index
    %c0_29 = arith.constant 0 : index
    %c0_30 = arith.constant 0 : index
    %59 = vector.load %arg3[%c8, %c0_28, %c0_29, %c0_30] : memref<9x1x1x128xf32, #tpu.memory_space<vmem>>, vector<1x1x1x128xf32>
    %60 = vector.shape_cast %59 : vector<1x1x1x128xf32> to vector<1x1x128xf32>
    %61 = vector.broadcast %60 : vector<1x1x128xf32> to vector<8x8x128xf32>
    %62 = arith.mulf %58, %61 : vector<8x8x128xf32>
    %63 = arith.addf %56, %62 : vector<8x8x128xf32>
    %c0_31 = arith.constant 0 : index
    %c0_32 = arith.constant 0 : index
    %c0_33 = arith.constant 0 : index
    %64 = vector.load %arg4[%c0_31, %c0_32, %c0_33] : memref<1x1x128xf32, #tpu.memory_space<vmem>>, vector<1x1x128xf32>
    %65 = vector.broadcast %64 : vector<1x1x128xf32> to vector<8x8x128xf32>
    %66 = arith.addf %63, %65 : vector<8x8x128xf32>
    %67 = arith.truncf %66 : vector<8x8x128xf32> to vector<8x8x128xbf16>
    %c0_34 = arith.constant 0 : index
    %c0_35 = arith.constant 0 : index
    %c0_36 = arith.constant 0 : index
    %c0_37 = arith.constant 0 : index
    %68 = vector.load %arg5[%c0_34, %c0_35, %c0_36, %c0_37] : memref<1x8x8x128xbf16, #tpu.memory_space<vmem>>, vector<1x8x8x128xbf16>
    %69 = vector.shape_cast %68 : vector<1x8x8x128xbf16> to vector<8x8x128xbf16>
    %70 = vector.shape_cast %67 : vector<8x8x128xbf16> to vector<1x8x8x128xbf16>
    tpu.vector_store %arg5[%c0_34, %c0_35, %c0_36, %c0_37], %70 {strides = array<i32>} : memref<1x8x8x128xbf16, #tpu.memory_space<vmem>>, vector<1x8x8x128xbf16>,
    return
  }
  func.func @transform_0(%arg0: i32, %arg1: i32) -> (i32, i32, i32, i32) {
    %c0_i32 = arith.constant 0 : i32
    %c0_i32_0 = arith.constant 0 : i32
    %c0_i32_1 = arith.constant 0 : i32
    return %arg0, %c0_i32, %c0_i32_0, %arg1 : i32, i32, i32, i32
  }
  func.func @transform_1(%arg0: i32, %arg1: i32) -> (i32, i32, i32, i32) {
    %c0_i32 = arith.constant 0 : i32
    %c0_i32_0 = arith.constant 0 : i32
    %c0_i32_1 = arith.constant 0 : i32
    %c0_i32_2 = arith.constant 0 : i32
    return %c0_i32, %c0_i32_0, %c0_i32_1, %arg1 : i32, i32, i32, i32
  }
  func.func @transform_2(%arg0: i32, %arg1: i32) -> (i32, i32, i32) {
    %c0_i32 = arith.constant 0 : i32
    %c0_i32_0 = arith.constant 0 : i32
    %c0_i32_1 = arith.constant 0 : i32
    return %c0_i32, %c0_i32_0, %arg1 : i32, i32, i32
  }
  func.func @transform_3(%arg0: i32, %arg1: i32) -> (i32, i32, i32, i32) {
    %c0_i32 = arith.constant 0 : i32
    %c0_i32_0 = arith.constant 0 : i32
    %c0_i32_1 = arith.constant 0 : i32
    return %arg0, %c0_i32, %c0_i32_0, %arg1 : i32, i32, i32, i32
  }
}

module attributes {stable_mosaic.version = 11 : i64} {
  func.func @_bmm_bias_kernel(%arg0: i32, %arg1: i32, %arg2: i32, %arg3: i32, %arg4: memref<1x144x128xbf16, #tpu.memory_space<vmem>>, %arg5: memref<1x128x128xbf16, #tpu.memory_space<vmem>>, %arg6: memref<1x1x128xf32, #tpu.memory_space<vmem>>, %arg7: memref<1x144x128xbf16, #tpu.memory_space<vmem>>, %arg8: memref<144x128xf32, #tpu.memory_space<vmem>>) attributes {dimension_semantics = [#tpu.dimension_semantics<parallel>, #tpu.dimension_semantics<parallel>, #tpu.dimension_semantics<parallel>, #tpu.dimension_semantics<arbitrary>], iteration_bounds = array<i64: 1, 1, 1, 1>, scalar_prefetch = 0 : i64, scratch_operands = 1 : i64, tpu.core_type = #tpu.core_type<tc>, window_params = [{transform_indices = @transform_0, window_bounds = array<i64: 1, 144, 128>}, {transform_indices = @transform_1, window_bounds = array<i64: 1, 128, 128>}, {transform_indices = @transform_2, window_bounds = array<i64: 1, 1, 128>}, {transform_indices = @transform_3, window_bounds = array<i64: 1, 144, 128>}]} {
    %c0_i32 = arith.constant 0 : i32
    %0 = arith.cmpi eq, %arg3, %c0_i32 : i32
    %1 = arith.extui %0 : i1 to i32
    %c0_i32_0 = arith.constant 0 : i32
    %2 = arith.cmpi ne, %1, %c0_i32_0 : i32
    scf.if %2 {
      %cst_12 = arith.constant 0.000000e+00 : f32
      %14 = vector.broadcast %cst_12 : f32 to vector<144x128xf32>
      %c0_13 = arith.constant 0 : index
      %c0_14 = arith.constant 0 : index
      %15 = vector.load %arg8[%c0_13, %c0_14] : memref<144x128xf32, #tpu.memory_space<vmem>>, vector<144x128xf32>
      tpu.vector_store %arg8[%c0_13, %c0_14], %14 {strides = array<i32>} : memref<144x128xf32, #tpu.memory_space<vmem>>, vector<144x128xf32>,
    } else {
    }
    %c0 = arith.constant 0 : index
    %c0_1 = arith.constant 0 : index
    %3 = vector.load %arg8[%c0, %c0_1] : memref<144x128xf32, #tpu.memory_space<vmem>>, vector<144x128xf32>
    %c0_2 = arith.constant 0 : index
    %c0_3 = arith.constant 0 : index
    %c0_4 = arith.constant 0 : index
    %4 = vector.load %arg4[%c0_2, %c0_3, %c0_4] : memref<1x144x128xbf16, #tpu.memory_space<vmem>>, vector<1x144x128xbf16>
    %5 = vector.shape_cast %4 : vector<1x144x128xbf16> to vector<144x128xbf16>
    %c0_5 = arith.constant 0 : index
    %c0_6 = arith.constant 0 : index
    %c0_7 = arith.constant 0 : index
    %6 = vector.load %arg5[%c0_5, %c0_6, %c0_7] : memref<1x128x128xbf16, #tpu.memory_space<vmem>>, vector<1x128x128xbf16>
    %7 = vector.shape_cast %6 : vector<1x128x128xbf16> to vector<128x128xbf16>
    %cst = arith.constant dense<0.000000e+00> : vector<144x128xf32>
    %8 = tpu.matmul %5, %7, %cst {dimension_numbers = #tpu.dot_dimension_numbers<[1], [0], [0], [1], [0, 0, 1, 1], [], []>} : vector<144x128xbf16>, vector<128x128xbf16>, vector<144x128xf32> -> vector<144x128xf32>
    %9 = arith.addf %3, %8 : vector<144x128xf32>
    %c0_8 = arith.constant 0 : index
    %c0_9 = arith.constant 0 : index
    %10 = vector.load %arg8[%c0_8, %c0_9] : memref<144x128xf32, #tpu.memory_space<vmem>>, vector<144x128xf32>
    tpu.vector_store %arg8[%c0_8, %c0_9], %9 {strides = array<i32>} : memref<144x128xf32, #tpu.memory_space<vmem>>, vector<144x128xf32>,
    %c0_i32_10 = arith.constant 0 : i32
    %11 = arith.cmpi eq, %arg3, %c0_i32_10 : i32
    %12 = arith.extui %11 : i1 to i32
    %c0_i32_11 = arith.constant 0 : i32
    %13 = arith.cmpi ne, %12, %c0_i32_11 : i32
    scf.if %13 {
      %c0_12 = arith.constant 0 : index
      %c0_13 = arith.constant 0 : index
      %14 = vector.load %arg8[%c0_12, %c0_13] : memref<144x128xf32, #tpu.memory_space<vmem>>, vector<144x128xf32>
      %c0_14 = arith.constant 0 : index
      %c0_15 = arith.constant 0 : index
      %c0_16 = arith.constant 0 : index
      %15 = vector.load %arg6[%c0_14, %c0_15, %c0_16] : memref<1x1x128xf32, #tpu.memory_space<vmem>>, vector<1x1x128xf32>
      %16 = vector.shape_cast %15 : vector<1x1x128xf32> to vector<1x128xf32>
      %17 = vector.broadcast %16 : vector<1x128xf32> to vector<144x128xf32>
      %18 = arith.addf %14, %17 : vector<144x128xf32>
      %19 = arith.truncf %18 : vector<144x128xf32> to vector<144x128xbf16>
      %c0_17 = arith.constant 0 : index
      %c0_18 = arith.constant 0 : index
      %c0_19 = arith.constant 0 : index
      %20 = vector.load %arg7[%c0_17, %c0_18, %c0_19] : memref<1x144x128xbf16, #tpu.memory_space<vmem>>, vector<1x144x128xbf16>
      %21 = vector.shape_cast %20 : vector<1x144x128xbf16> to vector<144x128xbf16>
      %22 = vector.shape_cast %19 : vector<144x128xbf16> to vector<1x144x128xbf16>
      tpu.vector_store %arg7[%c0_17, %c0_18, %c0_19], %22 {strides = array<i32>} : memref<1x144x128xbf16, #tpu.memory_space<vmem>>, vector<1x144x128xbf16>,
    } else {
    }
    return
  }
  func.func @transform_0(%arg0: i32, %arg1: i32, %arg2: i32, %arg3: i32) -> (i32, i32, i32) {
    %c0_i32 = arith.constant 0 : i32
    return %arg0, %arg1, %arg3 : i32, i32, i32
  }
  func.func @transform_1(%arg0: i32, %arg1: i32, %arg2: i32, %arg3: i32) -> (i32, i32, i32) {
    %c0_i32 = arith.constant 0 : i32
    return %arg0, %arg3, %arg2 : i32, i32, i32
  }
  func.func @transform_2(%arg0: i32, %arg1: i32, %arg2: i32, %arg3: i32) -> (i32, i32, i32) {
    %c0_i32 = arith.constant 0 : i32
    %c0_i32_0 = arith.constant 0 : i32
    return %arg0, %c0_i32, %arg2 : i32, i32, i32
  }
  func.func @transform_3(%arg0: i32, %arg1: i32, %arg2: i32, %arg3: i32) -> (i32, i32, i32) {
    %c0_i32 = arith.constant 0 : i32
    return %arg0, %arg1, %arg2 : i32, i32, i32
  }
}

module attributes {stable_mosaic.version = 11 : i64} {
  func.func @_dwconv_bn_kernel(%arg0: i32, %arg1: i32, %arg2: memref<1x20x5x128xbf16, #tpu.memory_space<vmem>>, %arg3: memref<9x1x1x128xf32, #tpu.memory_space<vmem>>, %arg4: memref<9x1x1x128xf32, #tpu.memory_space<vmem>>, %arg5: memref<1x1x128xf32, #tpu.memory_space<vmem>>, %arg6: memref<1x1x128xf32, #tpu.memory_space<vmem>>, %arg7: memref<1x4x4x128xbf16, #tpu.memory_space<vmem>>, %arg8: memref<1x4x4x128xbf16, #tpu.memory_space<vmem>>) attributes {dimension_semantics = [#tpu.dimension_semantics<parallel>, #tpu.dimension_semantics<parallel>], iteration_bounds = array<i64: 2, 1>, scalar_prefetch = 0 : i64, scratch_operands = 0 : i64, tpu.core_type = #tpu.core_type<tc>, window_params = [{transform_indices = @transform_0, window_bounds = array<i64: 1, 20, 5, 128>}, {transform_indices = @transform_1, window_bounds = array<i64: 9, 1, 1, 128>}, {transform_indices = @transform_2, window_bounds = array<i64: 9, 1, 1, 128>}, {transform_indices = @transform_3, window_bounds = array<i64: 1, 1, 128>}, {transform_indices = @transform_4, window_bounds = array<i64: 1, 1, 128>}, {transform_indices = @transform_5, window_bounds = array<i64: 1, 4, 4, 128>}, {transform_indices = @transform_6, window_bounds = array<i64: 1, 4, 4, 128>}]} {
    %c0 = arith.constant 0 : index
    %c0_0 = arith.constant 0 : index
    %c0_1 = arith.constant 0 : index
    %c0_2 = arith.constant 0 : index
    %0 = vector.load %arg2[%c0, %c0_0, %c0_1, %c0_2] : memref<1x20x5x128xbf16, #tpu.memory_space<vmem>>, vector<1x20x5x128xbf16>
    %1 = vector.shape_cast %0 : vector<1x20x5x128xbf16> to vector<20x5x128xbf16>
    %2 = vector.extract_strided_slice %1 {offsets = [0, 0, 0], sizes = [4, 4, 128], strides = [1, 1, 1]} : vector<20x5x128xbf16> to vector<4x4x128xbf16>
    %3 = arith.extf %2 : vector<4x4x128xbf16> to vector<4x4x128xf32>
    %c0_3 = arith.constant 0 : index
    %c0_4 = arith.constant 0 : index
    %c0_5 = arith.constant 0 : index
    %c0_6 = arith.constant 0 : index
    %4 = vector.load %arg3[%c0_3, %c0_4, %c0_5, %c0_6] : memref<9x1x1x128xf32, #tpu.memory_space<vmem>>, vector<1x1x1x128xf32>
    %5 = vector.shape_cast %4 : vector<1x1x1x128xf32> to vector<1x1x128xf32>
    %6 = vector.broadcast %5 : vector<1x1x128xf32> to vector<4x4x128xf32>
    %7 = arith.mulf %3, %6 : vector<4x4x128xf32>
    %c0_7 = arith.constant 0 : index
    %c0_8 = arith.constant 0 : index
    %c0_9 = arith.constant 0 : index
    %c0_10 = arith.constant 0 : index
    %8 = vector.load %arg4[%c0_7, %c0_8, %c0_9, %c0_10] : memref<9x1x1x128xf32, #tpu.memory_space<vmem>>, vector<1x1x1x128xf32>
    %9 = vector.shape_cast %8 : vector<1x1x1x128xf32> to vector<1x1x128xf32>
    %10 = vector.broadcast %9 : vector<1x1x128xf32> to vector<4x4x128xf32>
    %11 = arith.mulf %3, %10 : vector<4x4x128xf32>
    %12 = vector.extract_strided_slice %1 {offsets = [5, 0, 0], sizes = [4, 4, 128], strides = [1, 1, 1]} : vector<20x5x128xbf16> to vector<4x4x128xbf16>
    %13 = arith.extf %12 : vector<4x4x128xbf16> to vector<4x4x128xf32>
    %c1 = arith.constant 1 : index
    %c0_11 = arith.constant 0 : index
    %c0_12 = arith.constant 0 : index
    %c0_13 = arith.constant 0 : index
    %14 = vector.load %arg3[%c1, %c0_11, %c0_12, %c0_13] : memref<9x1x1x128xf32, #tpu.memory_space<vmem>>, vector<1x1x1x128xf32>
    %15 = vector.shape_cast %14 : vector<1x1x1x128xf32> to vector<1x1x128xf32>
    %16 = vector.broadcast %15 : vector<1x1x128xf32> to vector<4x4x128xf32>
    %17 = arith.mulf %13, %16 : vector<4x4x128xf32>
    %18 = arith.addf %7, %17 : vector<4x4x128xf32>
    %c1_14 = arith.constant 1 : index
    %c0_15 = arith.constant 0 : index
    %c0_16 = arith.constant 0 : index
    %c0_17 = arith.constant 0 : index
    %19 = vector.load %arg4[%c1_14, %c0_15, %c0_16, %c0_17] : memref<9x1x1x128xf32, #tpu.memory_space<vmem>>, vector<1x1x1x128xf32>
    %20 = vector.shape_cast %19 : vector<1x1x1x128xf32> to vector<1x1x128xf32>
    %21 = vector.broadcast %20 : vector<1x1x128xf32> to vector<4x4x128xf32>
    %22 = arith.mulf %13, %21 : vector<4x4x128xf32>
    %23 = arith.addf %11, %22 : vector<4x4x128xf32>
    %24 = vector.extract_strided_slice %1 {offsets = [0, 1, 0], sizes = [4, 4, 128], strides = [1, 1, 1]} : vector<20x5x128xbf16> to vector<4x4x128xbf16>
    %25 = arith.extf %24 : vector<4x4x128xbf16> to vector<4x4x128xf32>
    %c2 = arith.constant 2 : index
    %c0_18 = arith.constant 0 : index
    %c0_19 = arith.constant 0 : index
    %c0_20 = arith.constant 0 : index
    %26 = vector.load %arg3[%c2, %c0_18, %c0_19, %c0_20] : memref<9x1x1x128xf32, #tpu.memory_space<vmem>>, vector<1x1x1x128xf32>
    %27 = vector.shape_cast %26 : vector<1x1x1x128xf32> to vector<1x1x128xf32>
    %28 = vector.broadcast %27 : vector<1x1x128xf32> to vector<4x4x128xf32>
    %29 = arith.mulf %25, %28 : vector<4x4x128xf32>
    %30 = arith.addf %18, %29 : vector<4x4x128xf32>
    %c2_21 = arith.constant 2 : index
    %c0_22 = arith.constant 0 : index
    %c0_23 = arith.constant 0 : index
    %c0_24 = arith.constant 0 : index
    %31 = vector.load %arg4[%c2_21, %c0_22, %c0_23, %c0_24] : memref<9x1x1x128xf32, #tpu.memory_space<vmem>>, vector<1x1x1x128xf32>
    %32 = vector.shape_cast %31 : vector<1x1x1x128xf32> to vector<1x1x128xf32>
    %33 = vector.broadcast %32 : vector<1x1x128xf32> to vector<4x4x128xf32>
    %34 = arith.mulf %25, %33 : vector<4x4x128xf32>
    %35 = arith.addf %23, %34 : vector<4x4x128xf32>
    %36 = vector.extract_strided_slice %1 {offsets = [10, 0, 0], sizes = [4, 4, 128], strides = [1, 1, 1]} : vector<20x5x128xbf16> to vector<4x4x128xbf16>
    %37 = arith.extf %36 : vector<4x4x128xbf16> to vector<4x4x128xf32>
    %c3 = arith.constant 3 : index
    %c0_25 = arith.constant 0 : index
    %c0_26 = arith.constant 0 : index
    %c0_27 = arith.constant 0 : index
    %38 = vector.load %arg3[%c3, %c0_25, %c0_26, %c0_27] : memref<9x1x1x128xf32, #tpu.memory_space<vmem>>, vector<1x1x1x128xf32>
    %39 = vector.shape_cast %38 : vector<1x1x1x128xf32> to vector<1x1x128xf32>
    %40 = vector.broadcast %39 : vector<1x1x128xf32> to vector<4x4x128xf32>
    %41 = arith.mulf %37, %40 : vector<4x4x128xf32>
    %42 = arith.addf %30, %41 : vector<4x4x128xf32>
    %c3_28 = arith.constant 3 : index
    %c0_29 = arith.constant 0 : index
    %c0_30 = arith.constant 0 : index
    %c0_31 = arith.constant 0 : index
    %43 = vector.load %arg4[%c3_28, %c0_29, %c0_30, %c0_31] : memref<9x1x1x128xf32, #tpu.memory_space<vmem>>, vector<1x1x1x128xf32>
    %44 = vector.shape_cast %43 : vector<1x1x1x128xf32> to vector<1x1x128xf32>
    %45 = vector.broadcast %44 : vector<1x1x128xf32> to vector<4x4x128xf32>
    %46 = arith.mulf %37, %45 : vector<4x4x128xf32>
    %47 = arith.addf %35, %46 : vector<4x4x128xf32>
    %48 = vector.extract_strided_slice %1 {offsets = [15, 0, 0], sizes = [4, 4, 128], strides = [1, 1, 1]} : vector<20x5x128xbf16> to vector<4x4x128xbf16>
    %49 = arith.extf %48 : vector<4x4x128xbf16> to vector<4x4x128xf32>
    %c4 = arith.constant 4 : index
    %c0_32 = arith.constant 0 : index
    %c0_33 = arith.constant 0 : index
    %c0_34 = arith.constant 0 : index
    %50 = vector.load %arg3[%c4, %c0_32, %c0_33, %c0_34] : memref<9x1x1x128xf32, #tpu.memory_space<vmem>>, vector<1x1x1x128xf32>
    %51 = vector.shape_cast %50 : vector<1x1x1x128xf32> to vector<1x1x128xf32>
    %52 = vector.broadcast %51 : vector<1x1x128xf32> to vector<4x4x128xf32>
    %53 = arith.mulf %49, %52 : vector<4x4x128xf32>
    %54 = arith.addf %42, %53 : vector<4x4x128xf32>
    %c4_35 = arith.constant 4 : index
    %c0_36 = arith.constant 0 : index
    %c0_37 = arith.constant 0 : index
    %c0_38 = arith.constant 0 : index
    %55 = vector.load %arg4[%c4_35, %c0_36, %c0_37, %c0_38] : memref<9x1x1x128xf32, #tpu.memory_space<vmem>>, vector<1x1x1x128xf32>
    %56 = vector.shape_cast %55 : vector<1x1x1x128xf32> to vector<1x1x128xf32>
    %57 = vector.broadcast %56 : vector<1x1x128xf32> to vector<4x4x128xf32>
    %58 = arith.mulf %49, %57 : vector<4x4x128xf32>
    %59 = arith.addf %47, %58 : vector<4x4x128xf32>
    %60 = vector.extract_strided_slice %1 {offsets = [10, 1, 0], sizes = [4, 4, 128], strides = [1, 1, 1]} : vector<20x5x128xbf16> to vector<4x4x128xbf16>
    %61 = arith.extf %60 : vector<4x4x128xbf16> to vector<4x4x128xf32>
    %c5 = arith.constant 5 : index
    %c0_39 = arith.constant 0 : index
    %c0_40 = arith.constant 0 : index
    %c0_41 = arith.constant 0 : index
    %62 = vector.load %arg3[%c5, %c0_39, %c0_40, %c0_41] : memref<9x1x1x128xf32, #tpu.memory_space<vmem>>, vector<1x1x1x128xf32>
    %63 = vector.shape_cast %62 : vector<1x1x1x128xf32> to vector<1x1x128xf32>
    %64 = vector.broadcast %63 : vector<1x1x128xf32> to vector<4x4x128xf32>
    %65 = arith.mulf %61, %64 : vector<4x4x128xf32>
    %66 = arith.addf %54, %65 : vector<4x4x128xf32>
    %c5_42 = arith.constant 5 : index
    %c0_43 = arith.constant 0 : index
    %c0_44 = arith.constant 0 : index
    %c0_45 = arith.constant 0 : index
    %67 = vector.load %arg4[%c5_42, %c0_43, %c0_44, %c0_45] : memref<9x1x1x128xf32, #tpu.memory_space<vmem>>, vector<1x1x1x128xf32>
    %68 = vector.shape_cast %67 : vector<1x1x1x128xf32> to vector<1x1x128xf32>
    %69 = vector.broadcast %68 : vector<1x1x128xf32> to vector<4x4x128xf32>
    %70 = arith.mulf %61, %69 : vector<4x4x128xf32>
    %71 = arith.addf %59, %70 : vector<4x4x128xf32>
    %72 = vector.extract_strided_slice %1 {offsets = [1, 0, 0], sizes = [4, 4, 128], strides = [1, 1, 1]} : vector<20x5x128xbf16> to vector<4x4x128xbf16>
    %73 = arith.extf %72 : vector<4x4x128xbf16> to vector<4x4x128xf32>
    %c6 = arith.constant 6 : index
    %c0_46 = arith.constant 0 : index
    %c0_47 = arith.constant 0 : index
    %c0_48 = arith.constant 0 : index
    %74 = vector.load %arg3[%c6, %c0_46, %c0_47, %c0_48] : memref<9x1x1x128xf32, #tpu.memory_space<vmem>>, vector<1x1x1x128xf32>
    %75 = vector.shape_cast %74 : vector<1x1x1x128xf32> to vector<1x1x128xf32>
    %76 = vector.broadcast %75 : vector<1x1x128xf32> to vector<4x4x128xf32>
    %77 = arith.mulf %73, %76 : vector<4x4x128xf32>
    %78 = arith.addf %66, %77 : vector<4x4x128xf32>
    %c6_49 = arith.constant 6 : index
    %c0_50 = arith.constant 0 : index
    %c0_51 = arith.constant 0 : index
    %c0_52 = arith.constant 0 : index
    %79 = vector.load %arg4[%c6_49, %c0_50, %c0_51, %c0_52] : memref<9x1x1x128xf32, #tpu.memory_space<vmem>>, vector<1x1x1x128xf32>
    %80 = vector.shape_cast %79 : vector<1x1x1x128xf32> to vector<1x1x128xf32>
    %81 = vector.broadcast %80 : vector<1x1x128xf32> to vector<4x4x128xf32>
    %82 = arith.mulf %73, %81 : vector<4x4x128xf32>
    %83 = arith.addf %71, %82 : vector<4x4x128xf32>
    %84 = vector.extract_strided_slice %1 {offsets = [6, 0, 0], sizes = [4, 4, 128], strides = [1, 1, 1]} : vector<20x5x128xbf16> to vector<4x4x128xbf16>
    %85 = arith.extf %84 : vector<4x4x128xbf16> to vector<4x4x128xf32>
    %c7 = arith.constant 7 : index
    %c0_53 = arith.constant 0 : index
    %c0_54 = arith.constant 0 : index
    %c0_55 = arith.constant 0 : index
    %86 = vector.load %arg3[%c7, %c0_53, %c0_54, %c0_55] : memref<9x1x1x128xf32, #tpu.memory_space<vmem>>, vector<1x1x1x128xf32>
    %87 = vector.shape_cast %86 : vector<1x1x1x128xf32> to vector<1x1x128xf32>
    %88 = vector.broadcast %87 : vector<1x1x128xf32> to vector<4x4x128xf32>
    %89 = arith.mulf %85, %88 : vector<4x4x128xf32>
    %90 = arith.addf %78, %89 : vector<4x4x128xf32>
    %c7_56 = arith.constant 7 : index
    %c0_57 = arith.constant 0 : index
    %c0_58 = arith.constant 0 : index
    %c0_59 = arith.constant 0 : index
    %91 = vector.load %arg4[%c7_56, %c0_57, %c0_58, %c0_59] : memref<9x1x1x128xf32, #tpu.memory_space<vmem>>, vector<1x1x1x128xf32>
    %92 = vector.shape_cast %91 : vector<1x1x1x128xf32> to vector<1x1x128xf32>
    %93 = vector.broadcast %92 : vector<1x1x128xf32> to vector<4x4x128xf32>
    %94 = arith.mulf %85, %93 : vector<4x4x128xf32>
    %95 = arith.addf %83, %94 : vector<4x4x128xf32>
    %96 = vector.extract_strided_slice %1 {offsets = [1, 1, 0], sizes = [4, 4, 128], strides = [1, 1, 1]} : vector<20x5x128xbf16> to vector<4x4x128xbf16>
    %97 = arith.extf %96 : vector<4x4x128xbf16> to vector<4x4x128xf32>
    %c8 = arith.constant 8 : index
    %c0_60 = arith.constant 0 : index
    %c0_61 = arith.constant 0 : index
    %c0_62 = arith.constant 0 : index
    %98 = vector.load %arg3[%c8, %c0_60, %c0_61, %c0_62] : memref<9x1x1x128xf32, #tpu.memory_space<vmem>>, vector<1x1x1x128xf32>
    %99 = vector.shape_cast %98 : vector<1x1x1x128xf32> to vector<1x1x128xf32>
    %100 = vector.broadcast %99 : vector<1x1x128xf32> to vector<4x4x128xf32>
    %101 = arith.mulf %97, %100 : vector<4x4x128xf32>
    %102 = arith.addf %90, %101 : vector<4x4x128xf32>
    %c8_63 = arith.constant 8 : index
    %c0_64 = arith.constant 0 : index
    %c0_65 = arith.constant 0 : index
    %c0_66 = arith.constant 0 : index
    %103 = vector.load %arg4[%c8_63, %c0_64, %c0_65, %c0_66] : memref<9x1x1x128xf32, #tpu.memory_space<vmem>>, vector<1x1x1x128xf32>
    %104 = vector.shape_cast %103 : vector<1x1x1x128xf32> to vector<1x1x128xf32>
    %105 = vector.broadcast %104 : vector<1x1x128xf32> to vector<4x4x128xf32>
    %106 = arith.mulf %97, %105 : vector<4x4x128xf32>
    %107 = arith.addf %95, %106 : vector<4x4x128xf32>
    %c0_67 = arith.constant 0 : index
    %c0_68 = arith.constant 0 : index
    %c0_69 = arith.constant 0 : index
    %108 = vector.load %arg5[%c0_67, %c0_68, %c0_69] : memref<1x1x128xf32, #tpu.memory_space<vmem>>, vector<1x1x128xf32>
    %109 = vector.broadcast %108 : vector<1x1x128xf32> to vector<4x4x128xf32>
    %110 = arith.addf %102, %109 : vector<4x4x128xf32>
    %111 = arith.truncf %110 : vector<4x4x128xf32> to vector<4x4x128xbf16>
    %c0_70 = arith.constant 0 : index
    %c0_71 = arith.constant 0 : index
    %c0_72 = arith.constant 0 : index
    %c0_73 = arith.constant 0 : index
    %112 = vector.load %arg7[%c0_70, %c0_71, %c0_72, %c0_73] : memref<1x4x4x128xbf16, #tpu.memory_space<vmem>>, vector<1x4x4x128xbf16>
    %113 = vector.shape_cast %112 : vector<1x4x4x128xbf16> to vector<4x4x128xbf16>
    %114 = vector.shape_cast %111 : vector<4x4x128xbf16> to vector<1x4x4x128xbf16>
    tpu.vector_store %arg7[%c0_70, %c0_71, %c0_72, %c0_73], %114 {strides = array<i32>} : memref<1x4x4x128xbf16, #tpu.memory_space<vmem>>, vector<1x4x4x128xbf16>,
    %c0_74 = arith.constant 0 : index
    %c0_75 = arith.constant 0 : index
    %c0_76 = arith.constant 0 : index
    %115 = vector.load %arg6[%c0_74, %c0_75, %c0_76] : memref<1x1x128xf32, #tpu.memory_space<vmem>>, vector<1x1x128xf32>
    %116 = vector.broadcast %115 : vector<1x1x128xf32> to vector<4x4x128xf32>
    %117 = arith.addf %107, %116 : vector<4x4x128xf32>
    %118 = arith.truncf %117 : vector<4x4x128xf32> to vector<4x4x128xbf16>
    %c0_77 = arith.constant 0 : index
    %c0_78 = arith.constant 0 : index
    %c0_79 = arith.constant 0 : index
    %c0_80 = arith.constant 0 : index
    %119 = vector.load %arg8[%c0_77, %c0_78, %c0_79, %c0_80] : memref<1x4x4x128xbf16, #tpu.memory_space<vmem>>, vector<1x4x4x128xbf16>
    %120 = vector.shape_cast %119 : vector<1x4x4x128xbf16> to vector<4x4x128xbf16>
    %121 = vector.shape_cast %118 : vector<4x4x128xbf16> to vector<1x4x4x128xbf16>
    tpu.vector_store %arg8[%c0_77, %c0_78, %c0_79, %c0_80], %121 {strides = array<i32>} : memref<1x4x4x128xbf16, #tpu.memory_space<vmem>>, vector<1x4x4x128xbf16>,
    return
  }
  func.func @transform_0(%arg0: i32, %arg1: i32) -> (i32, i32, i32, i32) {
    %c0_i32 = arith.constant 0 : i32
    %c0_i32_0 = arith.constant 0 : i32
    %c0_i32_1 = arith.constant 0 : i32
    return %arg0, %c0_i32, %c0_i32_0, %arg1 : i32, i32, i32, i32
  }
  func.func @transform_1(%arg0: i32, %arg1: i32) -> (i32, i32, i32, i32) {
    %c0_i32 = arith.constant 0 : i32
    %c0_i32_0 = arith.constant 0 : i32
    %c0_i32_1 = arith.constant 0 : i32
    %c0_i32_2 = arith.constant 0 : i32
    return %c0_i32, %c0_i32_0, %c0_i32_1, %arg1 : i32, i32, i32, i32
  }
  func.func @transform_2(%arg0: i32, %arg1: i32) -> (i32, i32, i32, i32) {
    %c0_i32 = arith.constant 0 : i32
    %c0_i32_0 = arith.constant 0 : i32
    %c0_i32_1 = arith.constant 0 : i32
    %c0_i32_2 = arith.constant 0 : i32
    return %c0_i32, %c0_i32_0, %c0_i32_1, %arg1 : i32, i32, i32, i32
  }
  func.func @transform_3(%arg0: i32, %arg1: i32) -> (i32, i32, i32) {
    %c0_i32 = arith.constant 0 : i32
    %c0_i32_0 = arith.constant 0 : i32
    %c0_i32_1 = arith.constant 0 : i32
    return %c0_i32, %c0_i32_0, %arg1 : i32, i32, i32
  }
  func.func @transform_4(%arg0: i32, %arg1: i32) -> (i32, i32, i32) {
    %c0_i32 = arith.constant 0 : i32
    %c0_i32_0 = arith.constant 0 : i32
    %c0_i32_1 = arith.constant 0 : i32
    return %c0_i32, %c0_i32_0, %arg1 : i32, i32, i32
  }
  func.func @transform_5(%arg0: i32, %arg1: i32) -> (i32, i32, i32, i32) {
    %c0_i32 = arith.constant 0 : i32
    %c0_i32_0 = arith.constant 0 : i32
    %c0_i32_1 = arith.constant 0 : i32
    return %arg0, %c0_i32, %c0_i32_0, %arg1 : i32, i32, i32, i32
  }
  func.func @transform_6(%arg0: i32, %arg1: i32) -> (i32, i32, i32, i32) {
    %c0_i32 = arith.constant 0 : i32
    %c0_i32_0 = arith.constant 0 : i32
    %c0_i32_1 = arith.constant 0 : i32
    return %arg0, %c0_i32, %c0_i32_0, %arg1 : i32, i32, i32, i32
  }
}

module attributes {stable_mosaic.version = 11 : i64} {
  func.func @_bmm_bias_kernel(%arg0: i32, %arg1: i32, %arg2: i32, %arg3: i32, %arg4: memref<1x48x128xbf16, #tpu.memory_space<vmem>>, %arg5: memref<1x128x128xbf16, #tpu.memory_space<vmem>>, %arg6: memref<1x1x128xf32, #tpu.memory_space<vmem>>, %arg7: memref<1x48x128xbf16, #tpu.memory_space<vmem>>, %arg8: memref<48x128xf32, #tpu.memory_space<vmem>>) attributes {dimension_semantics = [#tpu.dimension_semantics<parallel>, #tpu.dimension_semantics<parallel>, #tpu.dimension_semantics<parallel>, #tpu.dimension_semantics<arbitrary>], iteration_bounds = array<i64: 2, 1, 1, 1>, scalar_prefetch = 0 : i64, scratch_operands = 1 : i64, tpu.core_type = #tpu.core_type<tc>, window_params = [{transform_indices = @transform_0, window_bounds = array<i64: 1, 48, 128>}, {transform_indices = @transform_1, window_bounds = array<i64: 1, 128, 128>}, {transform_indices = @transform_2, window_bounds = array<i64: 1, 1, 128>}, {transform_indices = @transform_3, window_bounds = array<i64: 1, 48, 128>}]} {
    %c0_i32 = arith.constant 0 : i32
    %0 = arith.cmpi eq, %arg3, %c0_i32 : i32
    %1 = arith.extui %0 : i1 to i32
    %c0_i32_0 = arith.constant 0 : i32
    %2 = arith.cmpi ne, %1, %c0_i32_0 : i32
    scf.if %2 {
      %cst_12 = arith.constant 0.000000e+00 : f32
      %14 = vector.broadcast %cst_12 : f32 to vector<48x128xf32>
      %c0_13 = arith.constant 0 : index
      %c0_14 = arith.constant 0 : index
      %15 = vector.load %arg8[%c0_13, %c0_14] : memref<48x128xf32, #tpu.memory_space<vmem>>, vector<48x128xf32>
      tpu.vector_store %arg8[%c0_13, %c0_14], %14 {strides = array<i32>} : memref<48x128xf32, #tpu.memory_space<vmem>>, vector<48x128xf32>,
    } else {
    }
    %c0 = arith.constant 0 : index
    %c0_1 = arith.constant 0 : index
    %3 = vector.load %arg8[%c0, %c0_1] : memref<48x128xf32, #tpu.memory_space<vmem>>, vector<48x128xf32>
    %c0_2 = arith.constant 0 : index
    %c0_3 = arith.constant 0 : index
    %c0_4 = arith.constant 0 : index
    %4 = vector.load %arg4[%c0_2, %c0_3, %c0_4] : memref<1x48x128xbf16, #tpu.memory_space<vmem>>, vector<1x48x128xbf16>
    %5 = vector.shape_cast %4 : vector<1x48x128xbf16> to vector<48x128xbf16>
    %c0_5 = arith.constant 0 : index
    %c0_6 = arith.constant 0 : index
    %c0_7 = arith.constant 0 : index
    %6 = vector.load %arg5[%c0_5, %c0_6, %c0_7] : memref<1x128x128xbf16, #tpu.memory_space<vmem>>, vector<1x128x128xbf16>
    %7 = vector.shape_cast %6 : vector<1x128x128xbf16> to vector<128x128xbf16>
    %cst = arith.constant dense<0.000000e+00> : vector<48x128xf32>
    %8 = tpu.matmul %5, %7, %cst {dimension_numbers = #tpu.dot_dimension_numbers<[1], [0], [0], [1], [0, 0, 1, 1], [], []>} : vector<48x128xbf16>, vector<128x128xbf16>, vector<48x128xf32> -> vector<48x128xf32>
    %9 = arith.addf %3, %8 : vector<48x128xf32>
    %c0_8 = arith.constant 0 : index
    %c0_9 = arith.constant 0 : index
    %10 = vector.load %arg8[%c0_8, %c0_9] : memref<48x128xf32, #tpu.memory_space<vmem>>, vector<48x128xf32>
    tpu.vector_store %arg8[%c0_8, %c0_9], %9 {strides = array<i32>} : memref<48x128xf32, #tpu.memory_space<vmem>>, vector<48x128xf32>,
    %c0_i32_10 = arith.constant 0 : i32
    %11 = arith.cmpi eq, %arg3, %c0_i32_10 : i32
    %12 = arith.extui %11 : i1 to i32
    %c0_i32_11 = arith.constant 0 : i32
    %13 = arith.cmpi ne, %12, %c0_i32_11 : i32
    scf.if %13 {
      %c0_12 = arith.constant 0 : index
      %c0_13 = arith.constant 0 : index
      %14 = vector.load %arg8[%c0_12, %c0_13] : memref<48x128xf32, #tpu.memory_space<vmem>>, vector<48x128xf32>
      %c0_14 = arith.constant 0 : index
      %c0_15 = arith.constant 0 : index
      %c0_16 = arith.constant 0 : index
      %15 = vector.load %arg6[%c0_14, %c0_15, %c0_16] : memref<1x1x128xf32, #tpu.memory_space<vmem>>, vector<1x1x128xf32>
      %16 = vector.shape_cast %15 : vector<1x1x128xf32> to vector<1x128xf32>
      %17 = vector.broadcast %16 : vector<1x128xf32> to vector<48x128xf32>
      %18 = arith.addf %14, %17 : vector<48x128xf32>
      %19 = arith.truncf %18 : vector<48x128xf32> to vector<48x128xbf16>
      %c0_17 = arith.constant 0 : index
      %c0_18 = arith.constant 0 : index
      %c0_19 = arith.constant 0 : index
      %20 = vector.load %arg7[%c0_17, %c0_18, %c0_19] : memref<1x48x128xbf16, #tpu.memory_space<vmem>>, vector<1x48x128xbf16>
      %21 = vector.shape_cast %20 : vector<1x48x128xbf16> to vector<48x128xbf16>
      %22 = vector.shape_cast %19 : vector<48x128xbf16> to vector<1x48x128xbf16>
      tpu.vector_store %arg7[%c0_17, %c0_18, %c0_19], %22 {strides = array<i32>} : memref<1x48x128xbf16, #tpu.memory_space<vmem>>, vector<1x48x128xbf16>,
    } else {
    }
    return
  }
  func.func @transform_0(%arg0: i32, %arg1: i32, %arg2: i32, %arg3: i32) -> (i32, i32, i32) {
    %c0_i32 = arith.constant 0 : i32
    return %arg0, %arg1, %arg3 : i32, i32, i32
  }
  func.func @transform_1(%arg0: i32, %arg1: i32, %arg2: i32, %arg3: i32) -> (i32, i32, i32) {
    %c0_i32 = arith.constant 0 : i32
    return %arg0, %arg3, %arg2 : i32, i32, i32
  }
  func.func @transform_2(%arg0: i32, %arg1: i32, %arg2: i32, %arg3: i32) -> (i32, i32, i32) {
    %c0_i32 = arith.constant 0 : i32
    %c0_i32_0 = arith.constant 0 : i32
    return %arg0, %c0_i32, %arg2 : i32, i32, i32
  }
  func.func @transform_3(%arg0: i32, %arg1: i32, %arg2: i32, %arg3: i32) -> (i32, i32, i32) {
    %c0_i32 = arith.constant 0 : i32
    return %arg0, %arg1, %arg2 : i32, i32, i32
  }
}

module attributes {stable_mosaic.version = 11 : i64} {
  func.func @_mha_proj_kernel(%arg0: i32, %arg1: i32, %arg2: memref<1x80x128xbf16, #tpu.memory_space<vmem>>, %arg3: memref<1x17x128xbf16, #tpu.memory_space<vmem>>, %arg4: memref<1x17x128xbf16, #tpu.memory_space<vmem>>, %arg5: memref<128x128xbf16, #tpu.memory_space<vmem>>, %arg6: memref<1x128xf32, #tpu.memory_space<vmem>>, %arg7: memref<1x80x128xf32, #tpu.memory_space<vmem>>) attributes {dimension_semantics = [#tpu.dimension_semantics<parallel>, #tpu.dimension_semantics<parallel>], iteration_bounds = array<i64: 2, 1>, scalar_prefetch = 0 : i64, scratch_operands = 0 : i64, tpu.core_type = #tpu.core_type<tc>, window_params = [{transform_indices = @transform_0, window_bounds = array<i64: 1, 80, 128>}, {transform_indices = @transform_1, window_bounds = array<i64: 1, 17, 128>}, {transform_indices = @transform_2, window_bounds = array<i64: 1, 17, 128>}, {pipeline_mode = #tpu.pipeline_mode<synchronous>, transform_indices = @transform_3, window_bounds = array<i64: 128, 128>}, {pipeline_mode = #tpu.pipeline_mode<synchronous>, transform_indices = @transform_4, window_bounds = array<i64: 1, 128>}, {transform_indices = @transform_5, window_bounds = array<i64: 1, 80, 128>}]} {
    %c0 = arith.constant 0 : index
    %c0_0 = arith.constant 0 : index
    %c0_1 = arith.constant 0 : index
    %0 = vector.load %arg2[%c0, %c0_0, %c0_1] : memref<1x80x128xbf16, #tpu.memory_space<vmem>>, vector<1x80x128xbf16>
    %1 = vector.shape_cast %0 : vector<1x80x128xbf16> to vector<80x128xbf16>
    %c0_2 = arith.constant 0 : index
    %c0_3 = arith.constant 0 : index
    %c0_4 = arith.constant 0 : index
    %2 = vector.load %arg3[%c0_2, %c0_3, %c0_4] : memref<1x17x128xbf16, #tpu.memory_space<vmem>>, vector<1x17x128xbf16>
    %3 = vector.shape_cast %2 : vector<1x17x128xbf16> to vector<17x128xbf16>
    %c0_5 = arith.constant 0 : index
    %c0_6 = arith.constant 0 : index
    %c0_7 = arith.constant 0 : index
    %4 = vector.load %arg4[%c0_5, %c0_6, %c0_7] : memref<1x17x128xbf16, #tpu.memory_space<vmem>>, vector<1x17x128xbf16>
    %5 = vector.shape_cast %4 : vector<1x17x128xbf16> to vector<17x128xbf16>
    %c0_8 = arith.constant 0 : index
    %c0_9 = arith.constant 0 : index
    %6 = vector.load %arg5[%c0_8, %c0_9] : memref<128x128xbf16, #tpu.memory_space<vmem>>, vector<128x128xbf16>
    %7 = vector.extract_strided_slice %1 {offsets = [0, 0], sizes = [80, 64], strides = [1, 1]} : vector<80x128xbf16> to vector<80x64xbf16>
    %8 = vector.extract_strided_slice %3 {offsets = [0, 0], sizes = [17, 64], strides = [1, 1]} : vector<17x128xbf16> to vector<17x64xbf16>
    %cst = arith.constant dense<0.000000e+00> : vector<80x17xf32>
    %9 = tpu.matmul %7, %8, %cst {dimension_numbers = #tpu.dot_dimension_numbers<[1], [1], [0], [0], [0, 0, 1, 0], [], []>} : vector<80x64xbf16>, vector<17x64xbf16>, vector<80x17xf32> -> vector<80x17xf32>
    %cst_10 = arith.constant dense<0xFF800000> : vector<80xf32>
    %10 = vector.multi_reduction <maximumf>, %9, %cst_10 [1] : vector<80x17xf32> to vector<80xf32>
    %11 = vector.shape_cast %10 : vector<80xf32> to vector<80x1xf32>
    %12 = vector.broadcast %11 : vector<80x1xf32> to vector<80x17xf32>
    %13 = arith.subf %9, %12 : vector<80x17xf32>
    %14 = math.exp %13 : vector<80x17xf32>
    %cst_11 = arith.constant dense<0.000000e+00> : vector<80xf32>
    %15 = vector.multi_reduction <add>, %14, %cst_11 [1] : vector<80x17xf32> to vector<80xf32>
    %16 = vector.shape_cast %15 : vector<80xf32> to vector<80x1xf32>
    %17 = tpu.reciprocal %16 {approx = true} : vector<80x1xf32> -> vector<80x1xf32>
    %18 = vector.broadcast %17 : vector<80x1xf32> to vector<80x17xf32>
    %19 = arith.mulf %14, %18 : vector<80x17xf32>
    %20 = arith.truncf %19 : vector<80x17xf32> to vector<80x17xbf16>
    %21 = vector.extract_strided_slice %5 {offsets = [0, 0], sizes = [17, 64], strides = [1, 1]} : vector<17x128xbf16> to vector<17x64xbf16>
    %cst_12 = arith.constant dense<0.000000e+00> : vector<80x64xf32>
    %22 = tpu.matmul %20, %21, %cst_12 {dimension_numbers = #tpu.dot_dimension_numbers<[1], [0], [0], [1], [0, 0, 1, 1], [], []>} : vector<80x17xbf16>, vector<17x64xbf16>, vector<80x64xf32> -> vector<80x64xf32>
    %23 = arith.truncf %22 : vector<80x64xf32> to vector<80x64xbf16>
    %24 = vector.extract_strided_slice %6 {offsets = [0, 0], sizes = [64, 128], strides = [1, 1]} : vector<128x128xbf16> to vector<64x128xbf16>
    %cst_13 = arith.constant dense<0.000000e+00> : vector<80x128xf32>
    %25 = tpu.matmul %23, %24, %cst_13 {dimension_numbers = #tpu.dot_dimension_numbers<[1], [0], [0], [1], [0, 0, 1, 1], [], []>} : vector<80x64xbf16>, vector<64x128xbf16>, vector<80x128xf32> -> vector<80x128xf32>
    %26 = vector.extract_strided_slice %1 {offsets = [0, 64], sizes = [80, 64], strides = [1, 1]} : vector<80x128xbf16> to vector<80x64xbf16>
    %27 = vector.extract_strided_slice %3 {offsets = [0, 64], sizes = [17, 64], strides = [1, 1]} : vector<17x128xbf16> to vector<17x64xbf16>
    %cst_14 = arith.constant dense<0.000000e+00> : vector<80x17xf32>
    %28 = tpu.matmul %26, %27, %cst_14 {dimension_numbers = #tpu.dot_dimension_numbers<[1], [1], [0], [0], [0, 0, 1, 0], [], []>} : vector<80x64xbf16>, vector<17x64xbf16>, vector<80x17xf32> -> vector<80x17xf32>
    %cst_15 = arith.constant dense<0xFF800000> : vector<80xf32>
    %29 = vector.multi_reduction <maximumf>, %28, %cst_15 [1] : vector<80x17xf32> to vector<80xf32>
    %30 = vector.shape_cast %29 : vector<80xf32> to vector<80x1xf32>
    %31 = vector.broadcast %30 : vector<80x1xf32> to vector<80x17xf32>
    %32 = arith.subf %28, %31 : vector<80x17xf32>
    %33 = math.exp %32 : vector<80x17xf32>
    %cst_16 = arith.constant dense<0.000000e+00> : vector<80xf32>
    %34 = vector.multi_reduction <add>, %33, %cst_16 [1] : vector<80x17xf32> to vector<80xf32>
    %35 = vector.shape_cast %34 : vector<80xf32> to vector<80x1xf32>
    %36 = tpu.reciprocal %35 {approx = true} : vector<80x1xf32> -> vector<80x1xf32>
    %37 = vector.broadcast %36 : vector<80x1xf32> to vector<80x17xf32>
    %38 = arith.mulf %33, %37 : vector<80x17xf32>
    %39 = arith.truncf %38 : vector<80x17xf32> to vector<80x17xbf16>
    %40 = vector.extract_strided_slice %5 {offsets = [0, 64], sizes = [17, 64], strides = [1, 1]} : vector<17x128xbf16> to vector<17x64xbf16>
    %cst_17 = arith.constant dense<0.000000e+00> : vector<80x64xf32>
    %41 = tpu.matmul %39, %40, %cst_17 {dimension_numbers = #tpu.dot_dimension_numbers<[1], [0], [0], [1], [0, 0, 1, 1], [], []>} : vector<80x17xbf16>, vector<17x64xbf16>, vector<80x64xf32> -> vector<80x64xf32>
    %42 = arith.truncf %41 : vector<80x64xf32> to vector<80x64xbf16>
    %43 = vector.extract_strided_slice %6 {offsets = [64, 0], sizes = [64, 128], strides = [1, 1]} : vector<128x128xbf16> to vector<64x128xbf16>
    %cst_18 = arith.constant dense<0.000000e+00> : vector<80x128xf32>
    %44 = tpu.matmul %42, %43, %cst_18 {dimension_numbers = #tpu.dot_dimension_numbers<[1], [0], [0], [1], [0, 0, 1, 1], [], []>} : vector<80x64xbf16>, vector<64x128xbf16>, vector<80x128xf32> -> vector<80x128xf32>
    %45 = arith.addf %25, %44 : vector<80x128xf32>
    %c0_19 = arith.constant 0 : index
    %c0_20 = arith.constant 0 : index
    %46 = vector.load %arg6[%c0_19, %c0_20] : memref<1x128xf32, #tpu.memory_space<vmem>>, vector<1x128xf32>
    %47 = vector.broadcast %46 : vector<1x128xf32> to vector<80x128xf32>
    %48 = arith.addf %45, %47 : vector<80x128xf32>
    %c0_21 = arith.constant 0 : index
    %c0_22 = arith.constant 0 : index
    %c0_23 = arith.constant 0 : index
    %49 = vector.load %arg7[%c0_21, %c0_22, %c0_23] : memref<1x80x128xf32, #tpu.memory_space<vmem>>, vector<1x80x128xf32>
    %50 = vector.shape_cast %49 : vector<1x80x128xf32> to vector<80x128xf32>
    %51 = vector.shape_cast %48 : vector<80x128xf32> to vector<1x80x128xf32>
    tpu.vector_store %arg7[%c0_21, %c0_22, %c0_23], %51 {strides = array<i32>} : memref<1x80x128xf32, #tpu.memory_space<vmem>>, vector<1x80x128xf32>,
    return
  }
  func.func @transform_0(%arg0: i32, %arg1: i32) -> (i32, i32, i32) {
    %c0_i32 = arith.constant 0 : i32
    %c0_i32_0 = arith.constant 0 : i32
    return %arg0, %arg1, %c0_i32 : i32, i32, i32
  }
  func.func @transform_1(%arg0: i32, %arg1: i32) -> (i32, i32, i32) {
    %c0_i32 = arith.constant 0 : i32
    %c0_i32_0 = arith.constant 0 : i32
    %c0_i32_1 = arith.constant 0 : i32
    return %arg0, %c0_i32, %c0_i32_0 : i32, i32, i32
  }
  func.func @transform_2(%arg0: i32, %arg1: i32) -> (i32, i32, i32) {
    %c0_i32 = arith.constant 0 : i32
    %c0_i32_0 = arith.constant 0 : i32
    %c0_i32_1 = arith.constant 0 : i32
    return %arg0, %c0_i32, %c0_i32_0 : i32, i32, i32
  }
  func.func @transform_3(%arg0: i32, %arg1: i32) -> (i32, i32) {
    %c0_i32 = arith.constant 0 : i32
    %c0_i32_0 = arith.constant 0 : i32
    %c0_i32_1 = arith.constant 0 : i32
    return %c0_i32, %c0_i32_0 : i32, i32
  }
  func.func @transform_4(%arg0: i32, %arg1: i32) -> (i32, i32) {
    %c0_i32 = arith.constant 0 : i32
    %c0_i32_0 = arith.constant 0 : i32
    %c0_i32_1 = arith.constant 0 : i32
    return %c0_i32, %c0_i32_0 : i32, i32
  }
  func.func @transform_5(%arg0: i32, %arg1: i32) -> (i32, i32, i32) {
    %c0_i32 = arith.constant 0 : i32
    %c0_i32_0 = arith.constant 0 : i32
    return %arg0, %arg1, %c0_i32 : i32, i32, i32
  }
}

</mosaic_0001>

<llo_original>
// kernel: squeeze.9
$region0: #{squeeze.9}
  %s0 = inlined_call_operand.vmem [shape: bf16[1,130,128], index: 0, kind: input, shape index: {}]
  %s1 = inlined_call_operand.vmem [shape: bf16[2,65,128], index: 1, kind: output, shape index: {}]
  $region1: #{squeeze.9} parent=0
    #allocation0 [shape = 'u8[73728]{0}', space=vmem, size = 0x12000, scoped, tag = 'scoped mem for output reshape']
    #allocation1 [shape = 'u8[69632]{0}', space=vmem, size = 0x11000, scoped, tag = 'scoped mem for input reshape']
    %s3 = smul.u32 4, 2
    %s4 = sshll.u32 1, %s3
    %s5 = ssub.s32 %s4, 1
    %s6 = smul.addr 4, 16
    %s7 = scalar_lea.vmem %s0, %s6
    %s8 = sshrl.u32 %s5, 1
    %s9 = sor.u32 %s5, %s8
    %s10 = sand.u32 %s9, 85
    %s11 = sshrl.u32 %s10, 1
    %s12 = sor.u32 %s10, %s11
    %s13 = sand.u32 51, %s12
    %s14 = sshrl.u32 %s13, 2
    %s15 = sor.u32 %s13, %s14
    %s16 = sand.u32 15, %s15
    %v17 = vld [vmem:[%s7] sm:%s16]
    %v18 = vunpack.c.l.bf16 %v17
    %v19 = vunpack.c.h.bf16 %v17
    %s20 = scalar_lea.vmem [#allocation1], 128
    %21 = vst [vmem:[%s20] sm:%s5] %v18
    %s22 = smul.addr 4, 15
    %s23 = scalar_lea.vmem %s0, %s22
    %s24 = sshrl.u32 %s5, 1
    %s25 = sor.u32 %s5, %s24
    %s26 = sand.u32 %s25, 85
    %s27 = sshrl.u32 %s26, 1
    %s28 = sor.u32 %s26, %s27
    %s29 = sand.u32 51, %s28
    %s30 = sshrl.u32 %s29, 2
    %s31 = sor.u32 %s29, %s30
    %s32 = sand.u32 15, %s31
    %v33 = vld [vmem:[%s23] sm:%s32]
    %v34 = vunpack.c.l.bf16 %v33
    %v35 = vunpack.c.h.bf16 %v33
    %s36 = scalar_lea.vmem [#allocation1], 120
    %37 = vst [vmem:[%s36] sm:%s5] %v34
    %s38 = smul.addr 4, 14
    %s39 = scalar_lea.vmem %s0, %s38
    %s40 = sshrl.u32 %s5, 1
    %s41 = sor.u32 %s5, %s40
    %s42 = sand.u32 %s41, 85
    %s43 = sshrl.u32 %s42, 1
    %s44 = sor.u32 %s42, %s43
    %s45 = sand.u32 51, %s44
    %s46 = sshrl.u32 %s45, 2
    %s47 = sor.u32 %s45, %s46
    %s48 = sand.u32 15, %s47
    %v49 = vld [vmem:[%s39] sm:%s48]
    %v50 = vunpack.c.l.bf16 %v49
    %v51 = vunpack.c.h.bf16 %v49
    %s52 = scalar_lea.vmem [#allocation1], 112
    %53 = vst [vmem:[%s52] sm:%s5] %v50
    %s54 = smul.addr 4, 13
    %s55 = scalar_lea.vmem %s0, %s54
    %s56 = sshrl.u32 %s5, 1
    %s57 = sor.u32 %s5, %s56
    %s58 = sand.u32 %s57, 85
    %s59 = sshrl.u32 %s58, 1
    %s60 = sor.u32 %s58, %s59
    %s61 = sand.u32 51, %s60
    %s62 = sshrl.u32 %s61, 2
    %s63 = sor.u32 %s61, %s62
    %s64 = sand.u32 15, %s63
    %v65 = vld [vmem:[%s55] sm:%s64]
    %v66 = vunpack.c.l.bf16 %v65
    %v67 = vunpack.c.h.bf16 %v65
    %s68 = scalar_lea.vmem [#allocation1], 104
    %69 = vst [vmem:[%s68] sm:%s5] %v66
    %s70 = smul.addr 4, 12
    %s71 = scalar_lea.vmem %s0, %s70
    %s72 = sshrl.u32 %s5, 1
    %s73 = sor.u32 %s5, %s72
    %s74 = sand.u32 %s73, 85
    %s75 = sshrl.u32 %s74, 1
    %s76 = sor.u32 %s74, %s75
    %s77 = sand.u32 51, %s76
    %s78 = sshrl.u32 %s77, 2
    %s79 = sor.u32 %s77, %s78
    %s80 = sand.u32 15, %s79
    %v81 = vld [vmem:[%s71] sm:%s80]
    %v82 = vunpack.c.l.bf16 %v81
    %v83 = vunpack.c.h.bf16 %v81
    %s84 = scalar_lea.vmem [#allocation1], 96
    %85 = vst [vmem:[%s84] sm:%s5] %v82
    %s86 = smul.addr 4, 11
    %s87 = scalar_lea.vmem %s0, %s86
    %s88 = sshrl.u32 %s5, 1
    %s89 = sor.u32 %s5, %s88
    %s90 = sand.u32 %s89, 85
    %s91 = sshrl.u32 %s90, 1
    %s92 = sor.u32 %s90, %s91
    %s93 = sand.u32 51, %s92
    %s94 = sshrl.u32 %s93, 2
    %s95 = sor.u32 %s93, %s94
    %s96 = sand.u32 15, %s95
    %v97 = vld [vmem:[%s87] sm:%s96]
    %v98 = vunpack.c.l.bf16 %v97
    %v99 = vunpack.c.h.bf16 %v97
    %s100 = scalar_lea.vmem [#allocation1], 88
    %101 = vst [vmem:[%s100] sm:%s5] %v98
    %s102 = smul.addr 4, 10
    %s103 = scalar_lea.vmem %s0, %s102
    %s104 = sshrl.u32 %s5, 1
    %s105 = sor.u32 %s5, %s104
    %s106 = sand.u32 %s105, 85
    %s107 = sshrl.u32 %s106, 1
    %s108 = sor.u32 %s106, %s107
    %s109 = sand.u32 51, %s108
    %s110 = sshrl.u32 %s109, 2
    %s111 = sor.u32 %s109, %s110
    %s112 = sand.u32 15, %s111
    %v113 = vld [vmem:[%s103] sm:%s112]
    %v114 = vunpack.c.l.bf16 %v113
    %v115 = vunpack.c.h.bf16 %v113
    %s116 = scalar_lea.vmem [#allocation1], 80
    %117 = vst [vmem:[%s116] sm:%s5] %v114
    %s118 = smul.addr 4, 9
    %s119 = scalar_lea.vmem %s0, %s118
    %s120 = sshrl.u32 %s5, 1
    %s121 = sor.u32 %s5, %s120
    %s122 = sand.u32 %s121, 85
    %s123 = sshrl.u32 %s122, 1
    %s124 = sor.u32 %s122, %s123
    %s125 = sand.u32 51, %s124
    %s126 = sshrl.u32 %s125, 2
    %s127 = sor.u32 %s125, %s126
    %s128 = sand.u32 15, %s127
    %v129 = vld [vmem:[%s119] sm:%s128]
    %v130 = vunpack.c.l.bf16 %v129
    %v131 = vunpack.c.h.bf16 %v129
    %s132 = scalar_lea.vmem [#allocation1], 72
    %133 = vst [vmem:[%s132] sm:%s5] %v130
    %s134 = smul.addr 4, 8
    %s135 = scalar_lea.vmem %s0, %s134
    %s136 = sshrl.u32 %s5, 1
    %s137 = sor.u32 %s5, %s136
    %s138 = sand.u32 %s137, 85
    %s139 = sshrl.u32 %s138, 1
    %s140 = sor.u32 %s138, %s139
    %s141 = sand.u32 51, %s140
    %s142 = sshrl.u32 %s141, 2
    %s143 = sor.u32 %s141, %s142
    %s144 = sand.u32 15, %s143
    %v145 = vld [vmem:[%s135] sm:%s144]
    %v146 = vunpack.c.l.bf16 %v145
    %v147 = vunpack.c.h.bf16 %v145
    %s148 = scalar_lea.vmem [#allocation1], 64
    %149 = vst [vmem:[%s148] sm:%s5] %v146
    %s150 = smul.addr 4, 7
    %s151 = scalar_lea.vmem %s0, %s150
    %s152 = sshrl.u32 %s5, 1
    %s153 = sor.u32 %s5, %s152
    %s154 = sand.u32 %s153, 85
    %s155 = sshrl.u32 %s154, 1
    %s156 = sor.u32 %s154, %s155
    %s157 = sand.u32 51, %s156
    %s158 = sshrl.u32 %s157, 2
    %s159 = sor.u32 %s157, %s158
    %s160 = sand.u32 15, %s159
    %v161 = vld [vmem:[%s151] sm:%s160]
    %v162 = vunpack.c.l.bf16 %v161
    %v163 = vunpack.c.h.bf16 %v161
    %s164 = scalar_lea.vmem [#allocation1], 56
    %165 = vst [vmem:[%s164] sm:%s5] %v162
    %s166 = smul.addr 4, 6
    %s167 = scalar_lea.vmem %s0, %s166
    %s168 = sshrl.u32 %s5, 1
    %s169 = sor.u32 %s5, %s168
    %s170 = sand.u32 %s169, 85
    %s171 = sshrl.u32 %s170, 1
    %s172 = sor.u32 %s170, %s171
    %s173 = sand.u32 51, %s172
    %s174 = sshrl.u32 %s173, 2
    %s175 = sor.u32 %s173, %s174
    %s176 = sand.u32 15, %s175
    %v177 = vld [vmem:[%s167] sm:%s176]
    %v178 = vunpack.c.l.bf16 %v177
    %v179 = vunpack.c.h.bf16 %v177
    %s180 = scalar_lea.vmem [#allocation1], 48
    %181 = vst [vmem:[%s180] sm:%s5] %v178
    %s182 = smul.addr 4, 5
    %s183 = scalar_lea.vmem %s0, %s182
    %s184 = sshrl.u32 %s5, 1
    %s185 = sor.u32 %s5, %s184
    %s186 = sand.u32 %s185, 85
    %s187 = sshrl.u32 %s186, 1
    %s188 = sor.u32 %s186, %s187
    %s189 = sand.u32 51, %s188
    %s190 = sshrl.u32 %s189, 2
    %s191 = sor.u32 %s189, %s190
    %s192 = sand.u32 15, %s191
    %v193 = vld [vmem:[%s183] sm:%s192]
    %v194 = vunpack.c.l.bf16 %v193
    %v195 = vunpack.c.h.bf16 %v193
    %s196 = scalar_lea.vmem [#allocation1], 40
    %197 = vst [vmem:[%s196] sm:%s5] %v194
    %s198 = smul.addr 4, 4
    %s199 = scalar_lea.vmem %s0, %s198
    %s200 = sshrl.u32 %s5, 1
    %s201 = sor.u32 %s5, %s200
    %s202 = sand.u32 %s201, 85
    %s203 = sshrl.u32 %s202, 1
    %s204 = sor.u32 %s202, %s203
    %s205 = sand.u32 51, %s204
    %s206 = sshrl.u32 %s205, 2
    %s207 = sor.u32 %s205, %s206
    %s208 = sand.u32 15, %s207
    %v209 = vld [vmem:[%s199] sm:%s208]
    %v210 = vunpack.c.l.bf16 %v209
    %v211 = vunpack.c.h.bf16 %v209
    %s212 = scalar_lea.vmem [#allocation1], 32
    %213 = vst [vmem:[%s212] sm:%s5] %v210
    %s214 = smul.addr 4, 3
    %s215 = scalar_lea.vmem %s0, %s214
    %s216 = sshrl.u32 %s5, 1
    %s217 = sor.u32 %s5, %s216
    %s218 = sand.u32 %s217, 85
    %s219 = sshrl.u32 %s218, 1
    %s220 = sor.u32 %s218, %s219
    %s221 = sand.u32 51, %s220
    %s222 = sshrl.u32 %s221, 2
    %s223 = sor.u32 %s221, %s222
    %s224 = sand.u32 15, %s223
    %v225 = vld [vmem:[%s215] sm:%s224]
    %v226 = vunpack.c.l.bf16 %v225
    %v227 = vunpack.c.h.bf16 %v225
    %s228 = scalar_lea.vmem [#allocation1], 24
    %229 = vst [vmem:[%s228] sm:%s5] %v226
    %s230 = smul.addr 4, 2
    %s231 = scalar_lea.vmem %s0, %s230
    %s232 = sshrl.u32 %s5, 1
    %s233 = sor.u32 %s5, %s232
    %s234 = sand.u32 %s233, 85
    %s235 = sshrl.u32 %s234, 1
    %s236 = sor.u32 %s234, %s235
    %s237 = sand.u32 51, %s236
    %s238 = sshrl.u32 %s237, 2
    %s239 = sor.u32 %s237, %s238
    %s240 = sand.u32 15, %s239
    %v241 = vld [vmem:[%s231] sm:%s240]
    %v242 = vunpack.c.l.bf16 %v241
    %v243 = vunpack.c.h.bf16 %v241
    %s244 = scalar_lea.vmem [#allocation1], 16
    %245 = vst [vmem:[%s244] sm:%s5] %v242
    %s246 = scalar_lea.vmem %s0, 4
    %s247 = sshrl.u32 %s5, 1
    %s248 = sor.u32 %s5, %s247
    %s249 = sand.u32 %s248, 85
    %s250 = sshrl.u32 %s249, 1
    %s251 = sor.u32 %s249, %s250
    %s252 = sand.u32 51, %s251
    %s253 = sshrl.u32 %s252, 2
    %s254 = sor.u32 %s252, %s253
    %s255 = sand.u32 15, %s254
    %v256 = vld [vmem:[%s246] sm:%s255]
    %v257 = vunpack.c.l.bf16 %v256
    %v258 = vunpack.c.h.bf16 %v256
    %s259 = scalar_lea.vmem [#allocation1], 8
    %260 = vst [vmem:[%s259] sm:%s5] %v257
    %s261 = sshrl.u32 %s5, 1
    %s262 = sor.u32 %s5, %s261
    %s263 = sand.u32 %s262, 85
    %s264 = sshrl.u32 %s263, 1
    %s265 = sor.u32 %s263, %s264
    %s266 = sand.u32 51, %s265
    %s267 = sshrl.u32 %s266, 2
    %s268 = sor.u32 %s266, %s267
    %s269 = sand.u32 15, %s268
    %v270 = vld [vmem:[%s0] sm:%s269]
    %v271 = vunpack.c.l.bf16 %v270
    %v272 = vunpack.c.h.bf16 %v270
    %273 = vst [vmem:[#allocation1] sm:%s5] %v271
    %v274 = vld [vmem:[#allocation1] sm:$0xff]
    %275 = vst [vmem:[#allocation0] sm:$0xff] %v274
    %s276 = scalar_lea.vmem [#allocation1], 8
    %v277 = vld [vmem:[%s276] sm:$0xff]
    %s278 = scalar_lea.vmem [#allocation0], 8
    %279 = vst [vmem:[%s278] sm:$0xff] %v277
    %s280 = scalar_lea.vmem [#allocation1], 16
    %v281 = vld [vmem:[%s280] sm:$0xff]
    %s282 = scalar_lea.vmem [#allocation0], 16
    %283 = vst [vmem:[%s282] sm:$0xff] %v281
    %s284 = scalar_lea.vmem [#allocation1], 24
    %v285 = vld [vmem:[%s284] sm:$0xff]
    %s286 = scalar_lea.vmem [#allocation0], 24
    %287 = vst [vmem:[%s286] sm:$0xff] %v285
    %s288 = scalar_lea.vmem [#allocation1], 32
    %v289 = vld [vmem:[%s288] sm:$0xff]
    %s290 = scalar_lea.vmem [#allocation0], 32
    %291 = vst [vmem:[%s290] sm:$0xff] %v289
    %s292 = scalar_lea.vmem [#allocation1], 40
    %v293 = vld [vmem:[%s292] sm:$0xff]
    %s294 = scalar_lea.vmem [#allocation0], 40
    %295 = vst [vmem:[%s294] sm:$0xff] %v293
    %s296 = scalar_lea.vmem [#allocation1], 48
    %v297 = vld [vmem:[%s296] sm:$0xff]
    %s298 = scalar_lea.vmem [#allocation0], 48
    %299 = vst [vmem:[%s298] sm:$0xff] %v297
    %s300 = scalar_lea.vmem [#allocation1], 56
    %v301 = vld [vmem:[%s300] sm:$0xff]
    %s302 = scalar_lea.vmem [#allocation0], 56
    %303 = vst [vmem:[%s302] sm:$0xff] %v301
    %s304 = scalar_lea.vmem [#allocation1], 64
    %v305 = vld [vmem:[%s304] sm:$0xff]
    %s306 = scalar_lea.vmem [#allocation0], 64
    %307 = vst [vmem:[%s306] ss:$8 sm:$0x3] %v305
    %s308 = scalar_lea.vmem [#allocation0], 71
    %309 = vst [vmem:[%s308] sm:$0xfc] %v305
    %s310 = scalar_lea.vmem [#allocation1], 72
    %v311 = vld [vmem:[%s310] sm:$0xff]
    %s312 = scalar_lea.vmem [#allocation0], 79
    %313 = vst [vmem:[%s312] sm:$0xff] %v311
    %s314 = scalar_lea.vmem [#allocation1], 80
    %v315 = vld [vmem:[%s314] sm:$0xff]
    %s316 = scalar_lea.vmem [#allocation0], 87
    %317 = vst [vmem:[%s316] sm:$0xff] %v315
    %s318 = scalar_lea.vmem [#allocation1], 88
    %v319 = vld [vmem:[%s318] sm:$0xff]
    %s320 = scalar_lea.vmem [#allocation0], 95
    %321 = vst [vmem:[%s320] sm:$0xff] %v319
    %s322 = scalar_lea.vmem [#allocation1], 96
    %v323 = vld [vmem:[%s322] sm:$0xff]
    %s324 = scalar_lea.vmem [#allocation0], 103
    %325 = vst [vmem:[%s324] sm:$0xff] %v323
    %s326 = scalar_lea.vmem [#allocation1], 104
    %v327 = vld [vmem:[%s326] sm:$0xff]
    %s328 = scalar_lea.vmem [#allocation0], 111
    %329 = vst [vmem:[%s328] sm:$0xff] %v327
    %s330 = scalar_lea.vmem [#allocation1], 112
    %v331 = vld [vmem:[%s330] sm:$0xff]
    %s332 = scalar_lea.vmem [#allocation0], 119
    %333 = vst [vmem:[%s332] sm:$0xff] %v331
    %s334 = scalar_lea.vmem [#allocation1], 120
    %v335 = vld [vmem:[%s334] sm:$0xff]
    %s336 = scalar_lea.vmem [#allocation0], 127
    %337 = vst [vmem:[%s336] sm:$0xff] %v335
    %s338 = scalar_lea.vmem [#allocation1], 128
    %v339 = vld [vmem:[%s338] sm:$0x3]
    %s340 = scalar_lea.vmem [#allocation0], 135
    %341 = vst [vmem:[%s340] sm:$0x3] %v339
    %s343 = smul.u32 4, 2
    %s344 = sshll.u32 1, %s343
    %s345 = ssub.s32 %s344, 1
    %s346 = sshrl.u32 %s343, 1
    %v347 = vld [vmem:[#allocation0] sm:%s345]
    %v348 = vpack.c.bf16 0.0, %v347
    %s349 = sshll.u32 1, %s346
    %s350 = ssub.s32 %s349, 1
    %351 = vst [vmem:[%s1] sm:%s350] %v348
    %s352 = scalar_lea.vmem [#allocation0], 8
    %v353 = vld [vmem:[%s352] sm:%s345]
    %v354 = vpack.c.bf16 0.0, %v353
    %s355 = sshll.u32 1, %s346
    %s356 = ssub.s32 %s355, 1
    %s357 = scalar_lea.vmem %s1, 4
    %358 = vst [vmem:[%s357] sm:%s356] %v354
    %s359 = scalar_lea.vmem [#allocation0], 16
    %v360 = vld [vmem:[%s359] sm:%s345]
    %v361 = vpack.c.bf16 0.0, %v360
    %s362 = sshll.u32 1, %s346
    %s363 = ssub.s32 %s362, 1
    %s364 = smul.addr 4, 2
    %s365 = scalar_lea.vmem %s1, %s364
    %366 = vst [vmem:[%s365] sm:%s363] %v361
    %s367 = scalar_lea.vmem [#allocation0], 24
    %v368 = vld [vmem:[%s367] sm:%s345]
    %v369 = vpack.c.bf16 0.0, %v368
    %s370 = sshll.u32 1, %s346
    %s371 = ssub.s32 %s370, 1
    %s372 = smul.addr 4, 3
    %s373 = scalar_lea.vmem %s1, %s372
    %374 = vst [vmem:[%s373] sm:%s371] %v369
    %s375 = scalar_lea.vmem [#allocation0], 32
    %v376 = vld [vmem:[%s375] sm:%s345]
    %v377 = vpack.c.bf16 0.0, %v376
    %s378 = sshll.u32 1, %s346
    %s379 = ssub.s32 %s378, 1
    %s380 = smul.addr 4, 4
    %s381 = scalar_lea.vmem %s1, %s380
    %382 = vst [vmem:[%s381] sm:%s379] %v377
    %s383 = scalar_lea.vmem [#allocation0], 40
    %v384 = vld [vmem:[%s383] sm:%s345]
    %v385 = vpack.c.bf16 0.0, %v384
    %s386 = sshll.u32 1, %s346
    %s387 = ssub.s32 %s386, 1
    %s388 = smul.addr 4, 5
    %s389 = scalar_lea.vmem %s1, %s388
    %390 = vst [vmem:[%s389] sm:%s387] %v385
    %s391 = scalar_lea.vmem [#allocation0], 48
    %v392 = vld [vmem:[%s391] sm:%s345]
    %v393 = vpack.c.bf16 0.0, %v392
    %s394 = sshll.u32 1, %s346
    %s395 = ssub.s32 %s394, 1
    %s396 = smul.addr 4, 6
    %s397 = scalar_lea.vmem %s1, %s396
    %398 = vst [vmem:[%s397] sm:%s395] %v393
    %s399 = scalar_lea.vmem [#allocation0], 56
    %v400 = vld [vmem:[%s399] sm:%s345]
    %v401 = vpack.c.bf16 0.0, %v400
    %s402 = sshll.u32 1, %s346
    %s403 = ssub.s32 %s402, 1
    %s404 = smul.addr 4, 7
    %s405 = scalar_lea.vmem %s1, %s404
    %406 = vst [vmem:[%s405] sm:%s403] %v401
    %s407 = scalar_lea.vmem [#allocation0], 64
    %v408 = vld [vmem:[%s407] sm:%s345]
    %v409 = vpack.c.bf16 0.0, %v408
    %s410 = sshll.u32 1, %s346
    %s411 = ssub.s32 %s410, 1
    %s412 = smul.addr 4, 8
    %s413 = scalar_lea.vmem %s1, %s412
    %414 = vst [vmem:[%s413] sm:%s411] %v409
    %s415 = scalar_lea.vmem [#allocation0], 72
    %v416 = vld [vmem:[%s415] sm:%s345]
    %v417 = vpack.c.bf16 0.0, %v416
    %s418 = sshll.u32 1, %s346
    %s419 = ssub.s32 %s418, 1
    %s420 = smul.addr 4, 9
    %s421 = scalar_lea.vmem %s1, %s420
    %422 = vst [vmem:[%s421] sm:%s419] %v417
    %s423 = scalar_lea.vmem [#allocation0], 80
    %v424 = vld [vmem:[%s423] sm:%s345]
    %v425 = vpack.c.bf16 0.0, %v424
    %s426 = sshll.u32 1, %s346
    %s427 = ssub.s32 %s426, 1
    %s428 = smul.addr 4, 10
    %s429 = scalar_lea.vmem %s1, %s428
    %430 = vst [vmem:[%s429] sm:%s427] %v425
    %s431 = scalar_lea.vmem [#allocation0], 88
    %v432 = vld [vmem:[%s431] sm:%s345]
    %v433 = vpack.c.bf16 0.0, %v432
    %s434 = sshll.u32 1, %s346
    %s435 = ssub.s32 %s434, 1
    %s436 = smul.addr 4, 11
    %s437 = scalar_lea.vmem %s1, %s436
    %438 = vst [vmem:[%s437] sm:%s435] %v433
    %s439 = scalar_lea.vmem [#allocation0], 96
    %v440 = vld [vmem:[%s439] sm:%s345]
    %v441 = vpack.c.bf16 0.0, %v440
    %s442 = sshll.u32 1, %s346
    %s443 = ssub.s32 %s442, 1
    %s444 = smul.addr 4, 12
    %s445 = scalar_lea.vmem %s1, %s444
    %446 = vst [vmem:[%s445] sm:%s443] %v441
    %s447 = scalar_lea.vmem [#allocation0], 104
    %v448 = vld [vmem:[%s447] sm:%s345]
    %v449 = vpack.c.bf16 0.0, %v448
    %s450 = sshll.u32 1, %s346
    %s451 = ssub.s32 %s450, 1
    %s452 = smul.addr 4, 13
    %s453 = scalar_lea.vmem %s1, %s452
    %454 = vst [vmem:[%s453] sm:%s451] %v449
    %s455 = scalar_lea.vmem [#allocation0], 112
    %v456 = vld [vmem:[%s455] sm:%s345]
    %v457 = vpack.c.bf16 0.0, %v456
    %s458 = sshll.u32 1, %s346
    %s459 = ssub.s32 %s458, 1
    %s460 = smul.addr 4, 14
    %s461 = scalar_lea.vmem %s1, %s460
    %462 = vst [vmem:[%s461] sm:%s459] %v457
    %s463 = scalar_lea.vmem [#allocation0], 120
    %v464 = vld [vmem:[%s463] sm:%s345]
    %v465 = vpack.c.bf16 0.0, %v464
    %s466 = sshll.u32 1, %s346
    %s467 = ssub.s32 %s466, 1
    %s468 = smul.addr 4, 15
    %s469 = scalar_lea.vmem %s1, %s468
    %470 = vst [vmem:[%s469] sm:%s467] %v465
    %s471 = scalar_lea.vmem [#allocation0], 128
    %v472 = vld [vmem:[%s471] sm:%s345]
    %v473 = vpack.c.bf16 0.0, %v472
    %s474 = sshll.u32 1, %s346
    %s475 = ssub.s32 %s474, 1
    %s476 = smul.addr 4, 16
    %s477 = scalar_lea.vmem %s1, %s476
    %478 = vst [vmem:[%s477] sm:%s475] %v473
    %s479 = scalar_lea.vmem [#allocation0], 136
    %v480 = vld [vmem:[%s479] sm:%s345]
    %v481 = vpack.c.bf16 0.0, %v480
    %s482 = sshll.u32 1, %s346
    %s483 = ssub.s32 %s482, 1
    %s484 = smul.addr 4, 17
    %s485 = scalar_lea.vmem %s1, %s484
    %486 = vst [vmem:[%s485] sm:%s483] %v481

// kernel: cvt_attention_forward.7
$region0: #{cvt_attention_forward.7}
  #allocation0 [shape = 'u32[]', space=smem, size = 0x4, offset = 0x4, fixed_abs, tag = 'smem constant byte address 0x4 - core index']
  #allocation1 [shape = 'u32[144,128]{1,0:T(1,128)}', space=vmem, size = 0x12000, scoped, tag = 'internal scratch']
  #allocation2 [shape = 'f32[144,128]{1,0:T(8,128)}', space=vmem, size = 0x12000, scoped, tag = 'scratch operand']
  %s0 = inlined_call_operand.vmem [shape: bf16[1,144,128], index: 0, kind: input, shape index: {}]
  %s1 = inlined_call_operand.vmem [shape: bf16[1,128,128], index: 1, kind: input, shape index: {}]
  %s2 = inlined_call_operand.vmem [shape: f32[1,1,128], index: 2, kind: input, shape index: {}]
  %s3 = inlined_call_operand.vmem [shape: bf16[1,144,128], index: 3, kind: output, shape index: {}]
  %s4 = sld [smem:[#allocation0]]
  $region30: #{cvt_attention_forward.7} parent=0
    _
  %s6 = ssub.s32 1, %s4
  %s7 = scalar_select 0, %s6, %s4
  // Predicated region
  $region2: #{cvt_attention_forward.7} parent=0 // pred_check
    _
  $region3: #{cvt_attention_forward.7} parent=0 // pred_check_branch
    %9 = sbr.rel (0) target = $region5
  $region4: #{cvt_attention_forward.7} parent=0 // pred_region
    _
  $region5: #{cvt_attention_forward.7} parent=0 // pred_fallthru
    _
  // Predicated region
  $region6: #{cvt_attention_forward.7} parent=0 // pred_check
    _
  $region7: #{cvt_attention_forward.7} parent=0 // pred_check_branch
    %11 = sbr.rel (0) target = $region9
  $region8: #{cvt_attention_forward.7} parent=0 // pred_region
    _
  $region9: #{cvt_attention_forward.7} parent=0 // pred_fallthru
    _
  // Predicated region
  $region10: #{cvt_attention_forward.7} parent=0 // pred_check
    _
  $region11: #{cvt_attention_forward.7} parent=0 // pred_check_branch
    %13 = sbr.rel (0) target = $region13
  $region12: #{cvt_attention_forward.7} parent=0 // pred_region
    _
  $region13: #{cvt_attention_forward.7} parent=0 // pred_fallthru
    _
  %p15 = scmp.eq.s32.totalorder 0, 0
  // Predicated region
  $region14: #{cvt_attention_forward.7} parent=0 // pred_check
    %p16 = pneg %p15
  $region15: #{cvt_attention_forward.7} parent=0 // pred_check_branch
    %18 = sbr.rel (%p16) target = $region17
  $region16: #{cvt_attention_forward.7} parent=0 // pred_region
    %19 = vst [vmem:[#allocation2] sm:$0xff] 0.0
    %20 = vst [vmem:[#allocation2 + $0x8] sm:$0xff] 0.0
    %21 = vst [vmem:[#allocation2 + $0x10] sm:$0xff] 0.0
    %22 = vst [vmem:[#allocation2 + $0x18] sm:$0xff] 0.0
    %23 = vst [vmem:[#allocation2 + $0x20] sm:$0xff] 0.0
    %24 = vst [vmem:[#allocation2 + $0x28] sm:$0xff] 0.0
    %25 = vst [vmem:[#allocation2 + $0x30] sm:$0xff] 0.0
    %26 = vst [vmem:[#allocation2 + $0x38] sm:$0xff] 0.0
    %27 = vst [vmem:[#allocation2 + $0x40] sm:$0xff] 0.0
    %28 = vst [vmem:[#allocation2 + $0x48] sm:$0xff] 0.0
    %29 = vst [vmem:[#allocation2 + $0x50] sm:$0xff] 0.0
    %30 = vst [vmem:[#allocation2 + $0x58] sm:$0xff] 0.0
    %31 = vst [vmem:[#allocation2 + $0x60] sm:$0xff] 0.0
    %32 = vst [vmem:[#allocation2 + $0x68] sm:$0xff] 0.0
    %33 = vst [vmem:[#allocation2 + $0x70] sm:$0xff] 0.0
    %34 = vst [vmem:[#allocation2 + $0x78] sm:$0xff] 0.0
    %35 = vst [vmem:[#allocation2 + $0x80] sm:$0xff] 0.0
    %36 = vst [vmem:[#allocation2 + $0x88] sm:$0xff] 0.0
  $region17: #{cvt_attention_forward.7} parent=0 // pred_fallthru
    _
  %v37 = vld [vmem:[#allocation2] sm:$0xff]
  %v38 = vld [vmem:[#allocation2 + $0x8] sm:$0xff]
  %v39 = vld [vmem:[#allocation2 + $0x10] sm:$0xff]
  %v40 = vld [vmem:[#allocation2 + $0x18] sm:$0xff]
  %v41 = vld [vmem:[#allocation2 + $0x20] sm:$0xff]
  %v42 = vld [vmem:[#allocation2 + $0x28] sm:$0xff]
  %v43 = vld [vmem:[#allocation2 + $0x30] sm:$0xff]
  %v44 = vld [vmem:[#allocation2 + $0x38] sm:$0xff]
  %v45 = vld [vmem:[#allocation2 + $0x40] sm:$0xff]
  %v46 = vld [vmem:[#allocation2 + $0x48] sm:$0xff]
  %v47 = vld [vmem:[#allocation2 + $0x50] sm:$0xff]
  %v48 = vld [vmem:[#allocation2 + $0x58] sm:$0xff]
  %v49 = vld [vmem:[#allocation2 + $0x60] sm:$0xff]
  %v50 = vld [vmem:[#allocation2 + $0x68] sm:$0xff]
  %v51 = vld [vmem:[#allocation2 + $0x70] sm:$0xff]
  %v52 = vld [vmem:[#allocation2 + $0x78] sm:$0xff]
  %v53 = vld [vmem:[#allocation2 + $0x80] sm:$0xff]
  %v54 = vld [vmem:[#allocation2 + $0x88] sm:$0xff]
  %v55 = vld [vmem:[%s0] sm:$0xf]
  %v56 = vld [vmem:[%s0 + $0x4] sm:$0xf]
  %v57 = vld [vmem:[%s0 + $0x8] sm:$0xf]
  %v58 = vld [vmem:[%s0 + $0xc] sm:$0xf]
  %v59 = vld [vmem:[%s0 + $0x10] sm:$0xf]
  %v60 = vld [vmem:[%s0 + $0x14] sm:$0xf]
  %v61 = vld [vmem:[%s0 + $0x18] sm:$0xf]
  %v62 = vld [vmem:[%s0 + $0x1c] sm:$0xf]
  %v63 = vld [vmem:[%s0 + $0x20] sm:$0xf]
  %v64 = vld [vmem:[%s0 + $0x24] sm:$0xf]
  %v65 = vld [vmem:[%s0 + $0x28] sm:$0xf]
  %v66 = vld [vmem:[%s0 + $0x2c] sm:$0xf]
  %v67 = vld [vmem:[%s0 + $0x30] sm:$0xf]
  %v68 = vld [vmem:[%s0 + $0x34] sm:$0xf]
  %v69 = vld [vmem:[%s0 + $0x38] sm:$0xf]
  %v70 = vld [vmem:[%s0 + $0x3c] sm:$0xf]
  %v71 = vld [vmem:[%s0 + $0x40] sm:$0xf]
  %v72 = vld [vmem:[%s0 + $0x44] sm:$0xf]
  %v73 = vld [vmem:[%s1] sm:$0xf]
  %v74 = vld [vmem:[%s1 + $0x4] sm:$0xf]
  %v75 = vld [vmem:[%s1 + $0x8] sm:$0xf]
  %v76 = vld [vmem:[%s1 + $0xc] sm:$0xf]
  %v77 = vld [vmem:[%s1 + $0x10] sm:$0xf]
  %v78 = vld [vmem:[%s1 + $0x14] sm:$0xf]
  %v79 = vld [vmem:[%s1 + $0x18] sm:$0xf]
  %v80 = vld [vmem:[%s1 + $0x1c] sm:$0xf]
  %v81 = vld [vmem:[%s1 + $0x20] sm:$0xf]
  %v82 = vld [vmem:[%s1 + $0x24] sm:$0xf]
  %v83 = vld [vmem:[%s1 + $0x28] sm:$0xf]
  %v84 = vld [vmem:[%s1 + $0x2c] sm:$0xf]
  %v85 = vld [vmem:[%s1 + $0x30] sm:$0xf]
  %v86 = vld [vmem:[%s1 + $0x34] sm:$0xf]
  %v87 = vld [vmem:[%s1 + $0x38] sm:$0xf]
  %v88 = vld [vmem:[%s1 + $0x3c] sm:$0xf]
  %v107 = vunpack.c.l.b16 %v55
  %v108 = vunpack.c.l.b16 %v56
  %v109 = vunpack.c.l.b16 %v57
  %v110 = vunpack.c.l.b16 %v58
  %v111 = vunpack.c.l.b16 %v59
  %v112 = vunpack.c.l.b16 %v60
  %v113 = vunpack.c.l.b16 %v61
  %v114 = vunpack.c.l.b16 %v62
  %v115 = vunpack.c.l.b16 %v63
  %v116 = vunpack.c.l.b16 %v64
  %v117 = vunpack.c.l.b16 %v65
  %v118 = vunpack.c.l.b16 %v66
  %v119 = vunpack.c.l.b16 %v67
  %v120 = vunpack.c.l.b16 %v68
  %v121 = vunpack.c.l.b16 %v69
  %v122 = vunpack.c.l.b16 %v70
  %v123 = vunpack.c.l.b16 %v71
  %v124 = vunpack.c.l.b16 %v72
  %v125 = vpack.c.b16 %v108, %v107
  %v126 = vpack.c.b16 %v110, %v109
  %v127 = vpack.c.b16 %v112, %v111
  %v128 = vpack.c.b16 %v114, %v113
  %v129 = vpack.c.b16 %v116, %v115
  %v130 = vpack.c.b16 %v118, %v117
  %v131 = vpack.c.b16 %v120, %v119
  %v132 = vpack.c.b16 %v122, %v121
  %v133 = vpack.c.b16 %v124, %v123
  %v159 = vunpack.c.l.b16 %v73
  %v160 = vunpack.c.l.b16 %v74
  %v161 = vunpack.c.l.b16 %v75
  %v162 = vunpack.c.l.b16 %v76
  %v163 = vunpack.c.l.b16 %v77
  %v164 = vunpack.c.l.b16 %v78
  %v165 = vunpack.c.l.b16 %v79
  %v166 = vunpack.c.l.b16 %v80
  %v167 = vunpack.c.l.b16 %v81
  %v168 = vunpack.c.l.b16 %v82
  %v169 = vunpack.c.l.b16 %v83
  %v170 = vunpack.c.l.b16 %v84
  %v171 = vunpack.c.l.b16 %v85
  %v172 = vunpack.c.l.b16 %v86
  %v173 = vunpack.c.l.b16 %v87
  %v174 = vunpack.c.l.b16 %v88
  %v175 = vpack.c.b16 %v160, %v159
  %v176 = vpack.c.b16 %v162, %v161
  %v177 = vpack.c.b16 %v164, %v163
  %v178 = vpack.c.b16 %v166, %v165
  %v179 = vpack.c.b16 %v168, %v167
  %v180 = vpack.c.b16 %v170, %v169
  %v181 = vpack.c.b16 %v172, %v171
  %v182 = vpack.c.b16 %v174, %v173
  %191 = vmatprep.subr.bf16.mxu0 0
  %192 = vmatpush1.bf16.msra.mxu0 %v182
  %193 = vmatprep.subr.bf16.mxu0 0
  %194 = vmatpush1.bf16.msra.mxu0 %v181
  %195 = vmatprep.subr.bf16.mxu0 0
  %196 = vmatpush1.bf16.msra.mxu0 %v180
  %197 = vmatprep.subr.bf16.mxu0 0
  %198 = vmatpush1.bf16.msra.mxu0 %v179
  %199 = vmatprep.subr.bf16.mxu0 0
  %200 = vmatpush1.bf16.msra.mxu0 %v178
  %201 = vmatprep.subr.bf16.mxu0 0
  %202 = vmatpush1.bf16.msra.mxu0 %v177
  %203 = vmatprep.subr.bf16.mxu0 0
  %204 = vmatpush1.bf16.msra.mxu0 %v176
  %205 = vmatprep.subr.bf16.mxu0 0
  %206 = vmatpush1.bf16.msra.mxu0 %v175
  %207 = vmatprep.subr.bf16.mxu0 0
  %208 = vmatpush2.bf16.msra.mxu0 0
  %209 = vmatprep.subr.bf16.mxu0 0
  %210 = vmatpush2.bf16.msra.mxu0 0
  %211 = vmatprep.subr.bf16.mxu0 0
  %212 = vmatpush2.bf16.msra.mxu0 0
  %213 = vmatprep.subr.bf16.mxu0 0
  %214 = vmatpush2.bf16.msra.mxu0 0
  %215 = vmatprep.subr.bf16.mxu0 0
  %216 = vmatpush2.bf16.msra.mxu0 0
  %217 = vmatprep.subr.bf16.mxu0 0
  %218 = vmatpush2.bf16.msra.mxu0 0
  %219 = vmatprep.subr.bf16.mxu0 0
  %220 = vmatpush2.bf16.msra.mxu0 0
  %221 = vmatprep.subr.bf16.mxu0 0
  %222 = vmatpush2.bf16.msra.mxu0 0
  %223 = vmatprep.mubr.bf16.mxu0 0
  %224 = vmatmul.mubr.bf16.gmra.mxu0 %v125
  %v225 = vpop.f32.mrf.mxu0
  %v226 = vadd.f32 0.0, %v225
  %v227 = vpop.f32.mrf.mxu0
  %v228 = vpop.f32.mrf.mxu0
  %v229 = vadd.f32 0.0, %v228
  %v230 = vpop.f32.mrf.mxu0
  %231 = vmatprep.mubr.bf16.mxu0 0
  %232 = vmatmul.mubr.bf16.gmra.mxu0 %v126
  %v233 = vpop.f32.mrf.mxu0
  %v234 = vadd.f32 0.0, %v233
  %v235 = vpop.f32.mrf.mxu0
  %v236 = vpop.f32.mrf.mxu0
  %v237 = vadd.f32 0.0, %v236
  %v238 = vpop.f32.mrf.mxu0
  %239 = vmatprep.mubr.bf16.mxu0 0
  %240 = vmatmul.mubr.bf16.gmra.mxu0 %v127
  %v241 = vpop.f32.mrf.mxu0
  %v242 = vadd.f32 0.0, %v241
  %v243 = vpop.f32.mrf.mxu0
  %v244 = vpop.f32.mrf.mxu0
  %v245 = vadd.f32 0.0, %v244
  %v246 = vpop.f32.mrf.mxu0
  %247 = vmatprep.mubr.bf16.mxu0 0
  %248 = vmatmul.mubr.bf16.gmra.mxu0 %v128
  %v249 = vpop.f32.mrf.mxu0
  %v250 = vadd.f32 0.0, %v249
  %v251 = vpop.f32.mrf.mxu0
  %v252 = vpop.f32.mrf.mxu0
  %v253 = vadd.f32 0.0, %v252
  %v254 = vpop.f32.mrf.mxu0
  %255 = vmatprep.mubr.bf16.mxu0 0
  %256 = vmatmul.mubr.bf16.gmra.mxu0 %v129
  %v257 = vpop.f32.mrf.mxu0
  %v258 = vadd.f32 0.0, %v257
  %v259 = vpop.f32.mrf.mxu0
  %v260 = vpop.f32.mrf.mxu0
  %v261 = vadd.f32 0.0, %v260
  %v262 = vpop.f32.mrf.mxu0
  %263 = vmatprep.mubr.bf16.mxu0 0
  %264 = vmatmul.mubr.bf16.gmra.mxu0 %v130
  %v265 = vpop.f32.mrf.mxu0
  %v266 = vadd.f32 0.0, %v265
  %v267 = vpop.f32.mrf.mxu0
  %v268 = vpop.f32.mrf.mxu0
  %v269 = vadd.f32 0.0, %v268
  %v270 = vpop.f32.mrf.mxu0
  %271 = vmatprep.mubr.bf16.mxu0 0
  %272 = vmatmul.mubr.bf16.gmra.mxu0 %v131
  %v273 = vpop.f32.mrf.mxu0
  %v274 = vadd.f32 0.0, %v273
  %v275 = vpop.f32.mrf.mxu0
  %v276 = vpop.f32.mrf.mxu0
  %v277 = vadd.f32 0.0, %v276
  %v278 = vpop.f32.mrf.mxu0
  %279 = vmatprep.mubr.bf16.mxu0 0
  %280 = vmatmul.mubr.bf16.gmra.mxu0 %v132
  %v281 = vpop.f32.mrf.mxu0
  %v282 = vadd.f32 0.0, %v281
  %v283 = vpop.f32.mrf.mxu0
  %v284 = vpop.f32.mrf.mxu0
  %v285 = vadd.f32 0.0, %v284
  %v286 = vpop.f32.mrf.mxu0
  %287 = vmatprep.mubr.bf16.mxu0 0
  %288 = vmatmul.mubr.bf16.gmra.mxu0 %v133
  %v289 = vpop.f32.mrf.mxu0
  %v290 = vadd.f32 0.0, %v289
  %v291 = vpop.f32.mrf.mxu0
  %v292 = vpop.f32.mrf.mxu0
  %v293 = vadd.f32 0.0, %v292
  %v294 = vpop.f32.mrf.mxu0
  %295 = vdwg.mxu0
  %v296 = vadd.f32 %v37, %v226
  %v297 = vadd.f32 %v38, %v229
  %v298 = vadd.f32 %v39, %v234
  %v299 = vadd.f32 %v40, %v237
  %v300 = vadd.f32 %v41, %v242
  %v301 = vadd.f32 %v42, %v245
  %v302 = vadd.f32 %v43, %v250
  %v303 = vadd.f32 %v44, %v253
  %v304 = vadd.f32 %v45, %v258
  %v305 = vadd.f32 %v46, %v261
  %v306 = vadd.f32 %v47, %v266
  %v307 = vadd.f32 %v48, %v269
  %v308 = vadd.f32 %v49, %v274
  %v309 = vadd.f32 %v50, %v277
  %v310 = vadd.f32 %v51, %v282
  %v311 = vadd.f32 %v52, %v285
  %v312 = vadd.f32 %v53, %v290
  %v313 = vadd.f32 %v54, %v293
  %314 = vst [vmem:[#allocation2] sm:$0xff] %v296
  %315 = vst [vmem:[#allocation2 + $0x8] sm:$0xff] %v297
  %316 = vst [vmem:[#allocation2 + $0x10] sm:$0xff] %v298
  %317 = vst [vmem:[#allocation2 + $0x18] sm:$0xff] %v299
  %318 = vst [vmem:[#allocation2 + $0x20] sm:$0xff] %v300
  %319 = vst [vmem:[#allocation2 + $0x28] sm:$0xff] %v301
  %320 = vst [vmem:[#allocation2 + $0x30] sm:$0xff] %v302
  %321 = vst [vmem:[#allocation2 + $0x38] sm:$0xff] %v303
  %322 = vst [vmem:[#allocation2 + $0x40] sm:$0xff] %v304
  %323 = vst [vmem:[#allocation2 + $0x48] sm:$0xff] %v305
  %324 = vst [vmem:[#allocation2 + $0x50] sm:$0xff] %v306
  %325 = vst [vmem:[#allocation2 + $0x58] sm:$0xff] %v307
  %326 = vst [vmem:[#allocation2 + $0x60] sm:$0xff] %v308
  %327 = vst [vmem:[#allocation2 + $0x68] sm:$0xff] %v309
  %328 = vst [vmem:[#allocation2 + $0x70] sm:$0xff] %v310
  %329 = vst [vmem:[#allocation2 + $0x78] sm:$0xff] %v311
  %330 = vst [vmem:[#allocation2 + $0x80] sm:$0xff] %v312
  %331 = vst [vmem:[#allocation2 + $0x88] sm:$0xff] %v313
  // Predicated region
  $region18: #{cvt_attention_forward.7} parent=0 // pred_check
    %p332 = pneg %p15
  $region19: #{cvt_attention_forward.7} parent=0 // pred_check_branch
    %334 = sbr.rel (%p332) target = $region21
  $region20: #{cvt_attention_forward.7} parent=0 // pred_region
    %v335 = vld [vmem:[#allocation2] sm:$0xff]
    %v336 = vld [vmem:[#allocation2 + $0x8] sm:$0xff]
    %v337 = vld [vmem:[#allocation2 + $0x10] sm:$0xff]
    %v338 = vld [vmem:[#allocation2 + $0x18] sm:$0xff]
    %v339 = vld [vmem:[#allocation2 + $0x20] sm:$0xff]
    %v340 = vld [vmem:[#allocation2 + $0x28] sm:$0xff]
    %v341 = vld [vmem:[#allocation2 + $0x30] sm:$0xff]
    %v342 = vld [vmem:[#allocation2 + $0x38] sm:$0xff]
    %v343 = vld [vmem:[#allocation2 + $0x40] sm:$0xff]
    %v344 = vld [vmem:[#allocation2 + $0x48] sm:$0xff]
    %v345 = vld [vmem:[#allocation2 + $0x50] sm:$0xff]
    %v346 = vld [vmem:[#allocation2 + $0x58] sm:$0xff]
    %v347 = vld [vmem:[#allocation2 + $0x60] sm:$0xff]
    %v348 = vld [vmem:[#allocation2 + $0x68] sm:$0xff]
    %v349 = vld [vmem:[#allocation2 + $0x70] sm:$0xff]
    %v350 = vld [vmem:[#allocation2 + $0x78] sm:$0xff]
    %v351 = vld [vmem:[#allocation2 + $0x80] sm:$0xff]
    %v352 = vld [vmem:[#allocation2 + $0x88] sm:$0xff]
    %v353 = vld [vmem:[%s2] sm:$0x1]
    %v355 = vlaneseq
    %v356 = vshrl.u32 %v355, 7
    %v357 = vsub.s32 0, %v356
    %v358 = vrot.slane %v353, %v357
    %v360 = vadd.f32 %v335, %v358
    %v361 = vadd.f32 %v336, %v358
    %v362 = vadd.f32 %v337, %v358
    %v363 = vadd.f32 %v338, %v358
    %v364 = vadd.f32 %v339, %v358
    %v365 = vadd.f32 %v340, %v358
    %v366 = vadd.f32 %v341, %v358
    %v367 = vadd.f32 %v342, %v358
    %v368 = vadd.f32 %v343, %v358
    %v369 = vadd.f32 %v344, %v358
    %v370 = vadd.f32 %v345, %v358
    %v371 = vadd.f32 %v346, %v358
    %v372 = vadd.f32 %v347, %v358
    %v373 = vadd.f32 %v348, %v358
    %v374 = vadd.f32 %v349, %v358
    %v375 = vadd.f32 %v350, %v358
    %v376 = vadd.f32 %v351, %v358
    %v377 = vadd.f32 %v352, %v358
    %v378 = vpack.c.bf16 %v361, %v360
    %v379 = vpack.c.bf16 %v363, %v362
    %v380 = vpack.c.bf16 %v365, %v364
    %v381 = vpack.c.bf16 %v367, %v366
    %v382 = vpack.c.bf16 %v369, %v368
    %v383 = vpack.c.bf16 %v371, %v370
    %v384 = vpack.c.bf16 %v373, %v372
    %v385 = vpack.c.bf16 %v375, %v374
    %v386 = vpack.c.bf16 %v377, %v376
    %v396 = vunpack.c.l.b16 %v378
    %v397 = vunpack.c.h.b16 %v378
    %v398 = vunpack.c.l.b16 %v379
    %v399 = vunpack.c.h.b16 %v379
    %v400 = vunpack.c.l.b16 %v380
    %v401 = vunpack.c.h.b16 %v380
    %v402 = vunpack.c.l.b16 %v381
    %v403 = vunpack.c.h.b16 %v381
    %v404 = vunpack.c.l.b16 %v382
    %v405 = vunpack.c.h.b16 %v382
    %v406 = vunpack.c.l.b16 %v383
    %v407 = vunpack.c.h.b16 %v383
    %v408 = vunpack.c.l.b16 %v384
    %v409 = vunpack.c.h.b16 %v384
    %v410 = vunpack.c.l.b16 %v385
    %v411 = vunpack.c.h.b16 %v385
    %v412 = vunpack.c.l.b16 %v386
    %v413 = vunpack.c.h.b16 %v386
    %v414 = vpack.c.b16 %v396, %v396
    %v415 = vpack.c.b16 %v397, %v397
    %v416 = vpack.c.b16 %v398, %v398
    %v417 = vpack.c.b16 %v399, %v399
    %v418 = vpack.c.b16 %v400, %v400
    %v419 = vpack.c.b16 %v401, %v401
    %v420 = vpack.c.b16 %v402, %v402
    %v421 = vpack.c.b16 %v403, %v403
    %v422 = vpack.c.b16 %v404, %v404
    %v423 = vpack.c.b16 %v405, %v405
    %v424 = vpack.c.b16 %v406, %v406
    %v425 = vpack.c.b16 %v407, %v407
    %v426 = vpack.c.b16 %v408, %v408
    %v427 = vpack.c.b16 %v409, %v409
    %v428 = vpack.c.b16 %v410, %v410
    %v429 = vpack.c.b16 %v411, %v411
    %v430 = vpack.c.b16 %v412, %v412
    %v431 = vpack.c.b16 %v413, %v413
    %450 = vst [vmem:[%s3] sm:$0xf] %v414
    %451 = vst [vmem:[%s3 + $0x4] sm:$0xf] %v415
    %452 = vst [vmem:[%s3 + $0x8] sm:$0xf] %v416
    %453 = vst [vmem:[%s3 + $0xc] sm:$0xf] %v417
    %454 = vst [vmem:[%s3 + $0x10] sm:$0xf] %v418
    %455 = vst [vmem:[%s3 + $0x14] sm:$0xf] %v419
    %456 = vst [vmem:[%s3 + $0x18] sm:$0xf] %v420
    %457 = vst [vmem:[%s3 + $0x1c] sm:$0xf] %v421
    %458 = vst [vmem:[%s3 + $0x20] sm:$0xf] %v422
    %459 = vst [vmem:[%s3 + $0x24] sm:$0xf] %v423
    %460 = vst [vmem:[%s3 + $0x28] sm:$0xf] %v424
    %461 = vst [vmem:[%s3 + $0x2c] sm:$0xf] %v425
    %462 = vst [vmem:[%s3 + $0x30] sm:$0xf] %v426
    %463 = vst [vmem:[%s3 + $0x34] sm:$0xf] %v427
    %464 = vst [vmem:[%s3 + $0x38] sm:$0xf] %v428
    %465 = vst [vmem:[%s3 + $0x3c] sm:$0xf] %v429
    %466 = vst [vmem:[%s3 + $0x40] sm:$0xf] %v430
    %467 = vst [vmem:[%s3 + $0x44] sm:$0xf] %v431
  $region21: #{cvt_attention_forward.7} parent=0 // pred_fallthru
    _
  // Predicated region
  $region22: #{cvt_attention_forward.7} parent=0 // pred_check
    _
  $region23: #{cvt_attention_forward.7} parent=0 // pred_check_branch
    %469 = sbr.rel (0) target = $region25
  $region24: #{cvt_attention_forward.7} parent=0 // pred_region
    _
  $region25: #{cvt_attention_forward.7} parent=0 // pred_fallthru
    _
  // Predicated region
  $region26: #{cvt_attention_forward.7} parent=0 // pred_check
    _
  $region27: #{cvt_attention_forward.7} parent=0 // pred_check_branch
    %471 = sbr.rel (0) target = $region29
  $region28: #{cvt_attention_forward.7} parent=0 // pred_region
    _
  $region29: #{cvt_attention_forward.7} parent=0 // pred_fallthru
    _

// kernel: cvt_attention_forward.5
$region0: #{cvt_attention_forward.5}
  #allocation0 [shape = 'u32[]', space=smem, size = 0x4, offset = 0x4, fixed_abs, tag = 'smem constant byte address 0x4 - core index']
  #allocation1 [shape = 'u32[144,128]{1,0:T(1,128)}', space=vmem, size = 0x12000, scoped, tag = 'internal scratch']
  %s0 = inlined_call_operand.vmem [shape: bf16[2,10,10,128], index: 0, kind: input, shape index: {}]
  %s1 = inlined_call_operand.vmem [shape: f32[9,1,1,128], index: 1, kind: input, shape index: {}]
  %s2 = inlined_call_operand.vmem [shape: f32[1,1,128], index: 2, kind: input, shape index: {}]
  %s3 = inlined_call_operand.vmem [shape: bf16[2,8,8,128], index: 3, kind: output, shape index: {}]
  %s4 = sld [smem:[#allocation0]]
  $region45: #{cvt_attention_forward.5} parent=0
    _
  %s6 = ssub.s32 1, %s4
  %s7 = scalar_select 0, %s6, %s4
  loop: start=0, step=1, limit=4
  $region2: #{cvt_attention_forward.5} parent=0 // loop_pre_header
    _
  $region3: #{cvt_attention_forward.5} parent=0 // loop_header
    %s9 = sphi 0, %s13
    %p10 = scmp.ge.s32.totalorder %s9, 4
    %s16 = sphi 0, %s28
    %s17 = sphi 0, %s24
    %s18 = sphi 0, %s16
    %s19 = sphi 0, %s17
    %s20 = sphi 0, %s18
    %s21 = sphi 0, %s19
    %s33 = sphi 0, %s35
    %s36 = sphi 0, %s33
    %s37 = sphi 0, %s36
    %s53 = sphi 0, %s37
    %s59 = sphi 0, %s61
    %s62 = sphi 0, %s59
    %s63 = sphi 0, %s62
    %s79 = sphi 0, %s63
    %s85 = sphi 0, %s87
    %s88 = sphi 0, %s85
    %s89 = sphi 0, %s88
    %s105 = sphi 0, %s89
    %s113 = sphi 0, %s115
    %s116 = sphi 0, %s113
    %s117 = sphi 0, %s116
    %s133 = sphi 0, %s117
  $region4: #{cvt_attention_forward.5} parent=0 // loop_header_branch
    %12 = sbr.rel (%p10) target = $region8
  $region5: #{cvt_attention_forward.5} parent=0 // loop_body
    %s14 = ssub.s32 %s9, 1
    %s15 = ssub.s32 %s9, 2
    %s22 = sadd.s32 1, %s17
    %p23 = scmp.ge.s32.totalorder %s22, 1
    %s24 = scalar_select %p23, 0, %s22
    %s25 = sadd.s32 1, %s16
    %s26 = scalar_select %p23, %s25, %s16
    %p27 = scmp.ge.s32.totalorder %s26, 2
    %s28 = scalar_select %p27, 0, %s26
    %s29 = ssub.s32 %s16, %s28
    %s30 = ssub.s32 %s17, %s24
    %s31 = sor.u32 %s29, %s30
    %p32 = scmp.eq.s32.totalorder %s31, 0
    %s34 = sadd.s32 %s33, 1
    %s35 = scalar_select %p32, %s33, %s34
    %p38 = pneg %p32
    %p39 = scmp.eq.s32.totalorder %s9, 1
    %p40 = por %p38, %p39
    %p41 = scmp.ne.s32.totalorder %s33, %s36
    %p42 = scmp.eq.s32.totalorder %s9, 0
    %p43 = por %p41, %p42
    %p44 = scmp.ne.s32.totalorder %s33, %s36
    %p45 = scmp.eq.s32.totalorder %s14, 1
    %p46 = por %p44, %p45
    %p47 = scmp.ne.s32.totalorder %s36, %s37
    %p48 = scmp.eq.s32.totalorder %s14, 0
    %p49 = por %p47, %p48
    %p50 = scmp.ne.s32.totalorder %s36, %s37
    %p51 = scmp.eq.s32.totalorder %s15, 1
    %p52 = por %p50, %p51
    %p54 = scmp.ne.s32.totalorder %s37, %s53
    %p55 = scmp.eq.s32.totalorder %s15, 0
    %p56 = por %p54, %p55
    %s57 = ssub.s32 %s17, %s24
    %p58 = scmp.eq.s32.totalorder %s57, 0
    %s60 = sadd.s32 %s59, 1
    %s61 = scalar_select %p58, %s59, %s60
    %p64 = pneg %p58
    %p65 = scmp.eq.s32.totalorder %s9, 1
    %p66 = por %p64, %p65
    %p67 = scmp.ne.s32.totalorder %s59, %s62
    %p68 = scmp.eq.s32.totalorder %s9, 0
    %p69 = por %p67, %p68
    %p70 = scmp.ne.s32.totalorder %s59, %s62
    %p71 = scmp.eq.s32.totalorder %s14, 1
    %p72 = por %p70, %p71
    %p73 = scmp.ne.s32.totalorder %s62, %s63
    %p74 = scmp.eq.s32.totalorder %s14, 0
    %p75 = por %p73, %p74
    %p76 = scmp.ne.s32.totalorder %s62, %s63
    %p77 = scmp.eq.s32.totalorder %s15, 1
    %p78 = por %p76, %p77
    %p80 = scmp.ne.s32.totalorder %s63, %s79
    %p81 = scmp.eq.s32.totalorder %s15, 0
    %p82 = por %p80, %p81
    %s83 = ssub.s32 %s17, %s24
    %p84 = scmp.eq.s32.totalorder %s83, 0
    %s86 = sadd.s32 %s85, 1
    %s87 = scalar_select %p84, %s85, %s86
    %p90 = pneg %p84
    %p91 = scmp.eq.s32.totalorder %s9, 1
    %p92 = por %p90, %p91
    %p93 = scmp.ne.s32.totalorder %s85, %s88
    %p94 = scmp.eq.s32.totalorder %s9, 0
    %p95 = por %p93, %p94
    %p96 = scmp.ne.s32.totalorder %s85, %s88
    %p97 = scmp.eq.s32.totalorder %s14, 1
    %p98 = por %p96, %p97
    %p99 = scmp.ne.s32.totalorder %s88, %s89
    %p100 = scmp.eq.s32.totalorder %s14, 0
    %p101 = por %p99, %p100
    %p102 = scmp.ne.s32.totalorder %s88, %s89
    %p103 = scmp.eq.s32.totalorder %s15, 1
    %p104 = por %p102, %p103
    %p106 = scmp.ne.s32.totalorder %s89, %s105
    %p107 = scmp.eq.s32.totalorder %s15, 0
    %p108 = por %p106, %p107
    %s109 = ssub.s32 %s16, %s28
    %s110 = ssub.s32 %s17, %s24
    %s111 = sor.u32 %s109, %s110
    %p112 = scmp.eq.s32.totalorder %s111, 0
    %s114 = sadd.s32 %s113, 1
    %s115 = scalar_select %p112, %s113, %s114
    %p118 = pneg %p112
    %p119 = scmp.eq.s32.totalorder %s9, 1
    %p120 = por %p118, %p119
    %p121 = scmp.ne.s32.totalorder %s113, %s116
    %p122 = scmp.eq.s32.totalorder %s9, 0
    %p123 = por %p121, %p122
    %p124 = scmp.ne.s32.totalorder %s113, %s116
    %p125 = scmp.eq.s32.totalorder %s14, 1
    %p126 = por %p124, %p125
    %p127 = scmp.ne.s32.totalorder %s116, %s117
    %p128 = scmp.eq.s32.totalorder %s14, 0
    %p129 = por %p127, %p128
    %p130 = scmp.ne.s32.totalorder %s116, %s117
    %p131 = scmp.eq.s32.totalorder %s15, 1
    %p132 = por %p130, %p131
    %p134 = scmp.ne.s32.totalorder %s117, %s133
    %p135 = scmp.eq.s32.totalorder %s15, 0
    %p136 = por %p134, %p135
    %p137 = scmp.le.s32.totalorder 1, %s9
    %p138 = scmp.lt.s32.totalorder %s9, 3
    %p139 = pnand %p137, %p138
    %p140 = pneg %p139
    // Predicated region
    $region9: #{cvt_attention_forward.5} parent=5 // pred_check
      _
    $region10: #{cvt_attention_forward.5} parent=5 // pred_check_branch
      %142 = sbr.rel (%p139) target = $region12
    $region11: #{cvt_attention_forward.5} parent=5 // pred_region
      %s143 = ssub.s32 %s9, 1
      // Predicated region
      $region13: #{cvt_attention_forward.5} parent=11 // pred_check
        %p144 = pneg %p75
      $region14: #{cvt_attention_forward.5} parent=11 // pred_check_branch
        %146 = sbr.rel (%p144) target = $region16
      $region15: #{cvt_attention_forward.5} parent=11 // pred_region
        %p147 = scmp.lt.s32.totalorder %s19, 0
        %s148 = scalar_select %p147, %s19, 0
        %s149 = scalar_lea.vmem %s1, %s148
      $region16: #{cvt_attention_forward.5} parent=11 // pred_fallthru
        _
      // Predicated region
      $region17: #{cvt_attention_forward.5} parent=11 // pred_check
        %p150 = pneg %p101
      $region18: #{cvt_attention_forward.5} parent=11 // pred_check_branch
        %152 = sbr.rel (%p150) target = $region20
      $region19: #{cvt_attention_forward.5} parent=11 // pred_region
        %p153 = scmp.lt.s32.totalorder %s19, 0
        %s154 = scalar_select %p153, %s19, 0
        %s155 = scalar_lea.vmem %s2, %s154
      $region20: #{cvt_attention_forward.5} parent=11 // pred_fallthru
        _
    $region12: #{cvt_attention_forward.5} parent=5 // pred_fallthru
      _
    %p156 = scmp.lt.s32.totalorder %s9, 2
    // Predicated region
    $region21: #{cvt_attention_forward.5} parent=5 // pred_check
      %p157 = pneg %p156
    $region22: #{cvt_attention_forward.5} parent=5 // pred_check_branch
      %159 = sbr.rel (%p157) target = $region24
    $region23: #{cvt_attention_forward.5} parent=5 // pred_region
      // Predicated region
      $region25: #{cvt_attention_forward.5} parent=23 // pred_check
        %p160 = pneg %p43
      $region26: #{cvt_attention_forward.5} parent=23 // pred_check_branch
        %162 = sbr.rel (%p160) target = $region28
      $region27: #{cvt_attention_forward.5} parent=23 // pred_region
        %p163 = scmp.lt.s32.totalorder %s16, 1
        %s164 = scalar_select %p163, %s16, 1
        %p165 = scmp.lt.s32.totalorder %s17, 0
        %s166 = scalar_select %p165, %s17, 0
        %s167 = smul.addr %s164, 20
        %s168 = sadd.s32 %s166, %s167
        %s169 = smul.addr %s168, 4
        %s170 = scalar_lea.vmem %s0, %s169
      $region28: #{cvt_attention_forward.5} parent=23 // pred_fallthru
        _
    $region24: #{cvt_attention_forward.5} parent=5 // pred_fallthru
      _
    %p171 = scmp.le.s32.totalorder 1, %s9
    %p172 = scmp.lt.s32.totalorder %s9, 3
    %p173 = pnand %p171, %p172
    %p174 = pneg %p173
    // Predicated region
    $region29: #{cvt_attention_forward.5} parent=5 // pred_check
      _
    $region30: #{cvt_attention_forward.5} parent=5 // pred_check_branch
      %176 = sbr.rel (%p173) target = $region32
    $region31: #{cvt_attention_forward.5} parent=5 // pred_region
      %s177 = ssub.s32 %s9, 1
      %p178 = scmp.lt.s32.totalorder %s18, 1
      %s179 = scalar_select %p178, %s18, 1
      %p180 = scmp.lt.s32.totalorder %s19, 0
      %s181 = scalar_select %p180, %s19, 0
      %s182 = smul.addr %s179, 20
      %s183 = sadd.s32 %s181, %s182
      %s184 = smul.addr %s183, 4
      %s185 = scalar_lea.vmem %s0, %s184
      %p186 = pneg %p49
      %p187 = pneg %p46
      %p188 = scmp.lt.s32.totalorder %s19, 0
      %s189 = scalar_select %p188, %s19, 0
      %s190 = scalar_lea.vmem %s1, %s189
      %p191 = pneg %p75
      %p192 = pneg %p72
      %p193 = scmp.lt.s32.totalorder %s19, 0
      %s194 = scalar_select %p193, %s19, 0
      %s195 = scalar_lea.vmem %s2, %s194
      %p196 = pneg %p101
      %p197 = pneg %p98
      %p198 = pneg %p129
      %p199 = pneg %p126
      %p200 = scmp.lt.s32.totalorder %s18, 1
      %s201 = scalar_select %p200, %s18, 1
      %p202 = scmp.lt.s32.totalorder %s19, 0
      %s203 = scalar_select %p202, %s19, 0
      %s204 = smul.addr %s201, 8
      %s205 = sadd.s32 %s203, %s204
      %s206 = smul.addr %s205, 4
      %s207 = scalar_lea.vmem %s3, %s206
      %p208 = scmp.lt.s32.totalorder %s18, 1
      %s209 = scalar_select %p208, %s18, 1
      %p210 = scmp.lt.s32.totalorder %s19, 0
      %s211 = scalar_select %p210, %s19, 0
      %s212 = smul.addr %s209, 20
      %s213 = sadd.s32 %s211, %s212
      %s214 = smul.addr %s213, 4
      %s215 = scalar_lea.vmem %s0, %s214
      %p216 = scmp.lt.s32.totalorder %s19, 0
      %s217 = scalar_select %p216, %s19, 0
      %s218 = scalar_lea.vmem %s1, %s217
      %p219 = scmp.lt.s32.totalorder %s19, 0
      %s220 = scalar_select %p219, %s19, 0
      %s221 = scalar_lea.vmem %s2, %s220
      %p222 = scmp.lt.s32.totalorder %s18, 1
      %s223 = scalar_select %p222, %s18, 1
      %p224 = scmp.lt.s32.totalorder %s19, 0
      %s225 = scalar_select %p224, %s19, 0
      %s226 = smul.addr %s223, 8
      %s227 = sadd.s32 %s225, %s226
      %s228 = smul.addr %s227, 4
      %s229 = scalar_lea.vmem %s3, %s228
      %v230 = vld [vmem:[%s215] sm:$0xf]
      %v231 = vld [vmem:[%s215 + $0x4] sm:$0x1]
      %v232 = vld [vmem:[%s215 + $0x8] sm:$0xf]
      %v233 = vld [vmem:[%s215 + $0xc] sm:$0x1]
      %v234 = vld [vmem:[%s215 + $0x10] sm:$0xf]
      %v235 = vld [vmem:[%s215 + $0x14] sm:$0x1]
      %v236 = vld [vmem:[%s215 + $0x18] sm:$0xf]
      %v237 = vld [vmem:[%s215 + $0x1c] sm:$0x1]
      %v238 = vld [vmem:[%s215 + $0x20] sm:$0xf]
      %v239 = vld [vmem:[%s215 + $0x24] sm:$0x1]
      %v240 = vld [vmem:[%s215 + $0x28] sm:$0xf]
      %v241 = vld [vmem:[%s215 + $0x2c] sm:$0x1]
      %v242 = vld [vmem:[%s215 + $0x30] sm:$0xf]
      %v243 = vld [vmem:[%s215 + $0x34] sm:$0x1]
      %v244 = vld [vmem:[%s215 + $0x38] sm:$0xf]
      %v245 = vld [vmem:[%s215 + $0x3c] sm:$0x1]
      %v246 = vld [vmem:[%s215 + $0x40] sm:$0xf]
      %v247 = vld [vmem:[%s215 + $0x44] sm:$0x1]
      %v248 = vld [vmem:[%s215 + $0x48] sm:$0xf]
      %v249 = vld [vmem:[%s215 + $0x4c] sm:$0x1]
      %v250 = vunpack.c.l.bf16 %v230
      %v251 = vunpack.c.l.bf16 %v232
      %v252 = vunpack.c.l.bf16 %v234
      %v253 = vunpack.c.l.bf16 %v236
      %v254 = vunpack.c.l.bf16 %v238
      %v255 = vunpack.c.l.bf16 %v240
      %v256 = vunpack.c.l.bf16 %v242
      %v257 = vunpack.c.l.bf16 %v244
      %v258 = vld [vmem:[%s218] sm:$0x1]
      %v260 = vlaneseq
      %v261 = vshrl.u32 %v260, 7
      %v262 = vsub.s32 0, %v261
      %v263 = vrot.slane %v258, %v262
      %v265 = vmul.f32 %v250, %v263
      %v266 = vmul.f32 %v251, %v263
      %v267 = vmul.f32 %v252, %v263
      %v268 = vmul.f32 %v253, %v263
      %v269 = vmul.f32 %v254, %v263
      %v270 = vmul.f32 %v255, %v263
      %v271 = vmul.f32 %v256, %v263
      %v272 = vmul.f32 %v257, %v263
      %v273 = vunpack.c.l.bf16 %v231
      %v274 = vunpack.c.l.bf16 %v233
      %v275 = vunpack.c.l.bf16 %v235
      %v276 = vunpack.c.l.bf16 %v237
      %v277 = vunpack.c.l.bf16 %v239
      %v278 = vunpack.c.l.bf16 %v241
      %v279 = vunpack.c.l.bf16 %v243
      %v280 = vunpack.c.l.bf16 %v245
      %s281 = scalar_lea.vmem %s218, 1
      %v282 = vld [vmem:[%s281] sm:$0x1]
      %v284 = vlaneseq
      %v285 = vshrl.u32 %v284, 7
      %v286 = vsub.s32 0, %v285
      %v287 = vrot.slane %v282, %v286
      %v289 = vmul.f32 %v250, %v287
      %v290 = vmul.f32 %v273, %v287
      %v291 = vmul.f32 %v251, %v287
      %v292 = vmul.f32 %v274, %v287
      %v293 = vmul.f32 %v252, %v287
      %v294 = vmul.f32 %v275, %v287
      %v295 = vmul.f32 %v253, %v287
      %v296 = vmul.f32 %v276, %v287
      %v297 = vmul.f32 %v254, %v287
      %v298 = vmul.f32 %v277, %v287
      %v299 = vmul.f32 %v255, %v287
      %v300 = vmul.f32 %v278, %v287
      %v301 = vmul.f32 %v256, %v287
      %v302 = vmul.f32 %v279, %v287
      %v303 = vmul.f32 %v257, %v287
      %v304 = vmul.f32 %v280, %v287
      %vm321 = vcmask 1046528
      %v322 = vrot.slane %v289, 1
      %v323 = vrot.slane %v290, 1
      %v324 = vsel %vm321, %v322, %v323
      %v325 = vrot.slane %v291, 1
      %v326 = vrot.slane %v292, 1
      %v327 = vsel %vm321, %v325, %v326
      %v328 = vrot.slane %v293, 1
      %v329 = vrot.slane %v294, 1
      %v330 = vsel %vm321, %v328, %v329
      %v331 = vrot.slane %v295, 1
      %v332 = vrot.slane %v296, 1
      %v333 = vsel %vm321, %v331, %v332
      %v334 = vrot.slane %v297, 1
      %v335 = vrot.slane %v298, 1
      %v336 = vsel %vm321, %v334, %v335
      %v337 = vrot.slane %v299, 1
      %v338 = vrot.slane %v300, 1
      %v339 = vsel %vm321, %v337, %v338
      %v340 = vrot.slane %v301, 1
      %v341 = vrot.slane %v302, 1
      %v342 = vsel %vm321, %v340, %v341
      %v343 = vrot.slane %v303, 1
      %v344 = vrot.slane %v304, 1
      %v345 = vsel %vm321, %v343, %v344
      %v354 = vadd.f32 %v265, %v324
      %v355 = vadd.f32 %v266, %v327
      %v356 = vadd.f32 %v267, %v330
      %v357 = vadd.f32 %v268, %v333
      %v358 = vadd.f32 %v269, %v336
      %v359 = vadd.f32 %v270, %v339
      %v360 = vadd.f32 %v271, %v342
      %v361 = vadd.f32 %v272, %v345
      %s362 = scalar_lea.vmem %s218, 2
      %v363 = vld [vmem:[%s362] sm:$0x1]
      %v365 = vlaneseq
      %v366 = vshrl.u32 %v365, 7
      %v367 = vsub.s32 0, %v366
      %v368 = vrot.slane %v363, %v367
      %v370 = vmul.f32 %v250, %v368
      %v371 = vmul.f32 %v273, %v368
      %v372 = vmul.f32 %v251, %v368
      %v373 = vmul.f32 %v274, %v368
      %v374 = vmul.f32 %v252, %v368
      %v375 = vmul.f32 %v275, %v368
      %v376 = vmul.f32 %v253, %v368
      %v377 = vmul.f32 %v276, %v368
      %v378 = vmul.f32 %v254, %v368
      %v379 = vmul.f32 %v277, %v368
      %v380 = vmul.f32 %v255, %v368
      %v381 = vmul.f32 %v278, %v368
      %v382 = vmul.f32 %v256, %v368
      %v383 = vmul.f32 %v279, %v368
      %v384 = vmul.f32 %v257, %v368
      %v385 = vmul.f32 %v280, %v368
      %vm402 = vcmask 1045504
      %v403 = vrot.slane %v370, 2
      %v404 = vrot.slane %v371, 2
      %v405 = vsel %vm402, %v403, %v404
      %v406 = vrot.slane %v372, 2
      %v407 = vrot.slane %v373, 2
      %v408 = vsel %vm402, %v406, %v407
      %v409 = vrot.slane %v374, 2
      %v410 = vrot.slane %v375, 2
      %v411 = vsel %vm402, %v409, %v410
      %v412 = vrot.slane %v376, 2
      %v413 = vrot.slane %v377, 2
      %v414 = vsel %vm402, %v412, %v413
      %v415 = vrot.slane %v378, 2
      %v416 = vrot.slane %v379, 2
      %v417 = vsel %vm402, %v415, %v416
      %v418 = vrot.slane %v380, 2
      %v419 = vrot.slane %v381, 2
      %v420 = vsel %vm402, %v418, %v419
      %v421 = vrot.slane %v382, 2
      %v422 = vrot.slane %v383, 2
      %v423 = vsel %vm402, %v421, %v422
      %v424 = vrot.slane %v384, 2
      %v425 = vrot.slane %v385, 2
      %v426 = vsel %vm402, %v424, %v425
      %v435 = vadd.f32 %v354, %v405
      %v436 = vadd.f32 %v355, %v408
      %v437 = vadd.f32 %v356, %v411
      %v438 = vadd.f32 %v357, %v414
      %v439 = vadd.f32 %v358, %v417
      %v440 = vadd.f32 %v359, %v420
      %v441 = vadd.f32 %v360, %v423
      %v442 = vadd.f32 %v361, %v426
      %v443 = vunpack.c.l.bf16 %v246
      %s444 = scalar_lea.vmem %s218, 3
      %v445 = vld [vmem:[%s444] sm:$0x1]
      %v447 = vlaneseq
      %v448 = vshrl.u32 %v447, 7
      %v449 = vsub.s32 0, %v448
      %v450 = vrot.slane %v445, %v449
      %v452 = vmul.f32 %v251, %v450
      %v453 = vmul.f32 %v252, %v450
      %v454 = vmul.f32 %v253, %v450
      %v455 = vmul.f32 %v254, %v450
      %v456 = vmul.f32 %v255, %v450
      %v457 = vmul.f32 %v256, %v450
      %v458 = vmul.f32 %v257, %v450
      %v459 = vmul.f32 %v443, %v450
      %v460 = vadd.f32 %v435, %v452
      %v461 = vadd.f32 %v436, %v453
      %v462 = vadd.f32 %v437, %v454
      %v463 = vadd.f32 %v438, %v455
      %v464 = vadd.f32 %v439, %v456
      %v465 = vadd.f32 %v440, %v457
      %v466 = vadd.f32 %v441, %v458
      %v467 = vadd.f32 %v442, %v459
      %v468 = vunpack.c.l.bf16 %v247
      %s469 = scalar_lea.vmem %s218, 4
      %v470 = vld [vmem:[%s469] sm:$0x1]
      %v472 = vlaneseq
      %v473 = vshrl.u32 %v472, 7
      %v474 = vsub.s32 0, %v473
      %v475 = vrot.slane %v470, %v474
      %v477 = vmul.f32 %v251, %v475
      %v478 = vmul.f32 %v274, %v475
      %v479 = vmul.f32 %v252, %v475
      %v480 = vmul.f32 %v275, %v475
      %v481 = vmul.f32 %v253, %v475
      %v482 = vmul.f32 %v276, %v475
      %v483 = vmul.f32 %v254, %v475
      %v484 = vmul.f32 %v277, %v475
      %v485 = vmul.f32 %v255, %v475
      %v486 = vmul.f32 %v278, %v475
      %v487 = vmul.f32 %v256, %v475
      %v488 = vmul.f32 %v279, %v475
      %v489 = vmul.f32 %v257, %v475
      %v490 = vmul.f32 %v280, %v475
      %v491 = vmul.f32 %v443, %v475
      %v492 = vmul.f32 %v468, %v475
      %v509 = vrot.slane %v477, 1
      %v510 = vrot.slane %v478, 1
      %v511 = vsel %vm321, %v509, %v510
      %v512 = vrot.slane %v479, 1
      %v513 = vrot.slane %v480, 1
      %v514 = vsel %vm321, %v512, %v513
      %v515 = vrot.slane %v481, 1
      %v516 = vrot.slane %v482, 1
      %v517 = vsel %vm321, %v515, %v516
      %v518 = vrot.slane %v483, 1
      %v519 = vrot.slane %v484, 1
      %v520 = vsel %vm321, %v518, %v519
      %v521 = vrot.slane %v485, 1
      %v522 = vrot.slane %v486, 1
      %v523 = vsel %vm321, %v521, %v522
      %v524 = vrot.slane %v487, 1
      %v525 = vrot.slane %v488, 1
      %v526 = vsel %vm321, %v524, %v525
      %v527 = vrot.slane %v489, 1
      %v528 = vrot.slane %v490, 1
      %v529 = vsel %vm321, %v527, %v528
      %v530 = vrot.slane %v491, 1
      %v531 = vrot.slane %v492, 1
      %v532 = vsel %vm321, %v530, %v531
      %v541 = vadd.f32 %v460, %v511
      %v542 = vadd.f32 %v461, %v514
      %v543 = vadd.f32 %v462, %v517
      %v544 = vadd.f32 %v463, %v520
      %v545 = vadd.f32 %v464, %v523
      %v546 = vadd.f32 %v465, %v526
      %v547 = vadd.f32 %v466, %v529
      %v548 = vadd.f32 %v467, %v532
      %s549 = scalar_lea.vmem %s218, 5
      %v550 = vld [vmem:[%s549] sm:$0x1]
      %v552 = vlaneseq
      %v553 = vshrl.u32 %v552, 7
      %v554 = vsub.s32 0, %v553
      %v555 = vrot.slane %v550, %v554
      %v557 = vmul.f32 %v251, %v555
      %v558 = vmul.f32 %v274, %v555
      %v559 = vmul.f32 %v252, %v555
      %v560 = vmul.f32 %v275, %v555
      %v561 = vmul.f32 %v253, %v555
      %v562 = vmul.f32 %v276, %v555
      %v563 = vmul.f32 %v254, %v555
      %v564 = vmul.f32 %v277, %v555
      %v565 = vmul.f32 %v255, %v555
      %v566 = vmul.f32 %v278, %v555
      %v567 = vmul.f32 %v256, %v555
      %v568 = vmul.f32 %v279, %v555
      %v569 = vmul.f32 %v257, %v555
      %v570 = vmul.f32 %v280, %v555
      %v571 = vmul.f32 %v443, %v555
      %v572 = vmul.f32 %v468, %v555
      %v589 = vrot.slane %v557, 2
      %v590 = vrot.slane %v558, 2
      %v591 = vsel %vm402, %v589, %v590
      %v592 = vrot.slane %v559, 2
      %v593 = vrot.slane %v560, 2
      %v594 = vsel %vm402, %v592, %v593
      %v595 = vrot.slane %v561, 2
      %v596 = vrot.slane %v562, 2
      %v597 = vsel %vm402, %v595, %v596
      %v598 = vrot.slane %v563, 2
      %v599 = vrot.slane %v564, 2
      %v600 = vsel %vm402, %v598, %v599
      %v601 = vrot.slane %v565, 2
      %v602 = vrot.slane %v566, 2
      %v603 = vsel %vm402, %v601, %v602
      %v604 = vrot.slane %v567, 2
      %v605 = vrot.slane %v568, 2
      %v606 = vsel %vm402, %v604, %v605
      %v607 = vrot.slane %v569, 2
      %v608 = vrot.slane %v570, 2
      %v609 = vsel %vm402, %v607, %v608
      %v610 = vrot.slane %v571, 2
      %v611 = vrot.slane %v572, 2
      %v612 = vsel %vm402, %v610, %v611
      %v621 = vadd.f32 %v541, %v591
      %v622 = vadd.f32 %v542, %v594
      %v623 = vadd.f32 %v543, %v597
      %v624 = vadd.f32 %v544, %v600
      %v625 = vadd.f32 %v545, %v603
      %v626 = vadd.f32 %v546, %v606
      %v627 = vadd.f32 %v547, %v609
      %v628 = vadd.f32 %v548, %v612
      %v629 = vunpack.c.l.bf16 %v248
      %s630 = scalar_lea.vmem %s218, 6
      %v631 = vld [vmem:[%s630] sm:$0x1]
      %v633 = vlaneseq
      %v634 = vshrl.u32 %v633, 7
      %v635 = vsub.s32 0, %v634
      %v636 = vrot.slane %v631, %v635
      %v638 = vmul.f32 %v252, %v636
      %v639 = vmul.f32 %v253, %v636
      %v640 = vmul.f32 %v254, %v636
      %v641 = vmul.f32 %v255, %v636
      %v642 = vmul.f32 %v256, %v636
      %v643 = vmul.f32 %v257, %v636
      %v644 = vmul.f32 %v443, %v636
      %v645 = vmul.f32 %v629, %v636
      %v646 = vadd.f32 %v621, %v638
      %v647 = vadd.f32 %v622, %v639
      %v648 = vadd.f32 %v623, %v640
      %v649 = vadd.f32 %v624, %v641
      %v650 = vadd.f32 %v625, %v642
      %v651 = vadd.f32 %v626, %v643
      %v652 = vadd.f32 %v627, %v644
      %v653 = vadd.f32 %v628, %v645
      %v654 = vunpack.c.l.bf16 %v249
      %s655 = scalar_lea.vmem %s218, 7
      %v656 = vld [vmem:[%s655] sm:$0x1]
      %v658 = vlaneseq
      %v659 = vshrl.u32 %v658, 7
      %v660 = vsub.s32 0, %v659
      %v661 = vrot.slane %v656, %v660
      %v663 = vmul.f32 %v252, %v661
      %v664 = vmul.f32 %v275, %v661
      %v665 = vmul.f32 %v253, %v661
      %v666 = vmul.f32 %v276, %v661
      %v667 = vmul.f32 %v254, %v661
      %v668 = vmul.f32 %v277, %v661
      %v669 = vmul.f32 %v255, %v661
      %v670 = vmul.f32 %v278, %v661
      %v671 = vmul.f32 %v256, %v661
      %v672 = vmul.f32 %v279, %v661
      %v673 = vmul.f32 %v257, %v661
      %v674 = vmul.f32 %v280, %v661
      %v675 = vmul.f32 %v443, %v661
      %v676 = vmul.f32 %v468, %v661
      %v677 = vmul.f32 %v629, %v661
      %v678 = vmul.f32 %v654, %v661
      %v695 = vrot.slane %v663, 1
      %v696 = vrot.slane %v664, 1
      %v697 = vsel %vm321, %v695, %v696
      %v698 = vrot.slane %v665, 1
      %v699 = vrot.slane %v666, 1
      %v700 = vsel %vm321, %v698, %v699
      %v701 = vrot.slane %v667, 1
      %v702 = vrot.slane %v668, 1
      %v703 = vsel %vm321, %v701, %v702
      %v704 = vrot.slane %v669, 1
      %v705 = vrot.slane %v670, 1
      %v706 = vsel %vm321, %v704, %v705
      %v707 = vrot.slane %v671, 1
      %v708 = vrot.slane %v672, 1
      %v709 = vsel %vm321, %v707, %v708
      %v710 = vrot.slane %v673, 1
      %v711 = vrot.slane %v674, 1
      %v712 = vsel %vm321, %v710, %v711
      %v713 = vrot.slane %v675, 1
      %v714 = vrot.slane %v676, 1
      %v715 = vsel %vm321, %v713, %v714
      %v716 = vrot.slane %v677, 1
      %v717 = vrot.slane %v678, 1
      %v718 = vsel %vm321, %v716, %v717
      %v727 = vadd.f32 %v646, %v697
      %v728 = vadd.f32 %v647, %v700
      %v729 = vadd.f32 %v648, %v703
      %v730 = vadd.f32 %v649, %v706
      %v731 = vadd.f32 %v650, %v709
      %v732 = vadd.f32 %v651, %v712
      %v733 = vadd.f32 %v652, %v715
      %v734 = vadd.f32 %v653, %v718
      %s735 = scalar_lea.vmem %s218, 8
      %v736 = vld [vmem:[%s735] sm:$0x1]
      %v738 = vlaneseq
      %v739 = vshrl.u32 %v738, 7
      %v740 = vsub.s32 0, %v739
      %v741 = vrot.slane %v736, %v740
      %v743 = vmul.f32 %v252, %v741
      %v744 = vmul.f32 %v275, %v741
      %v745 = vmul.f32 %v253, %v741
      %v746 = vmul.f32 %v276, %v741
      %v747 = vmul.f32 %v254, %v741
      %v748 = vmul.f32 %v277, %v741
      %v749 = vmul.f32 %v255, %v741
      %v750 = vmul.f32 %v278, %v741
      %v751 = vmul.f32 %v256, %v741
      %v752 = vmul.f32 %v279, %v741
      %v753 = vmul.f32 %v257, %v741
      %v754 = vmul.f32 %v280, %v741
      %v755 = vmul.f32 %v443, %v741
      %v756 = vmul.f32 %v468, %v741
      %v757 = vmul.f32 %v629, %v741
      %v758 = vmul.f32 %v654, %v741
      %v775 = vrot.slane %v743, 2
      %v776 = vrot.slane %v744, 2
      %v777 = vsel %vm402, %v775, %v776
      %v778 = vrot.slane %v745, 2
      %v779 = vrot.slane %v746, 2
      %v780 = vsel %vm402, %v778, %v779
      %v781 = vrot.slane %v747, 2
      %v782 = vrot.slane %v748, 2
      %v783 = vsel %vm402, %v781, %v782
      %v784 = vrot.slane %v749, 2
      %v785 = vrot.slane %v750, 2
      %v786 = vsel %vm402, %v784, %v785
      %v787 = vrot.slane %v751, 2
      %v788 = vrot.slane %v752, 2
      %v789 = vsel %vm402, %v787, %v788
      %v790 = vrot.slane %v753, 2
      %v791 = vrot.slane %v754, 2
      %v792 = vsel %vm402, %v790, %v791
      %v793 = vrot.slane %v755, 2
      %v794 = vrot.slane %v756, 2
      %v795 = vsel %vm402, %v793, %v794
      %v796 = vrot.slane %v757, 2
      %v797 = vrot.slane %v758, 2
      %v798 = vsel %vm402, %v796, %v797
      %v807 = vadd.f32 %v727, %v777
      %v808 = vadd.f32 %v728, %v780
      %v809 = vadd.f32 %v729, %v783
      %v810 = vadd.f32 %v730, %v786
      %v811 = vadd.f32 %v731, %v789
      %v812 = vadd.f32 %v732, %v792
      %v813 = vadd.f32 %v733, %v795
      %v814 = vadd.f32 %v734, %v798
      %v815 = vld [vmem:[%s221] sm:$0x1]
      %v817 = vlaneseq
      %v818 = vshrl.u32 %v817, 7
      %v819 = vsub.s32 0, %v818
      %v820 = vrot.slane %v815, %v819
      %v822 = vadd.f32 %v807, %v820
      %v823 = vadd.f32 %v808, %v820
      %v824 = vadd.f32 %v809, %v820
      %v825 = vadd.f32 %v810, %v820
      %v826 = vadd.f32 %v811, %v820
      %v827 = vadd.f32 %v812, %v820
      %v828 = vadd.f32 %v813, %v820
      %v829 = vadd.f32 %v814, %v820
      %v830 = vpack.c.bf16 %v822, %v822
      %v831 = vpack.c.bf16 %v823, %v823
      %v832 = vpack.c.bf16 %v824, %v824
      %v833 = vpack.c.bf16 %v825, %v825
      %v834 = vpack.c.bf16 %v826, %v826
      %v835 = vpack.c.bf16 %v827, %v827
      %v836 = vpack.c.bf16 %v828, %v828
      %v837 = vpack.c.bf16 %v829, %v829
      %838 = vst [vmem:[%s229] sm:$0xf] %v830
      %839 = vst [vmem:[%s229 + $0x4] sm:$0xf] %v831
      %840 = vst [vmem:[%s229 + $0x8] sm:$0xf] %v832
      %841 = vst [vmem:[%s229 + $0xc] sm:$0xf] %v833
      %842 = vst [vmem:[%s229 + $0x10] sm:$0xf] %v834
      %843 = vst [vmem:[%s229 + $0x14] sm:$0xf] %v835
      %844 = vst [vmem:[%s229 + $0x18] sm:$0xf] %v836
      %845 = vst [vmem:[%s229 + $0x1c] sm:$0xf] %v837
      %p846 = scmp.lt.s32.totalorder %s18, 1
      %s847 = scalar_select %p846, %s18, 1
      %p848 = scmp.lt.s32.totalorder %s19, 0
      %s849 = scalar_select %p848, %s19, 0
      %s850 = smul.addr %s847, 8
      %s851 = sadd.s32 %s849, %s850
      %s852 = smul.addr %s851, 4
      %s853 = scalar_lea.vmem %s3, %s852
      // Predicated region
      $region33: #{cvt_attention_forward.5} parent=31 // pred_check
        %p854 = pneg %p126
      $region34: #{cvt_attention_forward.5} parent=31 // pred_check_branch
        %856 = sbr.rel (%p854) target = $region36
      $region35: #{cvt_attention_forward.5} parent=31 // pred_region
        _
      $region36: #{cvt_attention_forward.5} parent=31 // pred_fallthru
        _
    $region32: #{cvt_attention_forward.5} parent=5 // pred_fallthru
      _
    %p857 = scmp.le.s32.totalorder 2, %s9
    // Predicated region
    $region37: #{cvt_attention_forward.5} parent=5 // pred_check
      %p858 = pneg %p857
    $region38: #{cvt_attention_forward.5} parent=5 // pred_check_branch
      %860 = sbr.rel (%p858) target = $region40
    $region39: #{cvt_attention_forward.5} parent=5 // pred_region
      %s861 = ssub.s32 %s9, 2
      // Predicated region
      $region41: #{cvt_attention_forward.5} parent=39 // pred_check
        %p862 = pneg %p132
      $region42: #{cvt_attention_forward.5} parent=39 // pred_check_branch
        %864 = sbr.rel (%p862) target = $region44
      $region43: #{cvt_attention_forward.5} parent=39 // pred_region
        %p865 = scmp.lt.s32.totalorder %s20, 1
        %s866 = scalar_select %p865, %s20, 1
        %p867 = scmp.lt.s32.totalorder %s21, 0
        %s868 = scalar_select %p867, %s21, 0
        %s869 = smul.addr %s866, 8
        %s870 = sadd.s32 %s868, %s869
        %s871 = smul.addr %s870, 4
        %s872 = scalar_lea.vmem %s3, %s871
      $region44: #{cvt_attention_forward.5} parent=39 // pred_fallthru
        _
    $region40: #{cvt_attention_forward.5} parent=5 // pred_fallthru
      _
  $region6: #{cvt_attention_forward.5} parent=0 // loop_footer
    %s13 = sadd.s32 1, %s9
  $region7: #{cvt_attention_forward.5} parent=0 // loop_footer_branch
    %8 = sbr.rel target = $region3
  $region8: #{cvt_attention_forward.5} parent=0 // loop_exit
    _

// kernel: squeeze.10
$region0: #{squeeze.10}
  %s0 = inlined_call_operand.vmem [shape: bf16[1,34,128], index: 0, kind: input, shape index: {}]
  %s1 = inlined_call_operand.vmem [shape: bf16[2,17,128], index: 1, kind: output, shape index: {}]
  $region1: #{squeeze.10} parent=0
    #allocation0 [shape = 'u8[24576]{0}', space=vmem, size = 0x6000, scoped, tag = 'scoped mem for output reshape']
    #allocation1 [shape = 'u8[20480]{0}', space=vmem, size = 0x5000, scoped, tag = 'scoped mem for input reshape']
    %s3 = smul.u32 4, 2
    %s4 = sshll.u32 1, %s3
    %s5 = ssub.s32 %s4, 1
    %s6 = smul.addr 4, 4
    %s7 = scalar_lea.vmem %s0, %s6
    %s8 = sshrl.u32 %s5, 1
    %s9 = sor.u32 %s5, %s8
    %s10 = sand.u32 %s9, 85
    %s11 = sshrl.u32 %s10, 1
    %s12 = sor.u32 %s10, %s11
    %s13 = sand.u32 51, %s12
    %s14 = sshrl.u32 %s13, 2
    %s15 = sor.u32 %s13, %s14
    %s16 = sand.u32 15, %s15
    %v17 = vld [vmem:[%s7] sm:%s16]
    %v18 = vunpack.c.l.bf16 %v17
    %v19 = vunpack.c.h.bf16 %v17
    %s20 = scalar_lea.vmem [#allocation1], 32
    %21 = vst [vmem:[%s20] sm:%s5] %v18
    %s22 = smul.addr 4, 3
    %s23 = scalar_lea.vmem %s0, %s22
    %s24 = sshrl.u32 %s5, 1
    %s25 = sor.u32 %s5, %s24
    %s26 = sand.u32 %s25, 85
    %s27 = sshrl.u32 %s26, 1
    %s28 = sor.u32 %s26, %s27
    %s29 = sand.u32 51, %s28
    %s30 = sshrl.u32 %s29, 2
    %s31 = sor.u32 %s29, %s30
    %s32 = sand.u32 15, %s31
    %v33 = vld [vmem:[%s23] sm:%s32]
    %v34 = vunpack.c.l.bf16 %v33
    %v35 = vunpack.c.h.bf16 %v33
    %s36 = scalar_lea.vmem [#allocation1], 24
    %37 = vst [vmem:[%s36] sm:%s5] %v34
    %s38 = smul.addr 4, 2
    %s39 = scalar_lea.vmem %s0, %s38
    %s40 = sshrl.u32 %s5, 1
    %s41 = sor.u32 %s5, %s40
    %s42 = sand.u32 %s41, 85
    %s43 = sshrl.u32 %s42, 1
    %s44 = sor.u32 %s42, %s43
    %s45 = sand.u32 51, %s44
    %s46 = sshrl.u32 %s45, 2
    %s47 = sor.u32 %s45, %s46
    %s48 = sand.u32 15, %s47
    %v49 = vld [vmem:[%s39] sm:%s48]
    %v50 = vunpack.c.l.bf16 %v49
    %v51 = vunpack.c.h.bf16 %v49
    %s52 = scalar_lea.vmem [#allocation1], 16
    %53 = vst [vmem:[%s52] sm:%s5] %v50
    %s54 = scalar_lea.vmem %s0, 4
    %s55 = sshrl.u32 %s5, 1
    %s56 = sor.u32 %s5, %s55
    %s57 = sand.u32 %s56, 85
    %s58 = sshrl.u32 %s57, 1
    %s59 = sor.u32 %s57, %s58
    %s60 = sand.u32 51, %s59
    %s61 = sshrl.u32 %s60, 2
    %s62 = sor.u32 %s60, %s61
    %s63 = sand.u32 15, %s62
    %v64 = vld [vmem:[%s54] sm:%s63]
    %v65 = vunpack.c.l.bf16 %v64
    %v66 = vunpack.c.h.bf16 %v64
    %s67 = scalar_lea.vmem [#allocation1], 8
    %68 = vst [vmem:[%s67] sm:%s5] %v65
    %s69 = sshrl.u32 %s5, 1
    %s70 = sor.u32 %s5, %s69
    %s71 = sand.u32 %s70, 85
    %s72 = sshrl.u32 %s71, 1
    %s73 = sor.u32 %s71, %s72
    %s74 = sand.u32 51, %s73
    %s75 = sshrl.u32 %s74, 2
    %s76 = sor.u32 %s74, %s75
    %s77 = sand.u32 15, %s76
    %v78 = vld [vmem:[%s0] sm:%s77]
    %v79 = vunpack.c.l.bf16 %v78
    %v80 = vunpack.c.h.bf16 %v78
    %81 = vst [vmem:[#allocation1] sm:%s5] %v79
    %v82 = vld [vmem:[#allocation1] sm:$0xff]
    %83 = vst [vmem:[#allocation0] sm:$0xff] %v82
    %s84 = scalar_lea.vmem [#allocation1], 8
    %v85 = vld [vmem:[%s84] sm:$0xff]
    %s86 = scalar_lea.vmem [#allocation0], 8
    %87 = vst [vmem:[%s86] sm:$0xff] %v85
    %s88 = scalar_lea.vmem [#allocation1], 16
    %v89 = vld [vmem:[%s88] sm:$0xff]
    %s90 = scalar_lea.vmem [#allocation0], 16
    %91 = vst [vmem:[%s90] ss:$8 sm:$0x3] %v89
    %s92 = scalar_lea.vmem [#allocation0], 23
    %93 = vst [vmem:[%s92] sm:$0xfc] %v89
    %s94 = scalar_lea.vmem [#allocation1], 24
    %v95 = vld [vmem:[%s94] sm:$0xff]
    %s96 = scalar_lea.vmem [#allocation0], 31
    %97 = vst [vmem:[%s96] sm:$0xff] %v95
    %s98 = scalar_lea.vmem [#allocation1], 32
    %v99 = vld [vmem:[%s98] sm:$0x3]
    %s100 = scalar_lea.vmem [#allocation0], 39
    %101 = vst [vmem:[%s100] sm:$0x3] %v99
    %s103 = smul.u32 4, 2
    %s104 = sshll.u32 1, %s103
    %s105 = ssub.s32 %s104, 1
    %s106 = sshrl.u32 %s103, 1
    %v107 = vld [vmem:[#allocation0] sm:%s105]
    %v108 = vpack.c.bf16 0.0, %v107
    %s109 = sshll.u32 1, %s106
    %s110 = ssub.s32 %s109, 1
    %111 = vst [vmem:[%s1] sm:%s110] %v108
    %s112 = scalar_lea.vmem [#allocation0], 8
    %v113 = vld [vmem:[%s112] sm:%s105]
    %v114 = vpack.c.bf16 0.0, %v113
    %s115 = sshll.u32 1, %s106
    %s116 = ssub.s32 %s115, 1
    %s117 = scalar_lea.vmem %s1, 4
    %118 = vst [vmem:[%s117] sm:%s116] %v114
    %s119 = scalar_lea.vmem [#allocation0], 16
    %v120 = vld [vmem:[%s119] sm:%s105]
    %v121 = vpack.c.bf16 0.0, %v120
    %s122 = sshll.u32 1, %s106
    %s123 = ssub.s32 %s122, 1
    %s124 = smul.addr 4, 2
    %s125 = scalar_lea.vmem %s1, %s124
    %126 = vst [vmem:[%s125] sm:%s123] %v121
    %s127 = scalar_lea.vmem [#allocation0], 24
    %v128 = vld [vmem:[%s127] sm:%s105]
    %v129 = vpack.c.bf16 0.0, %v128
    %s130 = sshll.u32 1, %s106
    %s131 = ssub.s32 %s130, 1
    %s132 = smul.addr 4, 3
    %s133 = scalar_lea.vmem %s1, %s132
    %134 = vst [vmem:[%s133] sm:%s131] %v129
    %s135 = scalar_lea.vmem [#allocation0], 32
    %v136 = vld [vmem:[%s135] sm:%s105]
    %v137 = vpack.c.bf16 0.0, %v136
    %s138 = sshll.u32 1, %s106
    %s139 = ssub.s32 %s138, 1
    %s140 = smul.addr 4, 4
    %s141 = scalar_lea.vmem %s1, %s140
    %142 = vst [vmem:[%s141] sm:%s139] %v137
    %s143 = scalar_lea.vmem [#allocation0], 40
    %v144 = vld [vmem:[%s143] sm:%s105]
    %v145 = vpack.c.bf16 0.0, %v144
    %s146 = sshll.u32 1, %s106
    %s147 = ssub.s32 %s146, 1
    %s148 = smul.addr 4, 5
    %s149 = scalar_lea.vmem %s1, %s148
    %150 = vst [vmem:[%s149] sm:%s147] %v145

// kernel: cvt_attention_forward.6
$region0: #{cvt_attention_forward.6}
  #allocation0 [shape = 'u32[]', space=smem, size = 0x4, offset = 0x4, fixed_abs, tag = 'smem constant byte address 0x4 - core index']
  #allocation1 [shape = 'u32[144,128]{1,0:T(1,128)}', space=vmem, size = 0x12000, scoped, tag = 'internal scratch']
  %s0 = inlined_call_operand.vmem [shape: bf16[2,20,5,128], index: 0, kind: input, shape index: {}]
  %s1 = inlined_call_operand.vmem [shape: f32[9,1,1,128], index: 1, kind: input, shape index: {}]
  %s2 = inlined_call_operand.vmem [shape: f32[9,1,1,128], index: 2, kind: input, shape index: {}]
  %s3 = inlined_call_operand.vmem [shape: f32[1,1,128], index: 3, kind: input, shape index: {}]
  %s4 = inlined_call_operand.vmem [shape: f32[1,1,128], index: 4, kind: input, shape index: {}]
  %s5 = inlined_call_operand.vmem [shape: bf16[2,4,4,128], index: 5, kind: output, shape index: {0}]
  %s6 = inlined_call_operand.vmem [shape: bf16[2,4,4,128], index: 6, kind: output, shape index: {1}]
  %7 = xla_tuple %s5, %s6
  %s8 = sld [smem:[#allocation0]]
  $region61: #{cvt_attention_forward.6} parent=0
    _
  %s10 = ssub.s32 1, %s8
  %s11 = scalar_select 0, %s10, %s8
  loop: start=0, step=1, limit=4
  $region2: #{cvt_attention_forward.6} parent=0 // loop_pre_header
    _
  $region3: #{cvt_attention_forward.6} parent=0 // loop_header
    %s13 = sphi 0, %s17
    %p14 = scmp.ge.s32.totalorder %s13, 4
    %s20 = sphi 0, %s32
    %s21 = sphi 0, %s28
    %s22 = sphi 0, %s20
    %s23 = sphi 0, %s21
    %s24 = sphi 0, %s22
    %s25 = sphi 0, %s23
    %s37 = sphi 0, %s39
    %s40 = sphi 0, %s37
    %s41 = sphi 0, %s40
    %s57 = sphi 0, %s41
    %s63 = sphi 0, %s65
    %s66 = sphi 0, %s63
    %s67 = sphi 0, %s66
    %s83 = sphi 0, %s67
    %s89 = sphi 0, %s91
    %s92 = sphi 0, %s89
    %s93 = sphi 0, %s92
    %s109 = sphi 0, %s93
    %s115 = sphi 0, %s117
    %s118 = sphi 0, %s115
    %s119 = sphi 0, %s118
    %s135 = sphi 0, %s119
    %s141 = sphi 0, %s143
    %s144 = sphi 0, %s141
    %s145 = sphi 0, %s144
    %s161 = sphi 0, %s145
    %s169 = sphi 0, %s171
    %s172 = sphi 0, %s169
    %s173 = sphi 0, %s172
    %s189 = sphi 0, %s173
    %s197 = sphi 0, %s199
    %s200 = sphi 0, %s197
    %s201 = sphi 0, %s200
    %s217 = sphi 0, %s201
  $region4: #{cvt_attention_forward.6} parent=0 // loop_header_branch
    %16 = sbr.rel (%p14) target = $region8
  $region5: #{cvt_attention_forward.6} parent=0 // loop_body
    %s18 = ssub.s32 %s13, 1
    %s19 = ssub.s32 %s13, 2
    %s26 = sadd.s32 1, %s21
    %p27 = scmp.ge.s32.totalorder %s26, 1
    %s28 = scalar_select %p27, 0, %s26
    %s29 = sadd.s32 1, %s20
    %s30 = scalar_select %p27, %s29, %s20
    %p31 = scmp.ge.s32.totalorder %s30, 2
    %s32 = scalar_select %p31, 0, %s30
    %s33 = ssub.s32 %s20, %s32
    %s34 = ssub.s32 %s21, %s28
    %s35 = sor.u32 %s33, %s34
    %p36 = scmp.eq.s32.totalorder %s35, 0
    %s38 = sadd.s32 %s37, 1
    %s39 = scalar_select %p36, %s37, %s38
    %p42 = pneg %p36
    %p43 = scmp.eq.s32.totalorder %s13, 1
    %p44 = por %p42, %p43
    %p45 = scmp.ne.s32.totalorder %s37, %s40
    %p46 = scmp.eq.s32.totalorder %s13, 0
    %p47 = por %p45, %p46
    %p48 = scmp.ne.s32.totalorder %s37, %s40
    %p49 = scmp.eq.s32.totalorder %s18, 1
    %p50 = por %p48, %p49
    %p51 = scmp.ne.s32.totalorder %s40, %s41
    %p52 = scmp.eq.s32.totalorder %s18, 0
    %p53 = por %p51, %p52
    %p54 = scmp.ne.s32.totalorder %s40, %s41
    %p55 = scmp.eq.s32.totalorder %s19, 1
    %p56 = por %p54, %p55
    %p58 = scmp.ne.s32.totalorder %s41, %s57
    %p59 = scmp.eq.s32.totalorder %s19, 0
    %p60 = por %p58, %p59
    %s61 = ssub.s32 %s21, %s28
    %p62 = scmp.eq.s32.totalorder %s61, 0
    %s64 = sadd.s32 %s63, 1
    %s65 = scalar_select %p62, %s63, %s64
    %p68 = pneg %p62
    %p69 = scmp.eq.s32.totalorder %s13, 1
    %p70 = por %p68, %p69
    %p71 = scmp.ne.s32.totalorder %s63, %s66
    %p72 = scmp.eq.s32.totalorder %s13, 0
    %p73 = por %p71, %p72
    %p74 = scmp.ne.s32.totalorder %s63, %s66
    %p75 = scmp.eq.s32.totalorder %s18, 1
    %p76 = por %p74, %p75
    %p77 = scmp.ne.s32.totalorder %s66, %s67
    %p78 = scmp.eq.s32.totalorder %s18, 0
    %p79 = por %p77, %p78
    %p80 = scmp.ne.s32.totalorder %s66, %s67
    %p81 = scmp.eq.s32.totalorder %s19, 1
    %p82 = por %p80, %p81
    %p84 = scmp.ne.s32.totalorder %s67, %s83
    %p85 = scmp.eq.s32.totalorder %s19, 0
    %p86 = por %p84, %p85
    %s87 = ssub.s32 %s21, %s28
    %p88 = scmp.eq.s32.totalorder %s87, 0
    %s90 = sadd.s32 %s89, 1
    %s91 = scalar_select %p88, %s89, %s90
    %p94 = pneg %p88
    %p95 = scmp.eq.s32.totalorder %s13, 1
    %p96 = por %p94, %p95
    %p97 = scmp.ne.s32.totalorder %s89, %s92
    %p98 = scmp.eq.s32.totalorder %s13, 0
    %p99 = por %p97, %p98
    %p100 = scmp.ne.s32.totalorder %s89, %s92
    %p101 = scmp.eq.s32.totalorder %s18, 1
    %p102 = por %p100, %p101
    %p103 = scmp.ne.s32.totalorder %s92, %s93
    %p104 = scmp.eq.s32.totalorder %s18, 0
    %p105 = por %p103, %p104
    %p106 = scmp.ne.s32.totalorder %s92, %s93
    %p107 = scmp.eq.s32.totalorder %s19, 1
    %p108 = por %p106, %p107
    %p110 = scmp.ne.s32.totalorder %s93, %s109
    %p111 = scmp.eq.s32.totalorder %s19, 0
    %p112 = por %p110, %p111
    %s113 = ssub.s32 %s21, %s28
    %p114 = scmp.eq.s32.totalorder %s113, 0
    %s116 = sadd.s32 %s115, 1
    %s117 = scalar_select %p114, %s115, %s116
    %p120 = pneg %p114
    %p121 = scmp.eq.s32.totalorder %s13, 1
    %p122 = por %p120, %p121
    %p123 = scmp.ne.s32.totalorder %s115, %s118
    %p124 = scmp.eq.s32.totalorder %s13, 0
    %p125 = por %p123, %p124
    %p126 = scmp.ne.s32.totalorder %s115, %s118
    %p127 = scmp.eq.s32.totalorder %s18, 1
    %p128 = por %p126, %p127
    %p129 = scmp.ne.s32.totalorder %s118, %s119
    %p130 = scmp.eq.s32.totalorder %s18, 0
    %p131 = por %p129, %p130
    %p132 = scmp.ne.s32.totalorder %s118, %s119
    %p133 = scmp.eq.s32.totalorder %s19, 1
    %p134 = por %p132, %p133
    %p136 = scmp.ne.s32.totalorder %s119, %s135
    %p137 = scmp.eq.s32.totalorder %s19, 0
    %p138 = por %p136, %p137
    %s139 = ssub.s32 %s21, %s28
    %p140 = scmp.eq.s32.totalorder %s139, 0
    %s142 = sadd.s32 %s141, 1
    %s143 = scalar_select %p140, %s141, %s142
    %p146 = pneg %p140
    %p147 = scmp.eq.s32.totalorder %s13, 1
    %p148 = por %p146, %p147
    %p149 = scmp.ne.s32.totalorder %s141, %s144
    %p150 = scmp.eq.s32.totalorder %s13, 0
    %p151 = por %p149, %p150
    %p152 = scmp.ne.s32.totalorder %s141, %s144
    %p153 = scmp.eq.s32.totalorder %s18, 1
    %p154 = por %p152, %p153
    %p155 = scmp.ne.s32.totalorder %s144, %s145
    %p156 = scmp.eq.s32.totalorder %s18, 0
    %p157 = por %p155, %p156
    %p158 = scmp.ne.s32.totalorder %s144, %s145
    %p159 = scmp.eq.s32.totalorder %s19, 1
    %p160 = por %p158, %p159
    %p162 = scmp.ne.s32.totalorder %s145, %s161
    %p163 = scmp.eq.s32.totalorder %s19, 0
    %p164 = por %p162, %p163
    %s165 = ssub.s32 %s20, %s32
    %s166 = ssub.s32 %s21, %s28
    %s167 = sor.u32 %s165, %s166
    %p168 = scmp.eq.s32.totalorder %s167, 0
    %s170 = sadd.s32 %s169, 1
    %s171 = scalar_select %p168, %s169, %s170
    %p174 = pneg %p168
    %p175 = scmp.eq.s32.totalorder %s13, 1
    %p176 = por %p174, %p175
    %p177 = scmp.ne.s32.totalorder %s169, %s172
    %p178 = scmp.eq.s32.totalorder %s13, 0
    %p179 = por %p177, %p178
    %p180 = scmp.ne.s32.totalorder %s169, %s172
    %p181 = scmp.eq.s32.totalorder %s18, 1
    %p182 = por %p180, %p181
    %p183 = scmp.ne.s32.totalorder %s172, %s173
    %p184 = scmp.eq.s32.totalorder %s18, 0
    %p185 = por %p183, %p184
    %p186 = scmp.ne.s32.totalorder %s172, %s173
    %p187 = scmp.eq.s32.totalorder %s19, 1
    %p188 = por %p186, %p187
    %p190 = scmp.ne.s32.totalorder %s173, %s189
    %p191 = scmp.eq.s32.totalorder %s19, 0
    %p192 = por %p190, %p191
    %s193 = ssub.s32 %s20, %s32
    %s194 = ssub.s32 %s21, %s28
    %s195 = sor.u32 %s193, %s194
    %p196 = scmp.eq.s32.totalorder %s195, 0
    %s198 = sadd.s32 %s197, 1
    %s199 = scalar_select %p196, %s197, %s198
    %p202 = pneg %p196
    %p203 = scmp.eq.s32.totalorder %s13, 1
    %p204 = por %p202, %p203
    %p205 = scmp.ne.s32.totalorder %s197, %s200
    %p206 = scmp.eq.s32.totalorder %s13, 0
    %p207 = por %p205, %p206
    %p208 = scmp.ne.s32.totalorder %s197, %s200
    %p209 = scmp.eq.s32.totalorder %s18, 1
    %p210 = por %p208, %p209
    %p211 = scmp.ne.s32.totalorder %s200, %s201
    %p212 = scmp.eq.s32.totalorder %s18, 0
    %p213 = por %p211, %p212
    %p214 = scmp.ne.s32.totalorder %s200, %s201
    %p215 = scmp.eq.s32.totalorder %s19, 1
    %p216 = por %p214, %p215
    %p218 = scmp.ne.s32.totalorder %s201, %s217
    %p219 = scmp.eq.s32.totalorder %s19, 0
    %p220 = por %p218, %p219
    %p221 = scmp.le.s32.totalorder 1, %s13
    %p222 = scmp.lt.s32.totalorder %s13, 3
    %p223 = pnand %p221, %p222
    %p224 = pneg %p223
    // Predicated region
    $region9: #{cvt_attention_forward.6} parent=5 // pred_check
      _
    $region10: #{cvt_attention_forward.6} parent=5 // pred_check_branch
      %226 = sbr.rel (%p223) target = $region12
    $region11: #{cvt_attention_forward.6} parent=5 // pred_region
      %s227 = ssub.s32 %s13, 1
      // Predicated region
      $region13: #{cvt_attention_forward.6} parent=11 // pred_check
        %p228 = pneg %p79
      $region14: #{cvt_attention_forward.6} parent=11 // pred_check_branch
        %230 = sbr.rel (%p228) target = $region16
      $region15: #{cvt_attention_forward.6} parent=11 // pred_region
        %p231 = scmp.lt.s32.totalorder %s23, 0
        %s232 = scalar_select %p231, %s23, 0
        %s233 = scalar_lea.vmem %s1, %s232
      $region16: #{cvt_attention_forward.6} parent=11 // pred_fallthru
        _
      // Predicated region
      $region17: #{cvt_attention_forward.6} parent=11 // pred_check
        %p234 = pneg %p105
      $region18: #{cvt_attention_forward.6} parent=11 // pred_check_branch
        %236 = sbr.rel (%p234) target = $region20
      $region19: #{cvt_attention_forward.6} parent=11 // pred_region
        %p237 = scmp.lt.s32.totalorder %s23, 0
        %s238 = scalar_select %p237, %s23, 0
        %s239 = scalar_lea.vmem %s2, %s238
      $region20: #{cvt_attention_forward.6} parent=11 // pred_fallthru
        _
      // Predicated region
      $region21: #{cvt_attention_forward.6} parent=11 // pred_check
        %p240 = pneg %p131
      $region22: #{cvt_attention_forward.6} parent=11 // pred_check_branch
        %242 = sbr.rel (%p240) target = $region24
      $region23: #{cvt_attention_forward.6} parent=11 // pred_region
        %p243 = scmp.lt.s32.totalorder %s23, 0
        %s244 = scalar_select %p243, %s23, 0
        %s245 = scalar_lea.vmem %s3, %s244
      $region24: #{cvt_attention_forward.6} parent=11 // pred_fallthru
        _
      // Predicated region
      $region25: #{cvt_attention_forward.6} parent=11 // pred_check
        %p246 = pneg %p157
      $region26: #{cvt_attention_forward.6} parent=11 // pred_check_branch
        %248 = sbr.rel (%p246) target = $region28
      $region27: #{cvt_attention_forward.6} parent=11 // pred_region
        %p249 = scmp.lt.s32.totalorder %s23, 0
        %s250 = scalar_select %p249, %s23, 0
        %s251 = scalar_lea.vmem %s4, %s250
      $region28: #{cvt_attention_forward.6} parent=11 // pred_fallthru
        _
    $region12: #{cvt_attention_forward.6} parent=5 // pred_fallthru
      _
    %p252 = scmp.lt.s32.totalorder %s13, 2
    // Predicated region
    $region29: #{cvt_attention_forward.6} parent=5 // pred_check
      %p253 = pneg %p252
    $region30: #{cvt_attention_forward.6} parent=5 // pred_check_branch
      %255 = sbr.rel (%p253) target = $region32
    $region31: #{cvt_attention_forward.6} parent=5 // pred_region
      // Predicated region
      $region33: #{cvt_attention_forward.6} parent=31 // pred_check
        %p256 = pneg %p47
      $region34: #{cvt_attention_forward.6} parent=31 // pred_check_branch
        %258 = sbr.rel (%p256) target = $region36
      $region35: #{cvt_attention_forward.6} parent=31 // pred_region
        %p259 = scmp.lt.s32.totalorder %s20, 1
        %s260 = scalar_select %p259, %s20, 1
        %p261 = scmp.lt.s32.totalorder %s21, 0
        %s262 = scalar_select %p261, %s21, 0
        %s263 = smul.addr %s260, 20
        %s264 = sadd.s32 %s262, %s263
        %s265 = smul.addr %s264, 4
        %s266 = scalar_lea.vmem %s0, %s265
      $region36: #{cvt_attention_forward.6} parent=31 // pred_fallthru
        _
    $region32: #{cvt_attention_forward.6} parent=5 // pred_fallthru
      _
    %p267 = scmp.le.s32.totalorder 1, %s13
    %p268 = scmp.lt.s32.totalorder %s13, 3
    %p269 = pnand %p267, %p268
    %p270 = pneg %p269
    // Predicated region
    $region37: #{cvt_attention_forward.6} parent=5 // pred_check
      _
    $region38: #{cvt_attention_forward.6} parent=5 // pred_check_branch
      %272 = sbr.rel (%p269) target = $region40
    $region39: #{cvt_attention_forward.6} parent=5 // pred_region
      %s273 = ssub.s32 %s13, 1
      %p274 = scmp.lt.s32.totalorder %s22, 1
      %s275 = scalar_select %p274, %s22, 1
      %p276 = scmp.lt.s32.totalorder %s23, 0
      %s277 = scalar_select %p276, %s23, 0
      %s278 = smul.addr %s275, 20
      %s279 = sadd.s32 %s277, %s278
      %s280 = smul.addr %s279, 4
      %s281 = scalar_lea.vmem %s0, %s280
      %p282 = pneg %p53
      %p283 = pneg %p50
      %p284 = scmp.lt.s32.totalorder %s23, 0
      %s285 = scalar_select %p284, %s23, 0
      %s286 = scalar_lea.vmem %s1, %s285
      %p287 = pneg %p79
      %p288 = pneg %p76
      %p289 = scmp.lt.s32.totalorder %s23, 0
      %s290 = scalar_select %p289, %s23, 0
      %s291 = scalar_lea.vmem %s2, %s290
      %p292 = pneg %p105
      %p293 = pneg %p102
      %p294 = scmp.lt.s32.totalorder %s23, 0
      %s295 = scalar_select %p294, %s23, 0
      %s296 = scalar_lea.vmem %s3, %s295
      %p297 = pneg %p131
      %p298 = pneg %p128
      %p299 = scmp.lt.s32.totalorder %s23, 0
      %s300 = scalar_select %p299, %s23, 0
      %s301 = scalar_lea.vmem %s4, %s300
      %p302 = pneg %p157
      %p303 = pneg %p154
      %p304 = pneg %p185
      %p305 = pneg %p182
      %p306 = scmp.lt.s32.totalorder %s22, 1
      %s307 = scalar_select %p306, %s22, 1
      %p308 = scmp.lt.s32.totalorder %s23, 0
      %s309 = scalar_select %p308, %s23, 0
      %s310 = smul.addr %s307, 4
      %s311 = sadd.s32 %s309, %s310
      %s312 = smul.addr %s311, 2
      %s313 = scalar_lea.vmem %s5, %s312
      %p314 = pneg %p213
      %p315 = pneg %p210
      %p316 = scmp.lt.s32.totalorder %s22, 1
      %s317 = scalar_select %p316, %s22, 1
      %p318 = scmp.lt.s32.totalorder %s23, 0
      %s319 = scalar_select %p318, %s23, 0
      %s320 = smul.addr %s317, 4
      %s321 = sadd.s32 %s319, %s320
      %s322 = smul.addr %s321, 2
      %s323 = scalar_lea.vmem %s6, %s322
      %p324 = scmp.lt.s32.totalorder %s22, 1
      %s325 = scalar_select %p324, %s22, 1
      %p326 = scmp.lt.s32.totalorder %s23, 0
      %s327 = scalar_select %p326, %s23, 0
      %s328 = smul.addr %s325, 20
      %s329 = sadd.s32 %s327, %s328
      %s330 = smul.addr %s329, 4
      %s331 = scalar_lea.vmem %s0, %s330
      %p332 = scmp.lt.s32.totalorder %s23, 0
      %s333 = scalar_select %p332, %s23, 0
      %s334 = scalar_lea.vmem %s1, %s333
      %p335 = scmp.lt.s32.totalorder %s23, 0
      %s336 = scalar_select %p335, %s23, 0
      %s337 = scalar_lea.vmem %s2, %s336
      %p338 = scmp.lt.s32.totalorder %s23, 0
      %s339 = scalar_select %p338, %s23, 0
      %s340 = scalar_lea.vmem %s3, %s339
      %p341 = scmp.lt.s32.totalorder %s23, 0
      %s342 = scalar_select %p341, %s23, 0
      %s343 = scalar_lea.vmem %s4, %s342
      %p344 = scmp.lt.s32.totalorder %s22, 1
      %s345 = scalar_select %p344, %s22, 1
      %p346 = scmp.lt.s32.totalorder %s23, 0
      %s347 = scalar_select %p346, %s23, 0
      %s348 = smul.addr %s345, 4
      %s349 = sadd.s32 %s347, %s348
      %s350 = smul.addr %s349, 2
      %s351 = scalar_lea.vmem %s5, %s350
      %p352 = scmp.lt.s32.totalorder %s22, 1
      %s353 = scalar_select %p352, %s22, 1
      %p354 = scmp.lt.s32.totalorder %s23, 0
      %s355 = scalar_select %p354, %s23, 0
      %s356 = smul.addr %s353, 4
      %s357 = sadd.s32 %s355, %s356
      %s358 = smul.addr %s357, 2
      %s359 = scalar_lea.vmem %s6, %s358
      %v360 = vld [vmem:[%s331] sm:$0x7]
      %v361 = vld [vmem:[%s331 + $0x4] sm:$0x7]
      %v362 = vld [vmem:[%s331 + $0x8] sm:$0x7]
      %v363 = vld [vmem:[%s331 + $0xc] sm:$0x7]
      %v364 = vld [vmem:[%s331 + $0x10] sm:$0x7]
      %v365 = vld [vmem:[%s331 + $0x14] sm:$0x7]
      %v366 = vld [vmem:[%s331 + $0x18] sm:$0x7]
      %v367 = vld [vmem:[%s331 + $0x1c] sm:$0x7]
      %v368 = vld [vmem:[%s331 + $0x20] sm:$0x7]
      %v369 = vld [vmem:[%s331 + $0x24] sm:$0x7]
      %v370 = vld [vmem:[%s331 + $0x28] sm:$0x7]
      %v371 = vld [vmem:[%s331 + $0x2c] sm:$0x7]
      %v372 = vld [vmem:[%s331 + $0x30] sm:$0x7]
      %v373 = vld [vmem:[%s331 + $0x34] sm:$0x7]
      %v374 = vld [vmem:[%s331 + $0x3c] sm:$0x7]
      %v375 = vld [vmem:[%s331 + $0x40] sm:$0x7]
      %v376 = vld [vmem:[%s331 + $0x44] sm:$0x7]
      %v377 = vld [vmem:[%s331 + $0x48] sm:$0x7]
      %v378 = vunpack.c.l.bf16 %v360
      %v379 = vunpack.c.l.bf16 %v361
      %v380 = vunpack.c.l.bf16 %v362
      %v381 = vunpack.c.l.bf16 %v363
      %v382 = vld [vmem:[%s334] sm:$0x1]
      %v384 = vlaneseq
      %v385 = vshrl.u32 %v384, 7
      %v386 = vsub.s32 0, %v385
      %v387 = vrot.slane %v382, %v386
      %v389 = vmul.f32 %v378, %v387
      %v390 = vmul.f32 %v379, %v387
      %v391 = vmul.f32 %v380, %v387
      %v392 = vmul.f32 %v381, %v387
      %v393 = vld [vmem:[%s337] sm:$0x1]
      %v395 = vlaneseq
      %v396 = vshrl.u32 %v395, 7
      %v397 = vsub.s32 0, %v396
      %v398 = vrot.slane %v393, %v397
      %v400 = vmul.f32 %v378, %v398
      %v401 = vmul.f32 %v379, %v398
      %v402 = vmul.f32 %v380, %v398
      %v403 = vmul.f32 %v381, %v398
      %v404 = vunpack.c.l.bf16 %v365
      %v405 = vunpack.c.l.bf16 %v366
      %v406 = vunpack.c.l.bf16 %v367
      %v407 = vunpack.c.l.bf16 %v368
      %s408 = scalar_lea.vmem %s334, 1
      %v409 = vld [vmem:[%s408] sm:$0x1]
      %v411 = vlaneseq
      %v412 = vshrl.u32 %v411, 7
      %v413 = vsub.s32 0, %v412
      %v414 = vrot.slane %v409, %v413
      %v416 = vmul.f32 %v404, %v414
      %v417 = vmul.f32 %v405, %v414
      %v418 = vmul.f32 %v406, %v414
      %v419 = vmul.f32 %v407, %v414
      %v420 = vadd.f32 %v389, %v416
      %v421 = vadd.f32 %v390, %v417
      %v422 = vadd.f32 %v391, %v418
      %v423 = vadd.f32 %v392, %v419
      %s424 = scalar_lea.vmem %s337, 1
      %v425 = vld [vmem:[%s424] sm:$0x1]
      %v427 = vlaneseq
      %v428 = vshrl.u32 %v427, 7
      %v429 = vsub.s32 0, %v428
      %v430 = vrot.slane %v425, %v429
      %v432 = vmul.f32 %v404, %v430
      %v433 = vmul.f32 %v405, %v430
      %v434 = vmul.f32 %v406, %v430
      %v435 = vmul.f32 %v407, %v430
      %v436 = vadd.f32 %v400, %v432
      %v437 = vadd.f32 %v401, %v433
      %v438 = vadd.f32 %v402, %v434
      %v439 = vadd.f32 %v403, %v435
      %s440 = scalar_lea.vmem %s334, 2
      %v441 = vld [vmem:[%s440] sm:$0x1]
      %v443 = vlaneseq
      %v444 = vshrl.u32 %v443, 7
      %v445 = vsub.s32 0, %v444
      %v446 = vrot.slane %v441, %v445
      %v448 = vmul.f32 %v378, %v446
      %v449 = vmul.f32 %v379, %v446
      %v450 = vmul.f32 %v380, %v446
      %v451 = vmul.f32 %v381, %v446
      %v456 = vrot.slane %v448, 1
      %v457 = vrot.slane %v449, 1
      %v458 = vrot.slane %v450, 1
      %v459 = vrot.slane %v451, 1
      %v464 = vadd.f32 %v420, %v456
      %v465 = vadd.f32 %v421, %v457
      %v466 = vadd.f32 %v422, %v458
      %v467 = vadd.f32 %v423, %v459
      %s468 = scalar_lea.vmem %s337, 2
      %v469 = vld [vmem:[%s468] sm:$0x1]
      %v471 = vlaneseq
      %v472 = vshrl.u32 %v471, 7
      %v473 = vsub.s32 0, %v472
      %v474 = vrot.slane %v469, %v473
      %v476 = vmul.f32 %v378, %v474
      %v477 = vmul.f32 %v379, %v474
      %v478 = vmul.f32 %v380, %v474
      %v479 = vmul.f32 %v381, %v474
      %v484 = vrot.slane %v476, 1
      %v485 = vrot.slane %v477, 1
      %v486 = vrot.slane %v478, 1
      %v487 = vrot.slane %v479, 1
      %v492 = vadd.f32 %v436, %v484
      %v493 = vadd.f32 %v437, %v485
      %v494 = vadd.f32 %v438, %v486
      %v495 = vadd.f32 %v439, %v487
      %v496 = vunpack.c.l.bf16 %v370
      %v497 = vunpack.c.l.bf16 %v371
      %v498 = vunpack.c.l.bf16 %v372
      %v499 = vunpack.c.l.bf16 %v373
      %s500 = scalar_lea.vmem %s334, 3
      %v501 = vld [vmem:[%s500] sm:$0x1]
      %v503 = vlaneseq
      %v504 = vshrl.u32 %v503, 7
      %v505 = vsub.s32 0, %v504
      %v506 = vrot.slane %v501, %v505
      %v508 = vmul.f32 %v496, %v506
      %v509 = vmul.f32 %v497, %v506
      %v510 = vmul.f32 %v498, %v506
      %v511 = vmul.f32 %v499, %v506
      %v512 = vadd.f32 %v464, %v508
      %v513 = vadd.f32 %v465, %v509
      %v514 = vadd.f32 %v466, %v510
      %v515 = vadd.f32 %v467, %v511
      %s516 = scalar_lea.vmem %s337, 3
      %v517 = vld [vmem:[%s516] sm:$0x1]
      %v519 = vlaneseq
      %v520 = vshrl.u32 %v519, 7
      %v521 = vsub.s32 0, %v520
      %v522 = vrot.slane %v517, %v521
      %v524 = vmul.f32 %v496, %v522
      %v525 = vmul.f32 %v497, %v522
      %v526 = vmul.f32 %v498, %v522
      %v527 = vmul.f32 %v499, %v522
      %v528 = vadd.f32 %v492, %v524
      %v529 = vadd.f32 %v493, %v525
      %v530 = vadd.f32 %v494, %v526
      %v531 = vadd.f32 %v495, %v527
      %v532 = vunpack.c.l.bf16 %v374
      %v533 = vunpack.c.l.bf16 %v375
      %v534 = vunpack.c.l.bf16 %v376
      %v535 = vunpack.c.l.bf16 %v377
      %s536 = scalar_lea.vmem %s334, 4
      %v537 = vld [vmem:[%s536] sm:$0x1]
      %v539 = vlaneseq
      %v540 = vshrl.u32 %v539, 7
      %v541 = vsub.s32 0, %v540
      %v542 = vrot.slane %v537, %v541
      %v544 = vmul.f32 %v532, %v542
      %v545 = vmul.f32 %v533, %v542
      %v546 = vmul.f32 %v534, %v542
      %v547 = vmul.f32 %v535, %v542
      %v548 = vadd.f32 %v512, %v544
      %v549 = vadd.f32 %v513, %v545
      %v550 = vadd.f32 %v514, %v546
      %v551 = vadd.f32 %v515, %v547
      %s552 = scalar_lea.vmem %s337, 4
      %v553 = vld [vmem:[%s552] sm:$0x1]
      %v555 = vlaneseq
      %v556 = vshrl.u32 %v555, 7
      %v557 = vsub.s32 0, %v556
      %v558 = vrot.slane %v553, %v557
      %v560 = vmul.f32 %v532, %v558
      %v561 = vmul.f32 %v533, %v558
      %v562 = vmul.f32 %v534, %v558
      %v563 = vmul.f32 %v535, %v558
      %v564 = vadd.f32 %v528, %v560
      %v565 = vadd.f32 %v529, %v561
      %v566 = vadd.f32 %v530, %v562
      %v567 = vadd.f32 %v531, %v563
      %s568 = scalar_lea.vmem %s334, 5
      %v569 = vld [vmem:[%s568] sm:$0x1]
      %v571 = vlaneseq
      %v572 = vshrl.u32 %v571, 7
      %v573 = vsub.s32 0, %v572
      %v574 = vrot.slane %v569, %v573
      %v576 = vmul.f32 %v496, %v574
      %v577 = vmul.f32 %v497, %v574
      %v578 = vmul.f32 %v498, %v574
      %v579 = vmul.f32 %v499, %v574
      %v584 = vrot.slane %v576, 1
      %v585 = vrot.slane %v577, 1
      %v586 = vrot.slane %v578, 1
      %v587 = vrot.slane %v579, 1
      %v592 = vadd.f32 %v548, %v584
      %v593 = vadd.f32 %v549, %v585
      %v594 = vadd.f32 %v550, %v586
      %v595 = vadd.f32 %v551, %v587
      %s596 = scalar_lea.vmem %s337, 5
      %v597 = vld [vmem:[%s596] sm:$0x1]
      %v599 = vlaneseq
      %v600 = vshrl.u32 %v599, 7
      %v601 = vsub.s32 0, %v600
      %v602 = vrot.slane %v597, %v601
      %v604 = vmul.f32 %v496, %v602
      %v605 = vmul.f32 %v497, %v602
      %v606 = vmul.f32 %v498, %v602
      %v607 = vmul.f32 %v499, %v602
      %v612 = vrot.slane %v604, 1
      %v613 = vrot.slane %v605, 1
      %v614 = vrot.slane %v606, 1
      %v615 = vrot.slane %v607, 1
      %v620 = vadd.f32 %v564, %v612
      %v621 = vadd.f32 %v565, %v613
      %v622 = vadd.f32 %v566, %v614
      %v623 = vadd.f32 %v567, %v615
      %v624 = vunpack.c.l.bf16 %v364
      %s625 = scalar_lea.vmem %s334, 6
      %v626 = vld [vmem:[%s625] sm:$0x1]
      %v628 = vlaneseq
      %v629 = vshrl.u32 %v628, 7
      %v630 = vsub.s32 0, %v629
      %v631 = vrot.slane %v626, %v630
      %v633 = vmul.f32 %v379, %v631
      %v634 = vmul.f32 %v380, %v631
      %v635 = vmul.f32 %v381, %v631
      %v636 = vmul.f32 %v624, %v631
      %v637 = vadd.f32 %v592, %v633
      %v638 = vadd.f32 %v593, %v634
      %v639 = vadd.f32 %v594, %v635
      %v640 = vadd.f32 %v595, %v636
      %s641 = scalar_lea.vmem %s337, 6
      %v642 = vld [vmem:[%s641] sm:$0x1]
      %v644 = vlaneseq
      %v645 = vshrl.u32 %v644, 7
      %v646 = vsub.s32 0, %v645
      %v647 = vrot.slane %v642, %v646
      %v649 = vmul.f32 %v379, %v647
      %v650 = vmul.f32 %v380, %v647
      %v651 = vmul.f32 %v381, %v647
      %v652 = vmul.f32 %v624, %v647
      %v653 = vadd.f32 %v620, %v649
      %v654 = vadd.f32 %v621, %v650
      %v655 = vadd.f32 %v622, %v651
      %v656 = vadd.f32 %v623, %v652
      %v657 = vunpack.c.l.bf16 %v369
      %s658 = scalar_lea.vmem %s334, 7
      %v659 = vld [vmem:[%s658] sm:$0x1]
      %v661 = vlaneseq
      %v662 = vshrl.u32 %v661, 7
      %v663 = vsub.s32 0, %v662
      %v664 = vrot.slane %v659, %v663
      %v666 = vmul.f32 %v405, %v664
      %v667 = vmul.f32 %v406, %v664
      %v668 = vmul.f32 %v407, %v664
      %v669 = vmul.f32 %v657, %v664
      %v670 = vadd.f32 %v637, %v666
      %v671 = vadd.f32 %v638, %v667
      %v672 = vadd.f32 %v639, %v668
      %v673 = vadd.f32 %v640, %v669
      %s674 = scalar_lea.vmem %s337, 7
      %v675 = vld [vmem:[%s674] sm:$0x1]
      %v677 = vlaneseq
      %v678 = vshrl.u32 %v677, 7
      %v679 = vsub.s32 0, %v678
      %v680 = vrot.slane %v675, %v679
      %v682 = vmul.f32 %v405, %v680
      %v683 = vmul.f32 %v406, %v680
      %v684 = vmul.f32 %v407, %v680
      %v685 = vmul.f32 %v657, %v680
      %v686 = vadd.f32 %v653, %v682
      %v687 = vadd.f32 %v654, %v683
      %v688 = vadd.f32 %v655, %v684
      %v689 = vadd.f32 %v656, %v685
      %s690 = scalar_lea.vmem %s334, 8
      %v691 = vld [vmem:[%s690] sm:$0x1]
      %v693 = vlaneseq
      %v694 = vshrl.u32 %v693, 7
      %v695 = vsub.s32 0, %v694
      %v696 = vrot.slane %v691, %v695
      %v698 = vmul.f32 %v379, %v696
      %v699 = vmul.f32 %v380, %v696
      %v700 = vmul.f32 %v381, %v696
      %v701 = vmul.f32 %v624, %v696
      %v706 = vrot.slane %v698, 1
      %v707 = vrot.slane %v699, 1
      %v708 = vrot.slane %v700, 1
      %v709 = vrot.slane %v701, 1
      %v714 = vadd.f32 %v670, %v706
      %v715 = vadd.f32 %v671, %v707
      %v716 = vadd.f32 %v672, %v708
      %v717 = vadd.f32 %v673, %v709
      %s718 = scalar_lea.vmem %s337, 8
      %v719 = vld [vmem:[%s718] sm:$0x1]
      %v721 = vlaneseq
      %v722 = vshrl.u32 %v721, 7
      %v723 = vsub.s32 0, %v722
      %v724 = vrot.slane %v719, %v723
      %v726 = vmul.f32 %v379, %v724
      %v727 = vmul.f32 %v380, %v724
      %v728 = vmul.f32 %v381, %v724
      %v729 = vmul.f32 %v624, %v724
      %v734 = vrot.slane %v726, 1
      %v735 = vrot.slane %v727, 1
      %v736 = vrot.slane %v728, 1
      %v737 = vrot.slane %v729, 1
      %v742 = vadd.f32 %v686, %v734
      %v743 = vadd.f32 %v687, %v735
      %v744 = vadd.f32 %v688, %v736
      %v745 = vadd.f32 %v689, %v737
      %v746 = vld [vmem:[%s340] sm:$0x1]
      %v748 = vlaneseq
      %v749 = vshrl.u32 %v748, 7
      %v750 = vsub.s32 0, %v749
      %v751 = vrot.slane %v746, %v750
      %v753 = vadd.f32 %v714, %v751
      %v754 = vadd.f32 %v715, %v751
      %v755 = vadd.f32 %v716, %v751
      %v756 = vadd.f32 %v717, %v751
      %v757 = vpack.c.bf16 %v753, %v753
      %v758 = vpack.c.bf16 %v754, %v754
      %v759 = vpack.c.bf16 %v755, %v755
      %v760 = vpack.c.bf16 %v756, %v756
      %761 = vst [vmem:[%s351] sm:$0x3] %v757
      %762 = vst [vmem:[%s351 + $0x2] sm:$0x3] %v758
      %763 = vst [vmem:[%s351 + $0x4] sm:$0x3] %v759
      %764 = vst [vmem:[%s351 + $0x6] sm:$0x3] %v760
      %v765 = vld [vmem:[%s343] sm:$0x1]
      %v767 = vlaneseq
      %v768 = vshrl.u32 %v767, 7
      %v769 = vsub.s32 0, %v768
      %v770 = vrot.slane %v765, %v769
      %v772 = vadd.f32 %v742, %v770
      %v773 = vadd.f32 %v743, %v770
      %v774 = vadd.f32 %v744, %v770
      %v775 = vadd.f32 %v745, %v770
      %v776 = vpack.c.bf16 %v772, %v772
      %v777 = vpack.c.bf16 %v773, %v773
      %v778 = vpack.c.bf16 %v774, %v774
      %v779 = vpack.c.bf16 %v775, %v775
      %780 = vst [vmem:[%s359] sm:$0x3] %v776
      %781 = vst [vmem:[%s359 + $0x2] sm:$0x3] %v777
      %782 = vst [vmem:[%s359 + $0x4] sm:$0x3] %v778
      %783 = vst [vmem:[%s359 + $0x6] sm:$0x3] %v779
      %p784 = scmp.lt.s32.totalorder %s22, 1
      %s785 = scalar_select %p784, %s22, 1
      %p786 = scmp.lt.s32.totalorder %s23, 0
      %s787 = scalar_select %p786, %s23, 0
      %s788 = smul.addr %s785, 4
      %s789 = sadd.s32 %s787, %s788
      %s790 = smul.addr %s789, 2
      %s791 = scalar_lea.vmem %s5, %s790
      %p792 = scmp.lt.s32.totalorder %s22, 1
      %s793 = scalar_select %p792, %s22, 1
      %p794 = scmp.lt.s32.totalorder %s23, 0
      %s795 = scalar_select %p794, %s23, 0
      %s796 = smul.addr %s793, 4
      %s797 = sadd.s32 %s795, %s796
      %s798 = smul.addr %s797, 2
      %s799 = scalar_lea.vmem %s6, %s798
      // Predicated region
      $region41: #{cvt_attention_forward.6} parent=39 // pred_check
        %p800 = pneg %p182
      $region42: #{cvt_attention_forward.6} parent=39 // pred_check_branch
        %802 = sbr.rel (%p800) target = $region44
      $region43: #{cvt_attention_forward.6} parent=39 // pred_region
        _
      $region44: #{cvt_attention_forward.6} parent=39 // pred_fallthru
        _
      // Predicated region
      $region45: #{cvt_attention_forward.6} parent=39 // pred_check
        %p803 = pneg %p210
      $region46: #{cvt_attention_forward.6} parent=39 // pred_check_branch
        %805 = sbr.rel (%p803) target = $region48
      $region47: #{cvt_attention_forward.6} parent=39 // pred_region
        _
      $region48: #{cvt_attention_forward.6} parent=39 // pred_fallthru
        _
    $region40: #{cvt_attention_forward.6} parent=5 // pred_fallthru
      _
    %p806 = scmp.le.s32.totalorder 2, %s13
    // Predicated region
    $region49: #{cvt_attention_forward.6} parent=5 // pred_check
      %p807 = pneg %p806
    $region50: #{cvt_attention_forward.6} parent=5 // pred_check_branch
      %809 = sbr.rel (%p807) target = $region52
    $region51: #{cvt_attention_forward.6} parent=5 // pred_region
      %s810 = ssub.s32 %s13, 2
      // Predicated region
      $region53: #{cvt_attention_forward.6} parent=51 // pred_check
        %p811 = pneg %p188
      $region54: #{cvt_attention_forward.6} parent=51 // pred_check_branch
        %813 = sbr.rel (%p811) target = $region56
      $region55: #{cvt_attention_forward.6} parent=51 // pred_region
        %p814 = scmp.lt.s32.totalorder %s24, 1
        %s815 = scalar_select %p814, %s24, 1
        %p816 = scmp.lt.s32.totalorder %s25, 0
        %s817 = scalar_select %p816, %s25, 0
        %s818 = smul.addr %s815, 4
        %s819 = sadd.s32 %s817, %s818
        %s820 = smul.addr %s819, 2
        %s821 = scalar_lea.vmem %s5, %s820
      $region56: #{cvt_attention_forward.6} parent=51 // pred_fallthru
        _
      // Predicated region
      $region57: #{cvt_attention_forward.6} parent=51 // pred_check
        %p822 = pneg %p216
      $region58: #{cvt_attention_forward.6} parent=51 // pred_check_branch
        %824 = sbr.rel (%p822) target = $region60
      $region59: #{cvt_attention_forward.6} parent=51 // pred_region
        %p825 = scmp.lt.s32.totalorder %s24, 1
        %s826 = scalar_select %p825, %s24, 1
        %p827 = scmp.lt.s32.totalorder %s25, 0
        %s828 = scalar_select %p827, %s25, 0
        %s829 = smul.addr %s826, 4
        %s830 = sadd.s32 %s828, %s829
        %s831 = smul.addr %s830, 2
        %s832 = scalar_lea.vmem %s6, %s831
      $region60: #{cvt_attention_forward.6} parent=51 // pred_fallthru
        _
    $region52: #{cvt_attention_forward.6} parent=5 // pred_fallthru
      _
  $region6: #{cvt_attention_forward.6} parent=0 // loop_footer
    %s17 = sadd.s32 1, %s13
  $region7: #{cvt_attention_forward.6} parent=0 // loop_footer_branch
    %12 = sbr.rel target = $region3
  $region8: #{cvt_attention_forward.6} parent=0 // loop_exit
    _

// kernel: cvt_attention_forward.8
$region0: #{cvt_attention_forward.8}
  #allocation0 [shape = 'u32[]', space=smem, size = 0x4, offset = 0x4, fixed_abs, tag = 'smem constant byte address 0x4 - core index']
  #allocation1 [shape = 'u32[144,128]{1,0:T(1,128)}', space=vmem, size = 0x12000, scoped, tag = 'internal scratch']
  #allocation2 [shape = 'f32[48,128]{1,0:T(8,128)}', space=vmem, size = 0x6000, scoped, tag = 'scratch operand']
  %s0 = inlined_call_operand.vmem [shape: bf16[2,48,128], index: 0, kind: input, shape index: {}]
  %s1 = inlined_call_operand.vmem [shape: bf16[2,128,128], index: 1, kind: input, shape index: {}]
  %s2 = inlined_call_operand.vmem [shape: f32[2,1,128], index: 2, kind: input, shape index: {}]
  %s3 = inlined_call_operand.vmem [shape: bf16[2,48,128], index: 3, kind: output, shape index: {}]
  %s4 = sld [smem:[#allocation0]]
  $region53: #{cvt_attention_forward.8} parent=0
    _
  %s6 = ssub.s32 1, %s4
  %s7 = scalar_select 0, %s6, %s4
  loop: start=0, step=1, limit=4
  $region2: #{cvt_attention_forward.8} parent=0 // loop_pre_header
    _
  $region3: #{cvt_attention_forward.8} parent=0 // loop_header
    %s9 = sphi 0, %s13
    %p10 = scmp.ge.s32.totalorder %s9, 4
    %s16 = sphi 0, %s42
    %s17 = sphi 0, %s38
    %s18 = sphi 0, %s34
    %s19 = sphi 0, %s30
    %s20 = sphi 0, %s16
    %s21 = sphi 0, %s17
    %s22 = sphi 0, %s18
    %s23 = sphi 0, %s19
    %s24 = sphi 0, %s20
    %s25 = sphi 0, %s21
    %s26 = sphi 0, %s22
    %s27 = sphi 0, %s23
    %s49 = sphi 0, %s51
    %s52 = sphi 0, %s49
    %s53 = sphi 0, %s52
    %s69 = sphi 0, %s53
    %s79 = sphi 0, %s81
    %s82 = sphi 0, %s79
    %s83 = sphi 0, %s82
    %s99 = sphi 0, %s83
    %s107 = sphi 0, %s109
    %s110 = sphi 0, %s107
    %s111 = sphi 0, %s110
    %s127 = sphi 0, %s111
    %s137 = sphi 0, %s139
    %s140 = sphi 0, %s137
    %s141 = sphi 0, %s140
    %s157 = sphi 0, %s141
  $region4: #{cvt_attention_forward.8} parent=0 // loop_header_branch
    %12 = sbr.rel (%p10) target = $region8
  $region5: #{cvt_attention_forward.8} parent=0 // loop_body
    %s14 = ssub.s32 %s9, 1
    %s15 = ssub.s32 %s9, 2
    %s28 = sadd.s32 1, %s19
    %p29 = scmp.ge.s32.totalorder %s28, 1
    %s30 = scalar_select %p29, 0, %s28
    %s31 = sadd.s32 1, %s18
    %s32 = scalar_select %p29, %s31, %s18
    %p33 = scmp.ge.s32.totalorder %s32, 1
    %s34 = scalar_select %p33, 0, %s32
    %s35 = sadd.s32 1, %s17
    %s36 = scalar_select %p33, %s35, %s17
    %p37 = scmp.ge.s32.totalorder %s36, 1
    %s38 = scalar_select %p37, 0, %s36
    %s39 = sadd.s32 1, %s16
    %s40 = scalar_select %p37, %s39, %s16
    %p41 = scmp.ge.s32.totalorder %s40, 2
    %s42 = scalar_select %p41, 0, %s40
    %s43 = ssub.s32 %s16, %s42
    %s44 = ssub.s32 %s17, %s38
    %s45 = sor.u32 %s43, %s44
    %s46 = ssub.s32 %s19, %s30
    %s47 = sor.u32 %s45, %s46
    %p48 = scmp.eq.s32.totalorder %s47, 0
    %s50 = sadd.s32 %s49, 1
    %s51 = scalar_select %p48, %s49, %s50
    %p54 = pneg %p48
    %p55 = scmp.eq.s32.totalorder %s9, 1
    %p56 = por %p54, %p55
    %p57 = scmp.ne.s32.totalorder %s49, %s52
    %p58 = scmp.eq.s32.totalorder %s9, 0
    %p59 = por %p57, %p58
    %p60 = scmp.ne.s32.totalorder %s49, %s52
    %p61 = scmp.eq.s32.totalorder %s14, 1
    %p62 = por %p60, %p61
    %p63 = scmp.ne.s32.totalorder %s52, %s53
    %p64 = scmp.eq.s32.totalorder %s14, 0
    %p65 = por %p63, %p64
    %p66 = scmp.ne.s32.totalorder %s52, %s53
    %p67 = scmp.eq.s32.totalorder %s15, 1
    %p68 = por %p66, %p67
    %p70 = scmp.ne.s32.totalorder %s53, %s69
    %p71 = scmp.eq.s32.totalorder %s15, 0
    %p72 = por %p70, %p71
    %s73 = ssub.s32 %s16, %s42
    %s74 = ssub.s32 %s19, %s30
    %s75 = sor.u32 %s73, %s74
    %s76 = ssub.s32 %s18, %s34
    %s77 = sor.u32 %s75, %s76
    %p78 = scmp.eq.s32.totalorder %s77, 0
    %s80 = sadd.s32 %s79, 1
    %s81 = scalar_select %p78, %s79, %s80
    %p84 = pneg %p78
    %p85 = scmp.eq.s32.totalorder %s9, 1
    %p86 = por %p84, %p85
    %p87 = scmp.ne.s32.totalorder %s79, %s82
    %p88 = scmp.eq.s32.totalorder %s9, 0
    %p89 = por %p87, %p88
    %p90 = scmp.ne.s32.totalorder %s79, %s82
    %p91 = scmp.eq.s32.totalorder %s14, 1
    %p92 = por %p90, %p91
    %p93 = scmp.ne.s32.totalorder %s82, %s83
    %p94 = scmp.eq.s32.totalorder %s14, 0
    %p95 = por %p93, %p94
    %p96 = scmp.ne.s32.totalorder %s82, %s83
    %p97 = scmp.eq.s32.totalorder %s15, 1
    %p98 = por %p96, %p97
    %p100 = scmp.ne.s32.totalorder %s83, %s99
    %p101 = scmp.eq.s32.totalorder %s15, 0
    %p102 = por %p100, %p101
    %s103 = ssub.s32 %s16, %s42
    %s104 = ssub.s32 %s18, %s34
    %s105 = sor.u32 %s103, %s104
    %p106 = scmp.eq.s32.totalorder %s105, 0
    %s108 = sadd.s32 %s107, 1
    %s109 = scalar_select %p106, %s107, %s108
    %p112 = pneg %p106
    %p113 = scmp.eq.s32.totalorder %s9, 1
    %p114 = por %p112, %p113
    %p115 = scmp.ne.s32.totalorder %s107, %s110
    %p116 = scmp.eq.s32.totalorder %s9, 0
    %p117 = por %p115, %p116
    %p118 = scmp.ne.s32.totalorder %s107, %s110
    %p119 = scmp.eq.s32.totalorder %s14, 1
    %p120 = por %p118, %p119
    %p121 = scmp.ne.s32.totalorder %s110, %s111
    %p122 = scmp.eq.s32.totalorder %s14, 0
    %p123 = por %p121, %p122
    %p124 = scmp.ne.s32.totalorder %s110, %s111
    %p125 = scmp.eq.s32.totalorder %s15, 1
    %p126 = por %p124, %p125
    %p128 = scmp.ne.s32.totalorder %s111, %s127
    %p129 = scmp.eq.s32.totalorder %s15, 0
    %p130 = por %p128, %p129
    %s131 = ssub.s32 %s16, %s42
    %s132 = ssub.s32 %s17, %s38
    %s133 = sor.u32 %s131, %s132
    %s134 = ssub.s32 %s18, %s34
    %s135 = sor.u32 %s133, %s134
    %p136 = scmp.eq.s32.totalorder %s135, 0
    %s138 = sadd.s32 %s137, 1
    %s139 = scalar_select %p136, %s137, %s138
    %p142 = pneg %p136
    %p143 = scmp.eq.s32.totalorder %s9, 1
    %p144 = por %p142, %p143
    %p145 = scmp.ne.s32.totalorder %s137, %s140
    %p146 = scmp.eq.s32.totalorder %s9, 0
    %p147 = por %p145, %p146
    %p148 = scmp.ne.s32.totalorder %s137, %s140
    %p149 = scmp.eq.s32.totalorder %s14, 1
    %p150 = por %p148, %p149
    %p151 = scmp.ne.s32.totalorder %s140, %s141
    %p152 = scmp.eq.s32.totalorder %s14, 0
    %p153 = por %p151, %p152
    %p154 = scmp.ne.s32.totalorder %s140, %s141
    %p155 = scmp.eq.s32.totalorder %s15, 1
    %p156 = por %p154, %p155
    %p158 = scmp.ne.s32.totalorder %s141, %s157
    %p159 = scmp.eq.s32.totalorder %s15, 0
    %p160 = por %p158, %p159
    %p161 = scmp.le.s32.totalorder 1, %s9
    %p162 = scmp.lt.s32.totalorder %s9, 3
    %p163 = pnand %p161, %p162
    %p164 = pneg %p163
    // Predicated region
    $region9: #{cvt_attention_forward.8} parent=5 // pred_check
      _
    $region10: #{cvt_attention_forward.8} parent=5 // pred_check_branch
      %166 = sbr.rel (%p163) target = $region12
    $region11: #{cvt_attention_forward.8} parent=5 // pred_region
      %s167 = ssub.s32 %s9, 1
    $region12: #{cvt_attention_forward.8} parent=5 // pred_fallthru
      _
    %p168 = scmp.lt.s32.totalorder %s9, 2
    // Predicated region
    $region13: #{cvt_attention_forward.8} parent=5 // pred_check
      %p169 = pneg %p168
    $region14: #{cvt_attention_forward.8} parent=5 // pred_check_branch
      %171 = sbr.rel (%p169) target = $region16
    $region15: #{cvt_attention_forward.8} parent=5 // pred_region
      // Predicated region
      $region17: #{cvt_attention_forward.8} parent=15 // pred_check
        %p172 = pneg %p59
      $region18: #{cvt_attention_forward.8} parent=15 // pred_check_branch
        %174 = sbr.rel (%p172) target = $region20
      $region19: #{cvt_attention_forward.8} parent=15 // pred_region
        %s175 = smul.u32 6, %s17
        %p176 = scmp.lt.s32.totalorder %s16, 1
        %s177 = scalar_select %p176, %s16, 1
        %p178 = scmp.lt.s32.totalorder %s175, 5
        %s179 = scalar_select %p178, %s175, 5
        %p180 = scmp.lt.s32.totalorder %s19, 0
        %s181 = scalar_select %p180, %s19, 0
        %s182 = sadd.s32 %s181, %s179
        %s183 = smul.addr %s177, 6
        %s184 = sadd.s32 %s182, %s183
        %s185 = smul.addr %s184, 4
        %s186 = scalar_lea.vmem %s0, %s185
        %s187 = smul.u32 6, %s17
      $region20: #{cvt_attention_forward.8} parent=15 // pred_fallthru
        _
      // Predicated region
      $region21: #{cvt_attention_forward.8} parent=15 // pred_check
        %p188 = pneg %p89
      $region22: #{cvt_attention_forward.8} parent=15 // pred_check_branch
        %190 = sbr.rel (%p188) target = $region24
      $region23: #{cvt_attention_forward.8} parent=15 // pred_region
        %s191 = smul.u32 16, %s19
        %p192 = scmp.lt.s32.totalorder %s16, 1
        %s193 = scalar_select %p192, %s16, 1
        %p194 = scmp.lt.s32.totalorder %s191, 15
        %s195 = scalar_select %p194, %s191, 15
        %p196 = scmp.lt.s32.totalorder %s18, 0
        %s197 = scalar_select %p196, %s18, 0
        %s198 = sadd.s32 %s197, %s195
        %s199 = smul.addr %s193, 16
        %s200 = sadd.s32 %s198, %s199
        %s201 = smul.addr %s200, 4
        %s202 = scalar_lea.vmem %s1, %s201
        %s203 = smul.u32 16, %s19
      $region24: #{cvt_attention_forward.8} parent=15 // pred_fallthru
        _
      // Predicated region
      $region25: #{cvt_attention_forward.8} parent=15 // pred_check
        %p204 = pneg %p117
      $region26: #{cvt_attention_forward.8} parent=15 // pred_check_branch
        %206 = sbr.rel (%p204) target = $region28
      $region27: #{cvt_attention_forward.8} parent=15 // pred_region
        %p207 = scmp.lt.s32.totalorder %s16, 1
        %s208 = scalar_select %p207, %s16, 1
        %p209 = scmp.lt.s32.totalorder %s18, 0
        %s210 = scalar_select %p209, %s18, 0
        %s211 = sadd.s32 %s210, %s208
        %s212 = scalar_lea.vmem %s2, %s211
      $region28: #{cvt_attention_forward.8} parent=15 // pred_fallthru
        _
    $region16: #{cvt_attention_forward.8} parent=5 // pred_fallthru
      _
    %p213 = scmp.le.s32.totalorder 1, %s9
    %p214 = scmp.lt.s32.totalorder %s9, 3
    %p215 = pnand %p213, %p214
    %p216 = pneg %p215
    // Predicated region
    $region29: #{cvt_attention_forward.8} parent=5 // pred_check
      _
    $region30: #{cvt_attention_forward.8} parent=5 // pred_check_branch
      %218 = sbr.rel (%p215) target = $region32
    $region31: #{cvt_attention_forward.8} parent=5 // pred_region
      %s219 = ssub.s32 %s9, 1
      %s220 = smul.u32 6, %s21
      %p221 = scmp.lt.s32.totalorder %s20, 1
      %s222 = scalar_select %p221, %s20, 1
      %p223 = scmp.lt.s32.totalorder %s220, 5
      %s224 = scalar_select %p223, %s220, 5
      %p225 = scmp.lt.s32.totalorder %s23, 0
      %s226 = scalar_select %p225, %s23, 0
      %s227 = sadd.s32 %s226, %s224
      %s228 = smul.addr %s222, 6
      %s229 = sadd.s32 %s227, %s228
      %s230 = smul.addr %s229, 4
      %s231 = scalar_lea.vmem %s0, %s230
      %p232 = pneg %p65
      %p233 = pneg %p62
      %s234 = smul.u32 16, %s23
      %p235 = scmp.lt.s32.totalorder %s20, 1
      %s236 = scalar_select %p235, %s20, 1
      %p237 = scmp.lt.s32.totalorder %s234, 15
      %s238 = scalar_select %p237, %s234, 15
      %p239 = scmp.lt.s32.totalorder %s22, 0
      %s240 = scalar_select %p239, %s22, 0
      %s241 = sadd.s32 %s240, %s238
      %s242 = smul.addr %s236, 16
      %s243 = sadd.s32 %s241, %s242
      %s244 = smul.addr %s243, 4
      %s245 = scalar_lea.vmem %s1, %s244
      %p246 = pneg %p95
      %p247 = pneg %p92
      %p248 = scmp.lt.s32.totalorder %s20, 1
      %s249 = scalar_select %p248, %s20, 1
      %p250 = scmp.lt.s32.totalorder %s22, 0
      %s251 = scalar_select %p250, %s22, 0
      %s252 = sadd.s32 %s251, %s249
      %s253 = scalar_lea.vmem %s2, %s252
      %p254 = pneg %p123
      %p255 = pneg %p120
      %p256 = pneg %p153
      %p257 = pneg %p150
      %s258 = smul.u32 6, %s21
      %p259 = scmp.lt.s32.totalorder %s20, 1
      %s260 = scalar_select %p259, %s20, 1
      %p261 = scmp.lt.s32.totalorder %s258, 5
      %s262 = scalar_select %p261, %s258, 5
      %p263 = scmp.lt.s32.totalorder %s22, 0
      %s264 = scalar_select %p263, %s22, 0
      %s265 = sadd.s32 %s264, %s262
      %s266 = smul.addr %s260, 6
      %s267 = sadd.s32 %s265, %s266
      %s268 = smul.addr %s267, 4
      %s269 = scalar_lea.vmem %s3, %s268
      %s270 = smul.u32 6, %s21
      %p271 = scmp.lt.s32.totalorder %s20, 1
      %s272 = scalar_select %p271, %s20, 1
      %p273 = scmp.lt.s32.totalorder %s270, 5
      %s274 = scalar_select %p273, %s270, 5
      %p275 = scmp.lt.s32.totalorder %s23, 0
      %s276 = scalar_select %p275, %s23, 0
      %s277 = sadd.s32 %s276, %s274
      %s278 = smul.addr %s272, 6
      %s279 = sadd.s32 %s277, %s278
      %s280 = smul.addr %s279, 4
      %s281 = scalar_lea.vmem %s0, %s280
      %s282 = smul.u32 6, %s21
      %s283 = smul.u32 16, %s23
      %p284 = scmp.lt.s32.totalorder %s20, 1
      %s285 = scalar_select %p284, %s20, 1
      %p286 = scmp.lt.s32.totalorder %s283, 15
      %s287 = scalar_select %p286, %s283, 15
      %p288 = scmp.lt.s32.totalorder %s22, 0
      %s289 = scalar_select %p288, %s22, 0
      %s290 = sadd.s32 %s289, %s287
      %s291 = smul.addr %s285, 16
      %s292 = sadd.s32 %s290, %s291
      %s293 = smul.addr %s292, 4
      %s294 = scalar_lea.vmem %s1, %s293
      %s295 = smul.u32 16, %s23
      %p296 = scmp.lt.s32.totalorder %s20, 1
      %s297 = scalar_select %p296, %s20, 1
      %p298 = scmp.lt.s32.totalorder %s22, 0
      %s299 = scalar_select %p298, %s22, 0
      %s300 = sadd.s32 %s299, %s297
      %s301 = scalar_lea.vmem %s2, %s300
      %s302 = smul.u32 6, %s21
      %p303 = scmp.lt.s32.totalorder %s20, 1
      %s304 = scalar_select %p303, %s20, 1
      %p305 = scmp.lt.s32.totalorder %s302, 5
      %s306 = scalar_select %p305, %s302, 5
      %p307 = scmp.lt.s32.totalorder %s22, 0
      %s308 = scalar_select %p307, %s22, 0
      %s309 = sadd.s32 %s308, %s306
      %s310 = smul.addr %s304, 6
      %s311 = sadd.s32 %s309, %s310
      %s312 = smul.addr %s311, 4
      %s313 = scalar_lea.vmem %s3, %s312
      %s314 = smul.u32 6, %s21
      %p316 = scmp.eq.s32.totalorder %s23, 0
      // Predicated region
      $region33: #{cvt_attention_forward.8} parent=31 // pred_check
        %p317 = pneg %p316
      $region34: #{cvt_attention_forward.8} parent=31 // pred_check_branch
        %319 = sbr.rel (%p317) target = $region36
      $region35: #{cvt_attention_forward.8} parent=31 // pred_region
        %320 = vst [vmem:[#allocation2] sm:$0xff] 0.0
        %321 = vst [vmem:[#allocation2 + $0x8] sm:$0xff] 0.0
        %322 = vst [vmem:[#allocation2 + $0x10] sm:$0xff] 0.0
        %323 = vst [vmem:[#allocation2 + $0x18] sm:$0xff] 0.0
        %324 = vst [vmem:[#allocation2 + $0x20] sm:$0xff] 0.0
        %325 = vst [vmem:[#allocation2 + $0x28] sm:$0xff] 0.0
      $region36: #{cvt_attention_forward.8} parent=31 // pred_fallthru
        _
      %v326 = vld [vmem:[#allocation2] sm:$0xff]
      %v327 = vld [vmem:[#allocation2 + $0x8] sm:$0xff]
      %v328 = vld [vmem:[#allocation2 + $0x10] sm:$0xff]
      %v329 = vld [vmem:[#allocation2 + $0x18] sm:$0xff]
      %v330 = vld [vmem:[#allocation2 + $0x20] sm:$0xff]
      %v331 = vld [vmem:[#allocation2 + $0x28] sm:$0xff]
      %v332 = vld [vmem:[%s281] sm:$0xf]
      %v333 = vld [vmem:[%s281 + $0x4] sm:$0xf]
      %v334 = vld [vmem:[%s281 + $0x8] sm:$0xf]
      %v335 = vld [vmem:[%s281 + $0xc] sm:$0xf]
      %v336 = vld [vmem:[%s281 + $0x10] sm:$0xf]
      %v337 = vld [vmem:[%s281 + $0x14] sm:$0xf]
      %v338 = vld [vmem:[%s294] sm:$0xf]
      %v339 = vld [vmem:[%s294 + $0x4] sm:$0xf]
      %v340 = vld [vmem:[%s294 + $0x8] sm:$0xf]
      %v341 = vld [vmem:[%s294 + $0xc] sm:$0xf]
      %v342 = vld [vmem:[%s294 + $0x10] sm:$0xf]
      %v343 = vld [vmem:[%s294 + $0x14] sm:$0xf]
      %v344 = vld [vmem:[%s294 + $0x18] sm:$0xf]
      %v345 = vld [vmem:[%s294 + $0x1c] sm:$0xf]
      %v346 = vld [vmem:[%s294 + $0x20] sm:$0xf]
      %v347 = vld [vmem:[%s294 + $0x24] sm:$0xf]
      %v348 = vld [vmem:[%s294 + $0x28] sm:$0xf]
      %v349 = vld [vmem:[%s294 + $0x2c] sm:$0xf]
      %v350 = vld [vmem:[%s294 + $0x30] sm:$0xf]
      %v351 = vld [vmem:[%s294 + $0x34] sm:$0xf]
      %v352 = vld [vmem:[%s294 + $0x38] sm:$0xf]
      %v353 = vld [vmem:[%s294 + $0x3c] sm:$0xf]
      %v360 = vunpack.c.l.b16 %v332
      %v361 = vunpack.c.l.b16 %v333
      %v362 = vunpack.c.l.b16 %v334
      %v363 = vunpack.c.l.b16 %v335
      %v364 = vunpack.c.l.b16 %v336
      %v365 = vunpack.c.l.b16 %v337
      %v366 = vpack.c.b16 %v361, %v360
      %v367 = vpack.c.b16 %v363, %v362
      %v368 = vpack.c.b16 %v365, %v364
      %v388 = vunpack.c.l.b16 %v338
      %v389 = vunpack.c.l.b16 %v339
      %v390 = vunpack.c.l.b16 %v340
      %v391 = vunpack.c.l.b16 %v341
      %v392 = vunpack.c.l.b16 %v342
      %v393 = vunpack.c.l.b16 %v343
      %v394 = vunpack.c.l.b16 %v344
      %v395 = vunpack.c.l.b16 %v345
      %v396 = vunpack.c.l.b16 %v346
      %v397 = vunpack.c.l.b16 %v347
      %v398 = vunpack.c.l.b16 %v348
      %v399 = vunpack.c.l.b16 %v349
      %v400 = vunpack.c.l.b16 %v350
      %v401 = vunpack.c.l.b16 %v351
      %v402 = vunpack.c.l.b16 %v352
      %v403 = vunpack.c.l.b16 %v353
      %v404 = vpack.c.b16 %v389, %v388
      %v405 = vpack.c.b16 %v391, %v390
      %v406 = vpack.c.b16 %v393, %v392
      %v407 = vpack.c.b16 %v395, %v394
      %v408 = vpack.c.b16 %v397, %v396
      %v409 = vpack.c.b16 %v399, %v398
      %v410 = vpack.c.b16 %v401, %v400
      %v411 = vpack.c.b16 %v403, %v402
      %420 = vmatprep.subr.bf16.mxu0 0
      %421 = vmatpush1.bf16.msra.mxu0 %v411
      %422 = vmatprep.subr.bf16.mxu0 0
      %423 = vmatpush1.bf16.msra.mxu0 %v410
      %424 = vmatprep.subr.bf16.mxu0 0
      %425 = vmatpush1.bf16.msra.mxu0 %v409
      %426 = vmatprep.subr.bf16.mxu0 0
      %427 = vmatpush1.bf16.msra.mxu0 %v408
      %428 = vmatprep.subr.bf16.mxu0 0
      %429 = vmatpush1.bf16.msra.mxu0 %v407
      %430 = vmatprep.subr.bf16.mxu0 0
      %431 = vmatpush1.bf16.msra.mxu0 %v406
      %432 = vmatprep.subr.bf16.mxu0 0
      %433 = vmatpush1.bf16.msra.mxu0 %v405
      %434 = vmatprep.subr.bf16.mxu0 0
      %435 = vmatpush1.bf16.msra.mxu0 %v404
      %436 = vmatprep.subr.bf16.mxu0 0
      %437 = vmatpush2.bf16.msra.mxu0 0
      %438 = vmatprep.subr.bf16.mxu0 0
      %439 = vmatpush2.bf16.msra.mxu0 0
      %440 = vmatprep.subr.bf16.mxu0 0
      %441 = vmatpush2.bf16.msra.mxu0 0
      %442 = vmatprep.subr.bf16.mxu0 0
      %443 = vmatpush2.bf16.msra.mxu0 0
      %444 = vmatprep.subr.bf16.mxu0 0
      %445 = vmatpush2.bf16.msra.mxu0 0
      %446 = vmatprep.subr.bf16.mxu0 0
      %447 = vmatpush2.bf16.msra.mxu0 0
      %448 = vmatprep.subr.bf16.mxu0 0
      %449 = vmatpush2.bf16.msra.mxu0 0
      %450 = vmatprep.subr.bf16.mxu0 0
      %451 = vmatpush2.bf16.msra.mxu0 0
      %452 = vmatprep.mubr.bf16.mxu0 0
      %453 = vmatmul.mubr.bf16.gmra.mxu0 %v366
      %v454 = vpop.f32.mrf.mxu0
      %v455 = vadd.f32 0.0, %v454
      %v456 = vpop.f32.mrf.mxu0
      %v457 = vpop.f32.mrf.mxu0
      %v458 = vadd.f32 0.0, %v457
      %v459 = vpop.f32.mrf.mxu0
      %460 = vmatprep.mubr.bf16.mxu0 0
      %461 = vmatmul.mubr.bf16.gmra.mxu0 %v367
      %v462 = vpop.f32.mrf.mxu0
      %v463 = vadd.f32 0.0, %v462
      %v464 = vpop.f32.mrf.mxu0
      %v465 = vpop.f32.mrf.mxu0
      %v466 = vadd.f32 0.0, %v465
      %v467 = vpop.f32.mrf.mxu0
      %468 = vmatprep.mubr.bf16.mxu0 0
      %469 = vmatmul.mubr.bf16.gmra.mxu0 %v368
      %v470 = vpop.f32.mrf.mxu0
      %v471 = vadd.f32 0.0, %v470
      %v472 = vpop.f32.mrf.mxu0
      %v473 = vpop.f32.mrf.mxu0
      %v474 = vadd.f32 0.0, %v473
      %v475 = vpop.f32.mrf.mxu0
      %476 = vdwg.mxu0
      %v477 = vadd.f32 %v326, %v455
      %v478 = vadd.f32 %v327, %v458
      %v479 = vadd.f32 %v328, %v463
      %v480 = vadd.f32 %v329, %v466
      %v481 = vadd.f32 %v330, %v471
      %v482 = vadd.f32 %v331, %v474
      %483 = vst [vmem:[#allocation2] sm:$0xff] %v477
      %484 = vst [vmem:[#allocation2 + $0x8] sm:$0xff] %v478
      %485 = vst [vmem:[#allocation2 + $0x10] sm:$0xff] %v479
      %486 = vst [vmem:[#allocation2 + $0x18] sm:$0xff] %v480
      %487 = vst [vmem:[#allocation2 + $0x20] sm:$0xff] %v481
      %488 = vst [vmem:[#allocation2 + $0x28] sm:$0xff] %v482
      // Predicated region
      $region37: #{cvt_attention_forward.8} parent=31 // pred_check
        %p489 = pneg %p316
      $region38: #{cvt_attention_forward.8} parent=31 // pred_check_branch
        %491 = sbr.rel (%p489) target = $region40
      $region39: #{cvt_attention_forward.8} parent=31 // pred_region
        %v492 = vld [vmem:[#allocation2] sm:$0xff]
        %v493 = vld [vmem:[#allocation2 + $0x8] sm:$0xff]
        %v494 = vld [vmem:[#allocation2 + $0x10] sm:$0xff]
        %v495 = vld [vmem:[#allocation2 + $0x18] sm:$0xff]
        %v496 = vld [vmem:[#allocation2 + $0x20] sm:$0xff]
        %v497 = vld [vmem:[#allocation2 + $0x28] sm:$0xff]
        %v498 = vld [vmem:[%s301] sm:$0x1]
        %v500 = vlaneseq
        %v501 = vshrl.u32 %v500, 7
        %v502 = vsub.s32 0, %v501
        %v503 = vrot.slane %v498, %v502
        %v505 = vadd.f32 %v492, %v503
        %v506 = vadd.f32 %v493, %v503
        %v507 = vadd.f32 %v494, %v503
        %v508 = vadd.f32 %v495, %v503
        %v509 = vadd.f32 %v496, %v503
        %v510 = vadd.f32 %v497, %v503
        %v511 = vpack.c.bf16 %v506, %v505
        %v512 = vpack.c.bf16 %v508, %v507
        %v513 = vpack.c.bf16 %v510, %v509
        %v517 = vunpack.c.l.b16 %v511
        %v518 = vunpack.c.h.b16 %v511
        %v519 = vunpack.c.l.b16 %v512
        %v520 = vunpack.c.h.b16 %v512
        %v521 = vunpack.c.l.b16 %v513
        %v522 = vunpack.c.h.b16 %v513
        %v523 = vpack.c.b16 %v517, %v517
        %v524 = vpack.c.b16 %v518, %v518
        %v525 = vpack.c.b16 %v519, %v519
        %v526 = vpack.c.b16 %v520, %v520
        %v527 = vpack.c.b16 %v521, %v521
        %v528 = vpack.c.b16 %v522, %v522
        %535 = vst [vmem:[%s313] sm:$0xf] %v523
        %536 = vst [vmem:[%s313 + $0x4] sm:$0xf] %v524
        %537 = vst [vmem:[%s313 + $0x8] sm:$0xf] %v525
        %538 = vst [vmem:[%s313 + $0xc] sm:$0xf] %v526
        %539 = vst [vmem:[%s313 + $0x10] sm:$0xf] %v527
        %540 = vst [vmem:[%s313 + $0x14] sm:$0xf] %v528
      $region40: #{cvt_attention_forward.8} parent=31 // pred_fallthru
        _
      %s541 = smul.u32 6, %s21
      %p542 = scmp.lt.s32.totalorder %s20, 1
      %s543 = scalar_select %p542, %s20, 1
      %p544 = scmp.lt.s32.totalorder %s541, 5
      %s545 = scalar_select %p544, %s541, 5
      %p546 = scmp.lt.s32.totalorder %s22, 0
      %s547 = scalar_select %p546, %s22, 0
      %s548 = sadd.s32 %s547, %s545
      %s549 = smul.addr %s543, 6
      %s550 = sadd.s32 %s548, %s549
      %s551 = smul.addr %s550, 4
      %s552 = scalar_lea.vmem %s3, %s551
      // Predicated region
      $region41: #{cvt_attention_forward.8} parent=31 // pred_check
        %p553 = pneg %p150
      $region42: #{cvt_attention_forward.8} parent=31 // pred_check_branch
        %555 = sbr.rel (%p553) target = $region44
      $region43: #{cvt_attention_forward.8} parent=31 // pred_region
        %s556 = smul.u32 6, %s21
      $region44: #{cvt_attention_forward.8} parent=31 // pred_fallthru
        _
    $region32: #{cvt_attention_forward.8} parent=5 // pred_fallthru
      _
    %p557 = scmp.le.s32.totalorder 2, %s9
    // Predicated region
    $region45: #{cvt_attention_forward.8} parent=5 // pred_check
      %p558 = pneg %p557
    $region46: #{cvt_attention_forward.8} parent=5 // pred_check_branch
      %560 = sbr.rel (%p558) target = $region48
    $region47: #{cvt_attention_forward.8} parent=5 // pred_region
      %s561 = ssub.s32 %s9, 2
      // Predicated region
      $region49: #{cvt_attention_forward.8} parent=47 // pred_check
        %p562 = pneg %p156
      $region50: #{cvt_attention_forward.8} parent=47 // pred_check_branch
        %564 = sbr.rel (%p562) target = $region52
      $region51: #{cvt_attention_forward.8} parent=47 // pred_region
        %s565 = smul.u32 6, %s25
        %p566 = scmp.lt.s32.totalorder %s24, 1
        %s567 = scalar_select %p566, %s24, 1
        %p568 = scmp.lt.s32.totalorder %s565, 5
        %s569 = scalar_select %p568, %s565, 5
        %p570 = scmp.lt.s32.totalorder %s26, 0
        %s571 = scalar_select %p570, %s26, 0
        %s572 = sadd.s32 %s571, %s569
        %s573 = smul.addr %s567, 6
        %s574 = sadd.s32 %s572, %s573
        %s575 = smul.addr %s574, 4
        %s576 = scalar_lea.vmem %s3, %s575
      $region52: #{cvt_attention_forward.8} parent=47 // pred_fallthru
        _
    $region48: #{cvt_attention_forward.8} parent=5 // pred_fallthru
      _
  $region6: #{cvt_attention_forward.8} parent=0 // loop_footer
    %s13 = sadd.s32 1, %s9
  $region7: #{cvt_attention_forward.8} parent=0 // loop_footer_branch
    %8 = sbr.rel target = $region3
  $region8: #{cvt_attention_forward.8} parent=0 // loop_exit
    _

// kernel: cvt_attention_forward.9
$region0: #{cvt_attention_forward.9}
  #allocation0 [shape = 'u32[]', space=smem, size = 0x4, offset = 0x4, fixed_abs, tag = 'smem constant byte address 0x4 - core index']
  #allocation1 [shape = 'u32[144,128]{1,0:T(1,128)}', space=vmem, size = 0x12000, scoped, tag = 'internal scratch']
  %s0 = inlined_call_operand.vmem [shape: bf16[2,80,128], index: 0, kind: input, shape index: {}]
  %s1 = inlined_call_operand.vmem [shape: bf16[2,17,128], index: 1, kind: input, shape index: {}]
  %s2 = inlined_call_operand.vmem [shape: bf16[2,17,128], index: 2, kind: input, shape index: {}]
  %s3 = inlined_call_operand.vmem [shape: bf16[128,128], index: 3, kind: input, shape index: {}]
  %s4 = inlined_call_operand.vmem [shape: f32[1,128], index: 4, kind: input, shape index: {}]
  %s5 = inlined_call_operand.vmem [shape: f32[2,80,128], index: 5, kind: output, shape index: {}]
  %s6 = sld [smem:[#allocation0]]
  $region53: #{cvt_attention_forward.9} parent=0
    _
  %s8 = ssub.s32 1, %s6
  %s9 = scalar_select 0, %s8, %s6
  loop: start=0, step=1, limit=4
  $region2: #{cvt_attention_forward.9} parent=0 // loop_pre_header
    _
  $region3: #{cvt_attention_forward.9} parent=0 // loop_header
    %s11 = sphi 0, %s15
    %p12 = scmp.ge.s32.totalorder %s11, 4
    %s18 = sphi 0, %s30
    %s19 = sphi 0, %s26
    %s20 = sphi 0, %s18
    %s21 = sphi 0, %s19
    %s22 = sphi 0, %s20
    %s23 = sphi 0, %s21
    %s35 = sphi 0, %s37
    %s38 = sphi 0, %s35
    %s39 = sphi 0, %s38
    %s55 = sphi 0, %s39
    %s61 = sphi 0, %s63
    %s64 = sphi 0, %s61
    %s65 = sphi 0, %s64
    %s81 = sphi 0, %s65
    %s87 = sphi 0, %s89
    %s90 = sphi 0, %s87
    %s91 = sphi 0, %s90
    %s107 = sphi 0, %s91
    %s111 = sphi 0, %s111
    %s113 = sphi 0, %s111
    %s114 = sphi 0, %s113
    %s128 = sphi 0, %s114
    %s132 = sphi 0, %s132
    %s134 = sphi 0, %s132
    %s135 = sphi 0, %s134
    %s149 = sphi 0, %s135
    %s157 = sphi 0, %s159
    %s160 = sphi 0, %s157
    %s161 = sphi 0, %s160
    %s177 = sphi 0, %s161
  $region4: #{cvt_attention_forward.9} parent=0 // loop_header_branch
    %14 = sbr.rel (%p12) target = $region8
  $region5: #{cvt_attention_forward.9} parent=0 // loop_body
    %s16 = ssub.s32 %s11, 1
    %s17 = ssub.s32 %s11, 2
    %s24 = sadd.s32 1, %s19
    %p25 = scmp.ge.s32.totalorder %s24, 1
    %s26 = scalar_select %p25, 0, %s24
    %s27 = sadd.s32 1, %s18
    %s28 = scalar_select %p25, %s27, %s18
    %p29 = scmp.ge.s32.totalorder %s28, 2
    %s30 = scalar_select %p29, 0, %s28
    %s31 = ssub.s32 %s18, %s30
    %s32 = ssub.s32 %s19, %s26
    %s33 = sor.u32 %s31, %s32
    %p34 = scmp.eq.s32.totalorder %s33, 0
    %s36 = sadd.s32 %s35, 1
    %s37 = scalar_select %p34, %s35, %s36
    %p40 = pneg %p34
    %p41 = scmp.eq.s32.totalorder %s11, 1
    %p42 = por %p40, %p41
    %p43 = scmp.ne.s32.totalorder %s35, %s38
    %p44 = scmp.eq.s32.totalorder %s11, 0
    %p45 = por %p43, %p44
    %p46 = scmp.ne.s32.totalorder %s35, %s38
    %p47 = scmp.eq.s32.totalorder %s16, 1
    %p48 = por %p46, %p47
    %p49 = scmp.ne.s32.totalorder %s38, %s39
    %p50 = scmp.eq.s32.totalorder %s16, 0
    %p51 = por %p49, %p50
    %p52 = scmp.ne.s32.totalorder %s38, %s39
    %p53 = scmp.eq.s32.totalorder %s17, 1
    %p54 = por %p52, %p53
    %p56 = scmp.ne.s32.totalorder %s39, %s55
    %p57 = scmp.eq.s32.totalorder %s17, 0
    %p58 = por %p56, %p57
    %s59 = ssub.s32 %s18, %s30
    %p60 = scmp.eq.s32.totalorder %s59, 0
    %s62 = sadd.s32 %s61, 1
    %s63 = scalar_select %p60, %s61, %s62
    %p66 = pneg %p60
    %p67 = scmp.eq.s32.totalorder %s11, 1
    %p68 = por %p66, %p67
    %p69 = scmp.ne.s32.totalorder %s61, %s64
    %p70 = scmp.eq.s32.totalorder %s11, 0
    %p71 = por %p69, %p70
    %p72 = scmp.ne.s32.totalorder %s61, %s64
    %p73 = scmp.eq.s32.totalorder %s16, 1
    %p74 = por %p72, %p73
    %p75 = scmp.ne.s32.totalorder %s64, %s65
    %p76 = scmp.eq.s32.totalorder %s16, 0
    %p77 = por %p75, %p76
    %p78 = scmp.ne.s32.totalorder %s64, %s65
    %p79 = scmp.eq.s32.totalorder %s17, 1
    %p80 = por %p78, %p79
    %p82 = scmp.ne.s32.totalorder %s65, %s81
    %p83 = scmp.eq.s32.totalorder %s17, 0
    %p84 = por %p82, %p83
    %s85 = ssub.s32 %s18, %s30
    %p86 = scmp.eq.s32.totalorder %s85, 0
    %s88 = sadd.s32 %s87, 1
    %s89 = scalar_select %p86, %s87, %s88
    %p92 = pneg %p86
    %p93 = scmp.eq.s32.totalorder %s11, 1
    %p94 = por %p92, %p93
    %p95 = scmp.ne.s32.totalorder %s87, %s90
    %p96 = scmp.eq.s32.totalorder %s11, 0
    %p97 = por %p95, %p96
    %p98 = scmp.ne.s32.totalorder %s87, %s90
    %p99 = scmp.eq.s32.totalorder %s16, 1
    %p100 = por %p98, %p99
    %p101 = scmp.ne.s32.totalorder %s90, %s91
    %p102 = scmp.eq.s32.totalorder %s16, 0
    %p103 = por %p101, %p102
    %p104 = scmp.ne.s32.totalorder %s90, %s91
    %p105 = scmp.eq.s32.totalorder %s17, 1
    %p106 = por %p104, %p105
    %p108 = scmp.ne.s32.totalorder %s91, %s107
    %p109 = scmp.eq.s32.totalorder %s17, 0
    %p110 = por %p108, %p109
    %s112 = sadd.s32 %s111, 1
    %p115 = scmp.eq.s32.totalorder %s11, 1
    %p116 = scmp.ne.s32.totalorder %s111, %s113
    %p117 = scmp.eq.s32.totalorder %s11, 0
    %p118 = por %p116, %p117
    %p119 = scmp.ne.s32.totalorder %s111, %s113
    %p120 = scmp.eq.s32.totalorder %s16, 1
    %p121 = por %p119, %p120
    %p122 = scmp.ne.s32.totalorder %s113, %s114
    %p123 = scmp.eq.s32.totalorder %s16, 0
    %p124 = por %p122, %p123
    %p125 = scmp.ne.s32.totalorder %s113, %s114
    %p126 = scmp.eq.s32.totalorder %s17, 1
    %p127 = por %p125, %p126
    %p129 = scmp.ne.s32.totalorder %s114, %s128
    %p130 = scmp.eq.s32.totalorder %s17, 0
    %p131 = por %p129, %p130
    %s133 = sadd.s32 %s132, 1
    %p136 = scmp.eq.s32.totalorder %s11, 1
    %p137 = scmp.ne.s32.totalorder %s132, %s134
    %p138 = scmp.eq.s32.totalorder %s11, 0
    %p139 = por %p137, %p138
    %p140 = scmp.ne.s32.totalorder %s132, %s134
    %p141 = scmp.eq.s32.totalorder %s16, 1
    %p142 = por %p140, %p141
    %p143 = scmp.ne.s32.totalorder %s134, %s135
    %p144 = scmp.eq.s32.totalorder %s16, 0
    %p145 = por %p143, %p144
    %p146 = scmp.ne.s32.totalorder %s134, %s135
    %p147 = scmp.eq.s32.totalorder %s17, 1
    %p148 = por %p146, %p147
    %p150 = scmp.ne.s32.totalorder %s135, %s149
    %p151 = scmp.eq.s32.totalorder %s17, 0
    %p152 = por %p150, %p151
    %s153 = ssub.s32 %s18, %s30
    %s154 = ssub.s32 %s19, %s26
    %s155 = sor.u32 %s153, %s154
    %p156 = scmp.eq.s32.totalorder %s155, 0
    %s158 = sadd.s32 %s157, 1
    %s159 = scalar_select %p156, %s157, %s158
    %p162 = pneg %p156
    %p163 = scmp.eq.s32.totalorder %s11, 1
    %p164 = por %p162, %p163
    %p165 = scmp.ne.s32.totalorder %s157, %s160
    %p166 = scmp.eq.s32.totalorder %s11, 0
    %p167 = por %p165, %p166
    %p168 = scmp.ne.s32.totalorder %s157, %s160
    %p169 = scmp.eq.s32.totalorder %s16, 1
    %p170 = por %p168, %p169
    %p171 = scmp.ne.s32.totalorder %s160, %s161
    %p172 = scmp.eq.s32.totalorder %s16, 0
    %p173 = por %p171, %p172
    %p174 = scmp.ne.s32.totalorder %s160, %s161
    %p175 = scmp.eq.s32.totalorder %s17, 1
    %p176 = por %p174, %p175
    %p178 = scmp.ne.s32.totalorder %s161, %s177
    %p179 = scmp.eq.s32.totalorder %s17, 0
    %p180 = por %p178, %p179
    %p181 = scmp.le.s32.totalorder 1, %s11
    %p182 = scmp.lt.s32.totalorder %s11, 3
    %p183 = pnand %p181, %p182
    %p184 = pneg %p183
    // Predicated region
    $region9: #{cvt_attention_forward.9} parent=5 // pred_check
      _
    $region10: #{cvt_attention_forward.9} parent=5 // pred_check_branch
      %186 = sbr.rel (%p183) target = $region12
    $region11: #{cvt_attention_forward.9} parent=5 // pred_region
      %s187 = ssub.s32 %s11, 1
      // Predicated region
      $region13: #{cvt_attention_forward.9} parent=11 // pred_check
        %p188 = pneg %p124
      $region14: #{cvt_attention_forward.9} parent=11 // pred_check_branch
        %190 = sbr.rel (%p188) target = $region16
      $region15: #{cvt_attention_forward.9} parent=11 // pred_region
        _
      $region16: #{cvt_attention_forward.9} parent=11 // pred_fallthru
        _
      // Predicated region
      $region17: #{cvt_attention_forward.9} parent=11 // pred_check
        %p191 = pneg %p145
      $region18: #{cvt_attention_forward.9} parent=11 // pred_check_branch
        %193 = sbr.rel (%p191) target = $region20
      $region19: #{cvt_attention_forward.9} parent=11 // pred_region
        _
      $region20: #{cvt_attention_forward.9} parent=11 // pred_fallthru
        _
    $region12: #{cvt_attention_forward.9} parent=5 // pred_fallthru
      _
    %p194 = scmp.lt.s32.totalorder %s11, 2
    // Predicated region
    $region21: #{cvt_attention_forward.9} parent=5 // pred_check
      %p195 = pneg %p194
    $region22: #{cvt_attention_forward.9} parent=5 // pred_check_branch
      %197 = sbr.rel (%p195) target = $region24
    $region23: #{cvt_attention_forward.9} parent=5 // pred_region
      // Predicated region
      $region25: #{cvt_attention_forward.9} parent=23 // pred_check
        %p198 = pneg %p45
      $region26: #{cvt_attention_forward.9} parent=23 // pred_check_branch
        %200 = sbr.rel (%p198) target = $region28
      $region27: #{cvt_attention_forward.9} parent=23 // pred_region
        %s201 = smul.u32 10, %s19
        %p202 = scmp.lt.s32.totalorder %s18, 1
        %s203 = scalar_select %p202, %s18, 1
        %p204 = scmp.lt.s32.totalorder %s201, 9
        %s205 = scalar_select %p204, %s201, 9
        %s206 = smul.addr %s203, 10
        %s207 = sadd.s32 %s205, %s206
        %s208 = smul.addr %s207, 4
        %s209 = scalar_lea.vmem %s0, %s208
        %s210 = smul.u32 10, %s19
      $region28: #{cvt_attention_forward.9} parent=23 // pred_fallthru
        _
      // Predicated region
      $region29: #{cvt_attention_forward.9} parent=23 // pred_check
        %p211 = pneg %p71
      $region30: #{cvt_attention_forward.9} parent=23 // pred_check_branch
        %213 = sbr.rel (%p211) target = $region32
      $region31: #{cvt_attention_forward.9} parent=23 // pred_region
        %p214 = scmp.lt.s32.totalorder %s18, 1
        %s215 = scalar_select %p214, %s18, 1
        %s216 = smul.addr %s215, 3
        %s217 = smul.addr %s216, 4
        %s218 = scalar_lea.vmem %s1, %s217
      $region32: #{cvt_attention_forward.9} parent=23 // pred_fallthru
        _
      // Predicated region
      $region33: #{cvt_attention_forward.9} parent=23 // pred_check
        %p219 = pneg %p97
      $region34: #{cvt_attention_forward.9} parent=23 // pred_check_branch
        %221 = sbr.rel (%p219) target = $region36
      $region35: #{cvt_attention_forward.9} parent=23 // pred_region
        %p222 = scmp.lt.s32.totalorder %s18, 1
        %s223 = scalar_select %p222, %s18, 1
        %s224 = smul.addr %s223, 3
        %s225 = smul.addr %s224, 4
        %s226 = scalar_lea.vmem %s2, %s225
      $region36: #{cvt_attention_forward.9} parent=23 // pred_fallthru
        _
    $region24: #{cvt_attention_forward.9} parent=5 // pred_fallthru
      _
    %p227 = scmp.le.s32.totalorder 1, %s11
    %p228 = scmp.lt.s32.totalorder %s11, 3
    %p229 = pnand %p227, %p228
    %p230 = pneg %p229
    // Predicated region
    $region37: #{cvt_attention_forward.9} parent=5 // pred_check
      _
    $region38: #{cvt_attention_forward.9} parent=5 // pred_check_branch
      %232 = sbr.rel (%p229) target = $region40
    $region39: #{cvt_attention_forward.9} parent=5 // pred_region
      %s233 = ssub.s32 %s11, 1
      %s234 = smul.u32 10, %s21
      %p235 = scmp.lt.s32.totalorder %s20, 1
      %s236 = scalar_select %p235, %s20, 1
      %p237 = scmp.lt.s32.totalorder %s234, 9
      %s238 = scalar_select %p237, %s234, 9
      %s239 = smul.addr %s236, 10
      %s240 = sadd.s32 %s238, %s239
      %s241 = smul.addr %s240, 4
      %s242 = scalar_lea.vmem %s0, %s241
      %p243 = pneg %p51
      %p244 = pneg %p48
      %p245 = scmp.lt.s32.totalorder %s20, 1
      %s246 = scalar_select %p245, %s20, 1
      %s247 = smul.addr %s246, 3
      %s248 = smul.addr %s247, 4
      %s249 = scalar_lea.vmem %s1, %s248
      %p250 = pneg %p77
      %p251 = pneg %p74
      %p252 = scmp.lt.s32.totalorder %s20, 1
      %s253 = scalar_select %p252, %s20, 1
      %s254 = smul.addr %s253, 3
      %s255 = smul.addr %s254, 4
      %s256 = scalar_lea.vmem %s2, %s255
      %p257 = pneg %p103
      %p258 = pneg %p100
      %p259 = pneg %p124
      %p260 = pneg %p121
      %p261 = pneg %p145
      %p262 = pneg %p142
      %p263 = pneg %p173
      %p264 = pneg %p170
      %s265 = smul.u32 10, %s21
      %p266 = scmp.lt.s32.totalorder %s20, 1
      %s267 = scalar_select %p266, %s20, 1
      %p268 = scmp.lt.s32.totalorder %s265, 9
      %s269 = scalar_select %p268, %s265, 9
      %s270 = smul.addr %s267, 10
      %s271 = sadd.s32 %s269, %s270
      %s272 = smul.addr %s271, 8
      %s273 = scalar_lea.vmem %s5, %s272
      %s274 = smul.u32 10, %s21
      %p275 = scmp.lt.s32.totalorder %s20, 1
      %s276 = scalar_select %p275, %s20, 1
      %p277 = scmp.lt.s32.totalorder %s274, 9
      %s278 = scalar_select %p277, %s274, 9
      %s279 = smul.addr %s276, 10
      %s280 = sadd.s32 %s278, %s279
      %s281 = smul.addr %s280, 4
      %s282 = scalar_lea.vmem %s0, %s281
      %s283 = smul.u32 10, %s21
      %p284 = scmp.lt.s32.totalorder %s20, 1
      %s285 = scalar_select %p284, %s20, 1
      %s286 = smul.addr %s285, 3
      %s287 = smul.addr %s286, 4
      %s288 = scalar_lea.vmem %s1, %s287
      %p289 = scmp.lt.s32.totalorder %s20, 1
      %s290 = scalar_select %p289, %s20, 1
      %s291 = smul.addr %s290, 3
      %s292 = smul.addr %s291, 4
      %s293 = scalar_lea.vmem %s2, %s292
      %s294 = smul.u32 10, %s21
      %p295 = scmp.lt.s32.totalorder %s20, 1
      %s296 = scalar_select %p295, %s20, 1
      %p297 = scmp.lt.s32.totalorder %s294, 9
      %s298 = scalar_select %p297, %s294, 9
      %s299 = smul.addr %s296, 10
      %s300 = sadd.s32 %s298, %s299
      %s301 = smul.addr %s300, 8
      %s302 = scalar_lea.vmem %s5, %s301
      %s303 = smul.u32 10, %s21
      %v305 = vld [vmem:[%s282] sm:$0xf]
      %v306 = vld [vmem:[%s282 + $0x4] sm:$0xf]
      %v307 = vld [vmem:[%s282 + $0x8] sm:$0xf]
      %v308 = vld [vmem:[%s282 + $0xc] sm:$0xf]
      %v309 = vld [vmem:[%s282 + $0x10] sm:$0xf]
      %v310 = vld [vmem:[%s282 + $0x14] sm:$0xf]
      %v311 = vld [vmem:[%s282 + $0x18] sm:$0xf]
      %v312 = vld [vmem:[%s282 + $0x1c] sm:$0xf]
      %v313 = vld [vmem:[%s282 + $0x20] sm:$0xf]
      %v314 = vld [vmem:[%s282 + $0x24] sm:$0xf]
      %v315 = vld [vmem:[%s288] sm:$0xf]
      %v316 = vld [vmem:[%s288 + $0x4] sm:$0xf]
      %v317 = vld [vmem:[%s288 + $0x8] sm:$0x1]
      %v318 = vld [vmem:[%s293] sm:$0xf]
      %v319 = vld [vmem:[%s293 + $0x4] sm:$0xf]
      %v320 = vld [vmem:[%s293 + $0x8] sm:$0x1]
      %v321 = vld [vmem:[%s3] sm:$0xf]
      %v322 = vld [vmem:[%s3 + $0x4] sm:$0xf]
      %v323 = vld [vmem:[%s3 + $0x8] sm:$0xf]
      %v324 = vld [vmem:[%s3 + $0xc] sm:$0xf]
      %v325 = vld [vmem:[%s3 + $0x10] sm:$0xf]
      %v326 = vld [vmem:[%s3 + $0x14] sm:$0xf]
      %v327 = vld [vmem:[%s3 + $0x18] sm:$0xf]
      %v328 = vld [vmem:[%s3 + $0x1c] sm:$0xf]
      %v329 = vld [vmem:[%s3 + $0x20] sm:$0xf]
      %v330 = vld [vmem:[%s3 + $0x24] sm:$0xf]
      %v331 = vld [vmem:[%s3 + $0x28] sm:$0xf]
      %v332 = vld [vmem:[%s3 + $0x2c] sm:$0xf]
      %v333 = vld [vmem:[%s3 + $0x30] sm:$0xf]
      %v334 = vld [vmem:[%s3 + $0x34] sm:$0xf]
      %v335 = vld [vmem:[%s3 + $0x38] sm:$0xf]
      %v336 = vld [vmem:[%s3 + $0x3c] sm:$0xf]
      %v347 = vunpack.c.l.b16 %v305
      %v348 = vunpack.c.l.b16 %v306
      %v349 = vunpack.c.l.b16 %v307
      %v350 = vunpack.c.l.b16 %v308
      %v351 = vunpack.c.l.b16 %v309
      %v352 = vunpack.c.l.b16 %v310
      %v353 = vunpack.c.l.b16 %v311
      %v354 = vunpack.c.l.b16 %v312
      %v355 = vunpack.c.l.b16 %v313
      %v356 = vunpack.c.l.b16 %v314
      %v357 = vpack.c.b16 %v348, %v347
      %v358 = vpack.c.b16 %v350, %v349
      %v359 = vpack.c.b16 %v352, %v351
      %v360 = vpack.c.b16 %v354, %v353
      %v361 = vpack.c.b16 %v356, %v355
      %v365 = vunpack.c.l.b16 %v315
      %v366 = vunpack.c.l.b16 %v316
      %v367 = vunpack.c.l.b16 %v317
      %v368 = vpack.c.b16 %v366, %v365
      %v369 = vpack.c.b16 %v367, %v367
      %vm370 = vcmask 523264
      %v372 = vsel %vm370, %v357, 0
      %v375 = vsel %vm370, %v358, 0
      %v378 = vsel %vm370, %v359, 0
      %v381 = vsel %vm370, %v360, 0
      %v384 = vsel %vm370, %v361, 0
      %v387 = vsel %vm370, %v368, 0
      %v390 = vsel %vm370, %v369, 0
      %392 = vmatprep.subr.bf16.mxu0 0
      %393 = vmatpush1.bf16.xpose.msra.mxu0 0
      %394 = vmatprep.subr.bf16.mxu0 0
      %395 = vmatpush1.bf16.xpose.msra.mxu0 0
      %396 = vmatprep.subr.bf16.mxu0 0
      %397 = vmatpush1.bf16.xpose.msra.mxu0 0
      %398 = vmatprep.subr.bf16.mxu0 0
      %399 = vmatpush1.bf16.xpose.msra.mxu0 0
      %400 = vmatprep.subr.bf16.mxu0 0
      %401 = vmatpush1.bf16.xpose.msra.mxu0 0
      %402 = vmatprep.subr.bf16.mxu0 0
      %403 = vmatpush1.bf16.xpose.msra.mxu0 0
      %404 = vmatprep.subr.bf16.mxu0 0
      %405 = vmatpush1.bf16.xpose.msra.mxu0 %v390
      %406 = vmatprep.subr.bf16.mxu0 0
      %407 = vmatpush1.bf16.xpose.msra.mxu0 %v387
      %408 = vmatprep.subr.bf16.mxu0 0
      %409 = vmatpush2.bf16.xpose.msra.mxu0 0
      %410 = vmatprep.subr.bf16.mxu0 0
      %411 = vmatpush2.bf16.xpose.msra.mxu0 0
      %412 = vmatprep.subr.bf16.mxu0 0
      %413 = vmatpush2.bf16.xpose.msra.mxu0 0
      %414 = vmatprep.subr.bf16.mxu0 0
      %415 = vmatpush2.bf16.xpose.msra.mxu0 0
      %416 = vmatprep.subr.bf16.mxu0 0
      %417 = vmatpush2.bf16.xpose.msra.mxu0 0
      %418 = vmatprep.subr.bf16.mxu0 0
      %419 = vmatpush2.bf16.xpose.msra.mxu0 0
      %420 = vmatprep.subr.bf16.mxu0 0
      %421 = vmatpush2.bf16.xpose.msra.mxu0 0
      %422 = vmatprep.subr.bf16.mxu0 0
      %423 = vmatpush2.bf16.xpose.msra.mxu0 0
      %424 = vmatprep.mubr.bf16.mxu0 0
      %425 = vmatmul.mubr.bf16.gmra.mxu0 %v372
      %v426 = vpop.f32.mrf.mxu0
      %v427 = vadd.f32 0.0, %v426
      %v428 = vpop.f32.mrf.mxu0
      %v429 = vpop.f32.mrf.mxu0
      %v430 = vadd.f32 0.0, %v429
      %v431 = vpop.f32.mrf.mxu0
      %432 = vmatprep.mubr.bf16.mxu0 0
      %433 = vmatmul.mubr.bf16.gmra.mxu0 %v375
      %v434 = vpop.f32.mrf.mxu0
      %v435 = vadd.f32 0.0, %v434
      %v436 = vpop.f32.mrf.mxu0
      %v437 = vpop.f32.mrf.mxu0
      %v438 = vadd.f32 0.0, %v437
      %v439 = vpop.f32.mrf.mxu0
      %440 = vmatprep.mubr.bf16.mxu0 0
      %441 = vmatmul.mubr.bf16.gmra.mxu0 %v378
      %v442 = vpop.f32.mrf.mxu0
      %v443 = vadd.f32 0.0, %v442
      %v444 = vpop.f32.mrf.mxu0
      %v445 = vpop.f32.mrf.mxu0
      %v446 = vadd.f32 0.0, %v445
      %v447 = vpop.f32.mrf.mxu0
      %448 = vmatprep.mubr.bf16.mxu0 0
      %449 = vmatmul.mubr.bf16.gmra.mxu0 %v381
      %v450 = vpop.f32.mrf.mxu0
      %v451 = vadd.f32 0.0, %v450
      %v452 = vpop.f32.mrf.mxu0
      %v453 = vpop.f32.mrf.mxu0
      %v454 = vadd.f32 0.0, %v453
      %v455 = vpop.f32.mrf.mxu0
      %456 = vmatprep.mubr.bf16.mxu0 0
      %457 = vmatmul.mubr.bf16.gmra.mxu0 %v384
      %v458 = vpop.f32.mrf.mxu0
      %v459 = vadd.f32 0.0, %v458
      %v460 = vpop.f32.mrf.mxu0
      %v461 = vpop.f32.mrf.mxu0
      %v462 = vadd.f32 0.0, %v461
      %v463 = vpop.f32.mrf.mxu0
      %464 = vdwg.mxu0
      %vm465 = vcmask 138240
      %v466 = vsel %vm465, %v427, -inf
      %467 = vmax.xlane.f32.xlu0 %v466
      %v468 = vpop.xlane.xlu0 %467
      %v469 = vsel %vm465, %v430, -inf
      %470 = vmax.xlane.f32.xlu0 %v469
      %v471 = vpop.xlane.xlu0 %470
      %v472 = vsel %vm465, %v435, -inf
      %473 = vmax.xlane.f32.xlu0 %v472
      %v474 = vpop.xlane.xlu0 %473
      %v475 = vsel %vm465, %v438, -inf
      %476 = vmax.xlane.f32.xlu0 %v475
      %v477 = vpop.xlane.xlu0 %476
      %v478 = vsel %vm465, %v443, -inf
      %479 = vmax.xlane.f32.xlu0 %v478
      %v480 = vpop.xlane.xlu0 %479
      %v481 = vsel %vm465, %v446, -inf
      %482 = vmax.xlane.f32.xlu0 %v481
      %v483 = vpop.xlane.xlu0 %482
      %v484 = vsel %vm465, %v451, -inf
      %485 = vmax.xlane.f32.xlu0 %v484
      %v486 = vpop.xlane.xlu0 %485
      %v487 = vsel %vm465, %v454, -inf
      %488 = vmax.xlane.f32.xlu0 %v487
      %v489 = vpop.xlane.xlu0 %488
      %v490 = vsel %vm465, %v459, -inf
      %491 = vmax.xlane.f32.xlu0 %v490
      %v492 = vpop.xlane.xlu0 %491
      %v493 = vsel %vm465, %v462, -inf
      %494 = vmax.xlane.f32.xlu0 %v493
      %v495 = vpop.xlane.xlu0 %494
      %v496 = vsub.f32 %v427, %v468
      %v497 = vsub.f32 %v430, %v471
      %v498 = vsub.f32 %v435, %v474
      %v499 = vsub.f32 %v438, %v477
      %v500 = vsub.f32 %v443, %v480
      %v501 = vsub.f32 %v446, %v483
      %v502 = vsub.f32 %v451, %v486
      %v503 = vsub.f32 %v454, %v489
      %v504 = vsub.f32 %v459, %v492
      %v505 = vsub.f32 %v462, %v495
      %v506 = vmul.f32 %v496, 1.442695
      %v507 = vpow.pop %v506
      %v508 = vmul.f32 %v497, 1.442695
      %v509 = vpow.pop %v508
      %v510 = vmul.f32 %v498, 1.442695
      %v511 = vpow.pop %v510
      %v512 = vmul.f32 %v499, 1.442695
      %v513 = vpow.pop %v512
      %v514 = vmul.f32 %v500, 1.442695
      %v515 = vpow.pop %v514
      %v516 = vmul.f32 %v501, 1.442695
      %v517 = vpow.pop %v516
      %v518 = vmul.f32 %v502, 1.442695
      %v519 = vpow.pop %v518
      %v520 = vmul.f32 %v503, 1.442695
      %v521 = vpow.pop %v520
      %v522 = vmul.f32 %v504, 1.442695
      %v523 = vpow.pop %v522
      %v524 = vmul.f32 %v505, 1.442695
      %v525 = vpow.pop %v524
      %v526 = vsel %vm465, %v507, 0.0
      %527 = vadd.xlane.f32.xlu0 %v526
      %v528 = vpop.xlane.xlu0 %527
      %v529 = vsel %vm465, %v509, 0.0
      %530 = vadd.xlane.f32.xlu0 %v529
      %v531 = vpop.xlane.xlu0 %530
      %v532 = vsel %vm465, %v511, 0.0
      %533 = vadd.xlane.f32.xlu0 %v532
      %v534 = vpop.xlane.xlu0 %533
      %v535 = vsel %vm465, %v513, 0.0
      %536 = vadd.xlane.f32.xlu0 %v535
      %v537 = vpop.xlane.xlu0 %536
      %v538 = vsel %vm465, %v515, 0.0
      %539 = vadd.xlane.f32.xlu0 %v538
      %v540 = vpop.xlane.xlu0 %539
      %v541 = vsel %vm465, %v517, 0.0
      %542 = vadd.xlane.f32.xlu0 %v541
      %v543 = vpop.xlane.xlu0 %542
      %v544 = vsel %vm465, %v519, 0.0
      %545 = vadd.xlane.f32.xlu0 %v544
      %v546 = vpop.xlane.xlu0 %545
      %v547 = vsel %vm465, %v521, 0.0
      %548 = vadd.xlane.f32.xlu0 %v547
      %v549 = vpop.xlane.xlu0 %548
      %v550 = vsel %vm465, %v523, 0.0
      %551 = vadd.xlane.f32.xlu0 %v550
      %v552 = vpop.xlane.xlu0 %551
      %v553 = vsel %vm465, %v525, 0.0
      %554 = vadd.xlane.f32.xlu0 %v553
      %v555 = vpop.xlane.xlu0 %554
      %v556 = vrcp.pop %v528
      %v557 = vrcp.pop %v531
      %v558 = vrcp.pop %v534
      %v559 = vrcp.pop %v537
      %v560 = vrcp.pop %v540
      %v561 = vrcp.pop %v543
      %v562 = vrcp.pop %v546
      %v563 = vrcp.pop %v549
      %v564 = vrcp.pop %v552
      %v565 = vrcp.pop %v555
      %v566 = vmul.f32 %v507, %v556
      %v567 = vmul.f32 %v509, %v557
      %v568 = vmul.f32 %v511, %v558
      %v569 = vmul.f32 %v513, %v559
      %v570 = vmul.f32 %v515, %v560
      %v571 = vmul.f32 %v517, %v561
      %v572 = vmul.f32 %v519, %v562
      %v573 = vmul.f32 %v521, %v563
      %v574 = vmul.f32 %v523, %v564
      %v575 = vmul.f32 %v525, %v565
      %v576 = vpack.c.bf16 %v567, %v566
      %v577 = vpack.c.bf16 %v569, %v568
      %v578 = vpack.c.bf16 %v571, %v570
      %v579 = vpack.c.bf16 %v573, %v572
      %v580 = vpack.c.bf16 %v575, %v574
      %v584 = vunpack.c.l.b16 %v318
      %v585 = vunpack.c.l.b16 %v319
      %v586 = vunpack.c.l.b16 %v320
      %v587 = vpack.c.b16 %v585, %v584
      %v588 = vpack.c.b16 %v586, %v586
      %v591 = vsel %vm465, %v576, 0
      %v594 = vsel %vm465, %v577, 0
      %v597 = vsel %vm465, %v578, 0
      %v600 = vsel %vm465, %v579, 0
      %v603 = vsel %vm465, %v580, 0
      %vm605 = vcmask 1040384
      %v606 = vsel 0, 4294967295, 65535
      %v607 = vsel %vm605, %v606, 0
      %v609 = vand.u32 %v588, %v607
      %611 = vmatprep.subr.bf16.mxu0 0
      %612 = vmatpush1.bf16.msra.mxu0 0
      %613 = vmatprep.subr.bf16.mxu0 0
      %614 = vmatpush1.bf16.msra.mxu0 0
      %615 = vmatprep.subr.bf16.mxu0 0
      %616 = vmatpush1.bf16.msra.mxu0 0
      %617 = vmatprep.subr.bf16.mxu0 0
      %618 = vmatpush1.bf16.msra.mxu0 0
      %619 = vmatprep.subr.bf16.mxu0 0
      %620 = vmatpush1.bf16.msra.mxu0 0
      %621 = vmatprep.subr.bf16.mxu0 0
      %622 = vmatpush1.bf16.msra.mxu0 0
      %623 = vmatprep.subr.bf16.mxu0 0
      %624 = vmatpush1.bf16.msra.mxu0 %v609
      %625 = vmatprep.subr.bf16.mxu0 0
      %626 = vmatpush1.bf16.msra.mxu0 %v587
      %627 = vmatprep.subr.bf16.mxu0 0
      %628 = vmatpush2.bf16.msra.mxu0 0
      %629 = vmatprep.subr.bf16.mxu0 0
      %630 = vmatpush2.bf16.msra.mxu0 0
      %631 = vmatprep.subr.bf16.mxu0 0
      %632 = vmatpush2.bf16.msra.mxu0 0
      %633 = vmatprep.subr.bf16.mxu0 0
      %634 = vmatpush2.bf16.msra.mxu0 0
      %635 = vmatprep.subr.bf16.mxu0 0
      %636 = vmatpush2.bf16.msra.mxu0 0
      %637 = vmatprep.subr.bf16.mxu0 0
      %638 = vmatpush2.bf16.msra.mxu0 0
      %639 = vmatprep.subr.bf16.mxu0 0
      %640 = vmatpush2.bf16.msra.mxu0 0
      %641 = vmatprep.subr.bf16.mxu0 0
      %642 = vmatpush2.bf16.msra.mxu0 0
      %643 = vmatprep.mubr.bf16.mxu0 0
      %644 = vmatmul.mubr.bf16.gmra.mxu0 %v591
      %v645 = vpop.f32.mrf.mxu0
      %v646 = vadd.f32 0.0, %v645
      %v647 = vpop.f32.mrf.mxu0
      %v648 = vpop.f32.mrf.mxu0
      %v649 = vadd.f32 0.0, %v648
      %v650 = vpop.f32.mrf.mxu0
      %651 = vmatprep.mubr.bf16.mxu0 0
      %652 = vmatmul.mubr.bf16.gmra.mxu0 %v594
      %v653 = vpop.f32.mrf.mxu0
      %v654 = vadd.f32 0.0, %v653
      %v655 = vpop.f32.mrf.mxu0
      %v656 = vpop.f32.mrf.mxu0
      %v657 = vadd.f32 0.0, %v656
      %v658 = vpop.f32.mrf.mxu0
      %659 = vmatprep.mubr.bf16.mxu0 0
      %660 = vmatmul.mubr.bf16.gmra.mxu0 %v597
      %v661 = vpop.f32.mrf.mxu0
      %v662 = vadd.f32 0.0, %v661
      %v663 = vpop.f32.mrf.mxu0
      %v664 = vpop.f32.mrf.mxu0
      %v665 = vadd.f32 0.0, %v664
      %v666 = vpop.f32.mrf.mxu0
      %667 = vmatprep.mubr.bf16.mxu0 0
      %668 = vmatmul.mubr.bf16.gmra.mxu0 %v600
      %v669 = vpop.f32.mrf.mxu0
      %v670 = vadd.f32 0.0, %v669
      %v671 = vpop.f32.mrf.mxu0
      %v672 = vpop.f32.mrf.mxu0
      %v673 = vadd.f32 0.0, %v672
      %v674 = vpop.f32.mrf.mxu0
      %675 = vmatprep.mubr.bf16.mxu0 0
      %676 = vmatmul.mubr.bf16.gmra.mxu0 %v603
      %v677 = vpop.f32.mrf.mxu0
      %v678 = vadd.f32 0.0, %v677
      %v679 = vpop.f32.mrf.mxu0
      %v680 = vpop.f32.mrf.mxu0
      %v681 = vadd.f32 0.0, %v680
      %v682 = vpop.f32.mrf.mxu0
      %683 = vdwg.mxu0
      %v684 = vpack.c.bf16 %v649, %v646
      %v685 = vpack.c.bf16 %v657, %v654
      %v686 = vpack.c.bf16 %v665, %v662
      %v687 = vpack.c.bf16 %v673, %v670
      %v688 = vpack.c.bf16 %v681, %v678
      %689 = vrot.lane.b32.xlu0 %v357, 64
      %v690 = vpop.permute.xlu0 %689
      %691 = vrot.lane.b32.xlu0 %v358, 64
      %v692 = vpop.permute.xlu0 %691
      %693 = vrot.lane.b32.xlu0 %v359, 64
      %v694 = vpop.permute.xlu0 %693
      %695 = vrot.lane.b32.xlu0 %v360, 64
      %v696 = vpop.permute.xlu0 %695
      %697 = vrot.lane.b32.xlu0 %v361, 64
      %v698 = vpop.permute.xlu0 %697
      %699 = vrot.lane.b32.xlu0 %v368, 64
      %v700 = vpop.permute.xlu0 %699
      %701 = vrot.lane.b32.xlu0 %v369, 64
      %v702 = vpop.permute.xlu0 %701
      %v704 = vsel %vm370, %v690, 0
      %v707 = vsel %vm370, %v692, 0
      %v710 = vsel %vm370, %v694, 0
      %v713 = vsel %vm370, %v696, 0
      %v716 = vsel %vm370, %v698, 0
      %v719 = vsel %vm370, %v700, 0
      %v722 = vsel %vm370, %v702, 0
      %724 = vmatprep.subr.bf16.mxu0 0
      %725 = vmatpush1.bf16.xpose.msra.mxu0 0
      %726 = vmatprep.subr.bf16.mxu0 0
      %727 = vmatpush1.bf16.xpose.msra.mxu0 0
      %728 = vmatprep.subr.bf16.mxu0 0
      %729 = vmatpush1.bf16.xpose.msra.mxu0 0
      %730 = vmatprep.subr.bf16.mxu0 0
      %731 = vmatpush1.bf16.xpose.msra.mxu0 0
      %732 = vmatprep.subr.bf16.mxu0 0
      %733 = vmatpush1.bf16.xpose.msra.mxu0 0
      %734 = vmatprep.subr.bf16.mxu0 0
      %735 = vmatpush1.bf16.xpose.msra.mxu0 0
      %736 = vmatprep.subr.bf16.mxu0 0
      %737 = vmatpush1.bf16.xpose.msra.mxu0 %v722
      %738 = vmatprep.subr.bf16.mxu0 0
      %739 = vmatpush1.bf16.xpose.msra.mxu0 %v719
      %740 = vmatprep.subr.bf16.mxu0 0
      %741 = vmatpush2.bf16.xpose.msra.mxu0 0
      %742 = vmatprep.subr.bf16.mxu0 0
      %743 = vmatpush2.bf16.xpose.msra.mxu0 0
      %744 = vmatprep.subr.bf16.mxu0 0
      %745 = vmatpush2.bf16.xpose.msra.mxu0 0
      %746 = vmatprep.subr.bf16.mxu0 0
      %747 = vmatpush2.bf16.xpose.msra.mxu0 0
      %748 = vmatprep.subr.bf16.mxu0 0
      %749 = vmatpush2.bf16.xpose.msra.mxu0 0
      %750 = vmatprep.subr.bf16.mxu0 0
      %751 = vmatpush2.bf16.xpose.msra.mxu0 0
      %752 = vmatprep.subr.bf16.mxu0 0
      %753 = vmatpush2.bf16.xpose.msra.mxu0 0
      %754 = vmatprep.subr.bf16.mxu0 0
      %755 = vmatpush2.bf16.xpose.msra.mxu0 0
      %756 = vmatprep.mubr.bf16.mxu0 0
      %757 = vmatmul.mubr.bf16.gmra.mxu0 %v704
      %v758 = vpop.f32.mrf.mxu0
      %v759 = vadd.f32 0.0, %v758
      %v760 = vpop.f32.mrf.mxu0
      %v761 = vpop.f32.mrf.mxu0
      %v762 = vadd.f32 0.0, %v761
      %v763 = vpop.f32.mrf.mxu0
      %764 = vmatprep.mubr.bf16.mxu0 0
      %765 = vmatmul.mubr.bf16.gmra.mxu0 %v707
      %v766 = vpop.f32.mrf.mxu0
      %v767 = vadd.f32 0.0, %v766
      %v768 = vpop.f32.mrf.mxu0
      %v769 = vpop.f32.mrf.mxu0
      %v770 = vadd.f32 0.0, %v769
      %v771 = vpop.f32.mrf.mxu0
      %772 = vmatprep.mubr.bf16.mxu0 0
      %773 = vmatmul.mubr.bf16.gmra.mxu0 %v710
      %v774 = vpop.f32.mrf.mxu0
      %v775 = vadd.f32 0.0, %v774
      %v776 = vpop.f32.mrf.mxu0
      %v777 = vpop.f32.mrf.mxu0
      %v778 = vadd.f32 0.0, %v777
      %v779 = vpop.f32.mrf.mxu0
      %780 = vmatprep.mubr.bf16.mxu0 0
      %781 = vmatmul.mubr.bf16.gmra.mxu0 %v713
      %v782 = vpop.f32.mrf.mxu0
      %v783 = vadd.f32 0.0, %v782
      %v784 = vpop.f32.mrf.mxu0
      %v785 = vpop.f32.mrf.mxu0
      %v786 = vadd.f32 0.0, %v785
      %v787 = vpop.f32.mrf.mxu0
      %788 = vmatprep.mubr.bf16.mxu0 0
      %789 = vmatmul.mubr.bf16.gmra.mxu0 %v716
      %v790 = vpop.f32.mrf.mxu0
      %v791 = vadd.f32 0.0, %v790
      %v792 = vpop.f32.mrf.mxu0
      %v793 = vpop.f32.mrf.mxu0
      %v794 = vadd.f32 0.0, %v793
      %v795 = vpop.f32.mrf.mxu0
      %796 = vdwg.mxu0
      %v797 = vsel %vm465, %v759, -inf
      %798 = vmax.xlane.f32.xlu0 %v797
      %v799 = vpop.xlane.xlu0 %798
      %v800 = vsel %vm465, %v762, -inf
      %801 = vmax.xlane.f32.xlu0 %v800
      %v802 = vpop.xlane.xlu0 %801
      %v803 = vsel %vm465, %v767, -inf
      %804 = vmax.xlane.f32.xlu0 %v803
      %v805 = vpop.xlane.xlu0 %804
      %v806 = vsel %vm465, %v770, -inf
      %807 = vmax.xlane.f32.xlu0 %v806
      %v808 = vpop.xlane.xlu0 %807
      %v809 = vsel %vm465, %v775, -inf
      %810 = vmax.xlane.f32.xlu0 %v809
      %v811 = vpop.xlane.xlu0 %810
      %v812 = vsel %vm465, %v778, -inf
      %813 = vmax.xlane.f32.xlu0 %v812
      %v814 = vpop.xlane.xlu0 %813
      %v815 = vsel %vm465, %v783, -inf
      %816 = vmax.xlane.f32.xlu0 %v815
      %v817 = vpop.xlane.xlu0 %816
      %v818 = vsel %vm465, %v786, -inf
      %819 = vmax.xlane.f32.xlu0 %v818
      %v820 = vpop.xlane.xlu0 %819
      %v821 = vsel %vm465, %v791, -inf
      %822 = vmax.xlane.f32.xlu0 %v821
      %v823 = vpop.xlane.xlu0 %822
      %v824 = vsel %vm465, %v794, -inf
      %825 = vmax.xlane.f32.xlu0 %v824
      %v826 = vpop.xlane.xlu0 %825
      %v827 = vsub.f32 %v759, %v799
      %v828 = vsub.f32 %v762, %v802
      %v829 = vsub.f32 %v767, %v805
      %v830 = vsub.f32 %v770, %v808
      %v831 = vsub.f32 %v775, %v811
      %v832 = vsub.f32 %v778, %v814
      %v833 = vsub.f32 %v783, %v817
      %v834 = vsub.f32 %v786, %v820
      %v835 = vsub.f32 %v791, %v823
      %v836 = vsub.f32 %v794, %v826
      %v837 = vmul.f32 %v827, 1.442695
      %v838 = vpow.pop %v837
      %v839 = vmul.f32 %v828, 1.442695
      %v840 = vpow.pop %v839
      %v841 = vmul.f32 %v829, 1.442695
      %v842 = vpow.pop %v841
      %v843 = vmul.f32 %v830, 1.442695
      %v844 = vpow.pop %v843
      %v845 = vmul.f32 %v831, 1.442695
      %v846 = vpow.pop %v845
      %v847 = vmul.f32 %v832, 1.442695
      %v848 = vpow.pop %v847
      %v849 = vmul.f32 %v833, 1.442695
      %v850 = vpow.pop %v849
      %v851 = vmul.f32 %v834, 1.442695
      %v852 = vpow.pop %v851
      %v853 = vmul.f32 %v835, 1.442695
      %v854 = vpow.pop %v853
      %v855 = vmul.f32 %v836, 1.442695
      %v856 = vpow.pop %v855
      %v857 = vsel %vm465, %v838, 0.0
      %858 = vadd.xlane.f32.xlu0 %v857
      %v859 = vpop.xlane.xlu0 %858
      %v860 = vsel %vm465, %v840, 0.0
      %861 = vadd.xlane.f32.xlu0 %v860
      %v862 = vpop.xlane.xlu0 %861
      %v863 = vsel %vm465, %v842, 0.0
      %864 = vadd.xlane.f32.xlu0 %v863
      %v865 = vpop.xlane.xlu0 %864
      %v866 = vsel %vm465, %v844, 0.0
      %867 = vadd.xlane.f32.xlu0 %v866
      %v868 = vpop.xlane.xlu0 %867
      %v869 = vsel %vm465, %v846, 0.0
      %870 = vadd.xlane.f32.xlu0 %v869
      %v871 = vpop.xlane.xlu0 %870
      %v872 = vsel %vm465, %v848, 0.0
      %873 = vadd.xlane.f32.xlu0 %v872
      %v874 = vpop.xlane.xlu0 %873
      %v875 = vsel %vm465, %v850, 0.0
      %876 = vadd.xlane.f32.xlu0 %v875
      %v877 = vpop.xlane.xlu0 %876
      %v878 = vsel %vm465, %v852, 0.0
      %879 = vadd.xlane.f32.xlu0 %v878
      %v880 = vpop.xlane.xlu0 %879
      %v881 = vsel %vm465, %v854, 0.0
      %882 = vadd.xlane.f32.xlu0 %v881
      %v883 = vpop.xlane.xlu0 %882
      %v884 = vsel %vm465, %v856, 0.0
      %885 = vadd.xlane.f32.xlu0 %v884
      %v886 = vpop.xlane.xlu0 %885
      %v887 = vrcp.pop %v859
      %v888 = vrcp.pop %v862
      %v889 = vrcp.pop %v865
      %v890 = vrcp.pop %v868
      %v891 = vrcp.pop %v871
      %v892 = vrcp.pop %v874
      %v893 = vrcp.pop %v877
      %v894 = vrcp.pop %v880
      %v895 = vrcp.pop %v883
      %v896 = vrcp.pop %v886
      %v897 = vmul.f32 %v838, %v887
      %v898 = vmul.f32 %v840, %v888
      %v899 = vmul.f32 %v842, %v889
      %v900 = vmul.f32 %v844, %v890
      %v901 = vmul.f32 %v846, %v891
      %v902 = vmul.f32 %v848, %v892
      %v903 = vmul.f32 %v850, %v893
      %v904 = vmul.f32 %v852, %v894
      %v905 = vmul.f32 %v854, %v895
      %v906 = vmul.f32 %v856, %v896
      %v907 = vpack.c.bf16 %v898, %v897
      %v908 = vpack.c.bf16 %v900, %v899
      %v909 = vpack.c.bf16 %v902, %v901
      %v910 = vpack.c.bf16 %v904, %v903
      %v911 = vpack.c.bf16 %v906, %v905
      %912 = vrot.lane.b32.xlu0 %v587, 64
      %v913 = vpop.permute.xlu0 %912
      %914 = vrot.lane.b32.xlu0 %v588, 64
      %v915 = vpop.permute.xlu0 %914
      %v918 = vsel %vm465, %v907, 0
      %v921 = vsel %vm465, %v908, 0
      %v924 = vsel %vm465, %v909, 0
      %v927 = vsel %vm465, %v910, 0
      %v930 = vsel %vm465, %v911, 0
      %v933 = vand.u32 %v915, %v607
      %935 = vmatprep.subr.bf16.mxu0 0
      %936 = vmatpush1.bf16.msra.mxu0 0
      %937 = vmatprep.subr.bf16.mxu0 0
      %938 = vmatpush1.bf16.msra.mxu0 0
      %939 = vmatprep.subr.bf16.mxu0 0
      %940 = vmatpush1.bf16.msra.mxu0 0
      %941 = vmatprep.subr.bf16.mxu0 0
      %942 = vmatpush1.bf16.msra.mxu0 0
      %943 = vmatprep.subr.bf16.mxu0 0
      %944 = vmatpush1.bf16.msra.mxu0 0
      %945 = vmatprep.subr.bf16.mxu0 0
      %946 = vmatpush1.bf16.msra.mxu0 0
      %947 = vmatprep.subr.bf16.mxu0 0
      %948 = vmatpush1.bf16.msra.mxu0 %v933
      %949 = vmatprep.subr.bf16.mxu0 0
      %950 = vmatpush1.bf16.msra.mxu0 %v913
      %951 = vmatprep.subr.bf16.mxu0 0
      %952 = vmatpush2.bf16.msra.mxu0 0
      %953 = vmatprep.subr.bf16.mxu0 0
      %954 = vmatpush2.bf16.msra.mxu0 0
      %955 = vmatprep.subr.bf16.mxu0 0
      %956 = vmatpush2.bf16.msra.mxu0 0
      %957 = vmatprep.subr.bf16.mxu0 0
      %958 = vmatpush2.bf16.msra.mxu0 0
      %959 = vmatprep.subr.bf16.mxu0 0
      %960 = vmatpush2.bf16.msra.mxu0 0
      %961 = vmatprep.subr.bf16.mxu0 0
      %962 = vmatpush2.bf16.msra.mxu0 0
      %963 = vmatprep.subr.bf16.mxu0 0
      %964 = vmatpush2.bf16.msra.mxu0 0
      %965 = vmatprep.subr.bf16.mxu0 0
      %966 = vmatpush2.bf16.msra.mxu0 0
      %967 = vmatprep.mubr.bf16.mxu0 0
      %968 = vmatmul.mubr.bf16.gmra.mxu0 %v918
      %v969 = vpop.f32.mrf.mxu0
      %v970 = vadd.f32 0.0, %v969
      %v971 = vpop.f32.mrf.mxu0
      %v972 = vpop.f32.mrf.mxu0
      %v973 = vadd.f32 0.0, %v972
      %v974 = vpop.f32.mrf.mxu0
      %975 = vmatprep.mubr.bf16.mxu0 0
      %976 = vmatmul.mubr.bf16.gmra.mxu0 %v921
      %v977 = vpop.f32.mrf.mxu0
      %v978 = vadd.f32 0.0, %v977
      %v979 = vpop.f32.mrf.mxu0
      %v980 = vpop.f32.mrf.mxu0
      %v981 = vadd.f32 0.0, %v980
      %v982 = vpop.f32.mrf.mxu0
      %983 = vmatprep.mubr.bf16.mxu0 0
      %984 = vmatmul.mubr.bf16.gmra.mxu0 %v924
      %v985 = vpop.f32.mrf.mxu0
      %v986 = vadd.f32 0.0, %v985
      %v987 = vpop.f32.mrf.mxu0
      %v988 = vpop.f32.mrf.mxu0
      %v989 = vadd.f32 0.0, %v988
      %v990 = vpop.f32.mrf.mxu0
      %991 = vmatprep.mubr.bf16.mxu0 0
      %992 = vmatmul.mubr.bf16.gmra.mxu0 %v927
      %v993 = vpop.f32.mrf.mxu0
      %v994 = vadd.f32 0.0, %v993
      %v995 = vpop.f32.mrf.mxu0
      %v996 = vpop.f32.mrf.mxu0
      %v997 = vadd.f32 0.0, %v996
      %v998 = vpop.f32.mrf.mxu0
      %999 = vmatprep.mubr.bf16.mxu0 0
      %1000 = vmatmul.mubr.bf16.gmra.mxu0 %v930
      %v1001 = vpop.f32.mrf.mxu0
      %v1002 = vadd.f32 0.0, %v1001
      %v1003 = vpop.f32.mrf.mxu0
      %v1004 = vpop.f32.mrf.mxu0
      %v1005 = vadd.f32 0.0, %v1004
      %v1006 = vpop.f32.mrf.mxu0
      %1007 = vdwg.mxu0
      %v1008 = vpack.c.bf16 %v973, %v970
      %v1009 = vpack.c.bf16 %v981, %v978
      %v1010 = vpack.c.bf16 %v989, %v986
      %v1011 = vpack.c.bf16 %v997, %v994
      %v1012 = vpack.c.bf16 %v1005, %v1002
      %v1021 = vunpack.c.l.b16 %v329
      %v1022 = vunpack.c.l.b16 %v330
      %v1023 = vunpack.c.l.b16 %v331
      %v1024 = vunpack.c.l.b16 %v332
      %v1025 = vunpack.c.l.b16 %v333
      %v1026 = vunpack.c.l.b16 %v334
      %v1027 = vunpack.c.l.b16 %v335
      %v1028 = vunpack.c.l.b16 %v336
      %v1029 = vpack.c.b16 %v1022, %v1021
      %v1030 = vpack.c.b16 %v1024, %v1023
      %v1031 = vpack.c.b16 %v1026, %v1025
      %v1032 = vpack.c.b16 %v1028, %v1027
      %v1038 = vsel %vm370, %v1008, 0
      %v1041 = vsel %vm370, %v1009, 0
      %v1044 = vsel %vm370, %v1010, 0
      %v1047 = vsel %vm370, %v1011, 0
      %v1050 = vsel %vm370, %v1012, 0
      %1052 = vmatprep.subr.bf16.mxu0 0
      %1053 = vmatpush1.bf16.msra.mxu0 0
      %1054 = vmatprep.subr.bf16.mxu0 0
      %1055 = vmatpush1.bf16.msra.mxu0 0
      %1056 = vmatprep.subr.bf16.mxu0 0
      %1057 = vmatpush1.bf16.msra.mxu0 0
      %1058 = vmatprep.subr.bf16.mxu0 0
      %1059 = vmatpush1.bf16.msra.mxu0 0
      %1060 = vmatprep.subr.bf16.mxu0 0
      %1061 = vmatpush1.bf16.msra.mxu0 %v1032
      %1062 = vmatprep.subr.bf16.mxu0 0
      %1063 = vmatpush1.bf16.msra.mxu0 %v1031
      %1064 = vmatprep.subr.bf16.mxu0 0
      %1065 = vmatpush1.bf16.msra.mxu0 %v1030
      %1066 = vmatprep.subr.bf16.mxu0 0
      %1067 = vmatpush1.bf16.msra.mxu0 %v1029
      %1068 = vmatprep.subr.bf16.mxu0 0
      %1069 = vmatpush2.bf16.msra.mxu0 0
      %1070 = vmatprep.subr.bf16.mxu0 0
      %1071 = vmatpush2.bf16.msra.mxu0 0
      %1072 = vmatprep.subr.bf16.mxu0 0
      %1073 = vmatpush2.bf16.msra.mxu0 0
      %1074 = vmatprep.subr.bf16.mxu0 0
      %1075 = vmatpush2.bf16.msra.mxu0 0
      %1076 = vmatprep.subr.bf16.mxu0 0
      %1077 = vmatpush2.bf16.msra.mxu0 0
      %1078 = vmatprep.subr.bf16.mxu0 0
      %1079 = vmatpush2.bf16.msra.mxu0 0
      %1080 = vmatprep.subr.bf16.mxu0 0
      %1081 = vmatpush2.bf16.msra.mxu0 0
      %1082 = vmatprep.subr.bf16.mxu0 0
      %1083 = vmatpush2.bf16.msra.mxu0 0
      %1084 = vmatprep.mubr.bf16.mxu0 0
      %1085 = vmatmul.mubr.bf16.gmra.mxu0 %v1038
      %v1086 = vpop.f32.mrf.mxu0
      %v1087 = vadd.f32 0.0, %v1086
      %v1088 = vpop.f32.mrf.mxu0
      %v1089 = vpop.f32.mrf.mxu0
      %v1090 = vadd.f32 0.0, %v1089
      %v1091 = vpop.f32.mrf.mxu0
      %1092 = vmatprep.mubr.bf16.mxu0 0
      %1093 = vmatmul.mubr.bf16.gmra.mxu0 %v1041
      %v1094 = vpop.f32.mrf.mxu0
      %v1095 = vadd.f32 0.0, %v1094
      %v1096 = vpop.f32.mrf.mxu0
      %v1097 = vpop.f32.mrf.mxu0
      %v1098 = vadd.f32 0.0, %v1097
      %v1099 = vpop.f32.mrf.mxu0
      %1100 = vmatprep.mubr.bf16.mxu0 0
      %1101 = vmatmul.mubr.bf16.gmra.mxu0 %v1044
      %v1102 = vpop.f32.mrf.mxu0
      %v1103 = vadd.f32 0.0, %v1102
      %v1104 = vpop.f32.mrf.mxu0
      %v1105 = vpop.f32.mrf.mxu0
      %v1106 = vadd.f32 0.0, %v1105
      %v1107 = vpop.f32.mrf.mxu0
      %1108 = vmatprep.mubr.bf16.mxu0 0
      %1109 = vmatmul.mubr.bf16.gmra.mxu0 %v1047
      %v1110 = vpop.f32.mrf.mxu0
      %v1111 = vadd.f32 0.0, %v1110
      %v1112 = vpop.f32.mrf.mxu0
      %v1113 = vpop.f32.mrf.mxu0
      %v1114 = vadd.f32 0.0, %v1113
      %v1115 = vpop.f32.mrf.mxu0
      %1116 = vmatprep.mubr.bf16.mxu0 0
      %1117 = vmatmul.mubr.bf16.gmra.mxu0 %v1050
      %v1118 = vpop.f32.mrf.mxu0
      %v1119 = vadd.f32 0.0, %v1118
      %v1120 = vpop.f32.mrf.mxu0
      %v1121 = vpop.f32.mrf.mxu0
      %v1122 = vadd.f32 0.0, %v1121
      %v1123 = vpop.f32.mrf.mxu0
      %1124 = vdwg.mxu0
      %v1133 = vunpack.c.l.b16 %v321
      %v1134 = vunpack.c.l.b16 %v322
      %v1135 = vunpack.c.l.b16 %v323
      %v1136 = vunpack.c.l.b16 %v324
      %v1137 = vunpack.c.l.b16 %v325
      %v1138 = vunpack.c.l.b16 %v326
      %v1139 = vunpack.c.l.b16 %v327
      %v1140 = vunpack.c.l.b16 %v328
      %v1141 = vpack.c.b16 %v1134, %v1133
      %v1142 = vpack.c.b16 %v1136, %v1135
      %v1143 = vpack.c.b16 %v1138, %v1137
      %v1144 = vpack.c.b16 %v1140, %v1139
      %v1150 = vsel %vm370, %v684, 0
      %v1153 = vsel %vm370, %v685, 0
      %v1156 = vsel %vm370, %v686, 0
      %v1159 = vsel %vm370, %v687, 0
      %v1162 = vsel %vm370, %v688, 0
      %1164 = vmatprep.subr.bf16.mxu0 0
      %1165 = vmatpush1.bf16.msra.mxu0 0
      %1166 = vmatprep.subr.bf16.mxu0 0
      %1167 = vmatpush1.bf16.msra.mxu0 0
      %1168 = vmatprep.subr.bf16.mxu0 0
      %1169 = vmatpush1.bf16.msra.mxu0 0
      %1170 = vmatprep.subr.bf16.mxu0 0
      %1171 = vmatpush1.bf16.msra.mxu0 0
      %1172 = vmatprep.subr.bf16.mxu0 0
      %1173 = vmatpush1.bf16.msra.mxu0 %v1144
      %1174 = vmatprep.subr.bf16.mxu0 0
      %1175 = vmatpush1.bf16.msra.mxu0 %v1143
      %1176 = vmatprep.subr.bf16.mxu0 0
      %1177 = vmatpush1.bf16.msra.mxu0 %v1142
      %1178 = vmatprep.subr.bf16.mxu0 0
      %1179 = vmatpush1.bf16.msra.mxu0 %v1141
      %1180 = vmatprep.subr.bf16.mxu0 0
      %1181 = vmatpush2.bf16.msra.mxu0 0
      %1182 = vmatprep.subr.bf16.mxu0 0
      %1183 = vmatpush2.bf16.msra.mxu0 0
      %1184 = vmatprep.subr.bf16.mxu0 0
      %1185 = vmatpush2.bf16.msra.mxu0 0
      %1186 = vmatprep.subr.bf16.mxu0 0
      %1187 = vmatpush2.bf16.msra.mxu0 0
      %1188 = vmatprep.subr.bf16.mxu0 0
      %1189 = vmatpush2.bf16.msra.mxu0 0
      %1190 = vmatprep.subr.bf16.mxu0 0
      %1191 = vmatpush2.bf16.msra.mxu0 0
      %1192 = vmatprep.subr.bf16.mxu0 0
      %1193 = vmatpush2.bf16.msra.mxu0 0
      %1194 = vmatprep.subr.bf16.mxu0 0
      %1195 = vmatpush2.bf16.msra.mxu0 0
      %1196 = vmatprep.mubr.bf16.mxu0 0
      %1197 = vmatmul.mubr.bf16.gmra.mxu0 %v1150
      %v1198 = vpop.f32.mrf.mxu0
      %v1199 = vadd.f32 %v1087, %v1198
      %v1200 = vpop.f32.mrf.mxu0
      %v1201 = vpop.f32.mrf.mxu0
      %v1202 = vadd.f32 %v1090, %v1201
      %v1203 = vpop.f32.mrf.mxu0
      %1204 = vmatprep.mubr.bf16.mxu0 0
      %1205 = vmatmul.mubr.bf16.gmra.mxu0 %v1153
      %v1206 = vpop.f32.mrf.mxu0
      %v1207 = vadd.f32 %v1095, %v1206
      %v1208 = vpop.f32.mrf.mxu0
      %v1209 = vpop.f32.mrf.mxu0
      %v1210 = vadd.f32 %v1098, %v1209
      %v1211 = vpop.f32.mrf.mxu0
      %1212 = vmatprep.mubr.bf16.mxu0 0
      %1213 = vmatmul.mubr.bf16.gmra.mxu0 %v1156
      %v1214 = vpop.f32.mrf.mxu0
      %v1215 = vadd.f32 %v1103, %v1214
      %v1216 = vpop.f32.mrf.mxu0
      %v1217 = vpop.f32.mrf.mxu0
      %v1218 = vadd.f32 %v1106, %v1217
      %v1219 = vpop.f32.mrf.mxu0
      %1220 = vmatprep.mubr.bf16.mxu0 0
      %1221 = vmatmul.mubr.bf16.gmra.mxu0 %v1159
      %v1222 = vpop.f32.mrf.mxu0
      %v1223 = vadd.f32 %v1111, %v1222
      %v1224 = vpop.f32.mrf.mxu0
      %v1225 = vpop.f32.mrf.mxu0
      %v1226 = vadd.f32 %v1114, %v1225
      %v1227 = vpop.f32.mrf.mxu0
      %1228 = vmatprep.mubr.bf16.mxu0 0
      %1229 = vmatmul.mubr.bf16.gmra.mxu0 %v1162
      %v1230 = vpop.f32.mrf.mxu0
      %v1231 = vadd.f32 %v1119, %v1230
      %v1232 = vpop.f32.mrf.mxu0
      %v1233 = vpop.f32.mrf.mxu0
      %v1234 = vadd.f32 %v1122, %v1233
      %v1235 = vpop.f32.mrf.mxu0
      %1236 = vdwg.mxu0
      %v1237 = vld [vmem:[%s4] sm:$0x1]
      %v1239 = vlaneseq
      %v1240 = vshrl.u32 %v1239, 7
      %v1241 = vsub.s32 0, %v1240
      %v1242 = vrot.slane %v1237, %v1241
      %v1244 = vadd.f32 %v1199, %v1242
      %v1245 = vadd.f32 %v1202, %v1242
      %v1246 = vadd.f32 %v1207, %v1242
      %v1247 = vadd.f32 %v1210, %v1242
      %v1248 = vadd.f32 %v1215, %v1242
      %v1249 = vadd.f32 %v1218, %v1242
      %v1250 = vadd.f32 %v1223, %v1242
      %v1251 = vadd.f32 %v1226, %v1242
      %v1252 = vadd.f32 %v1231, %v1242
      %v1253 = vadd.f32 %v1234, %v1242
      %1254 = vst [vmem:[%s302] sm:$0xff] %v1244
      %1255 = vst [vmem:[%s302 + $0x8] sm:$0xff] %v1245
      %1256 = vst [vmem:[%s302 + $0x10] sm:$0xff] %v1246
      %1257 = vst [vmem:[%s302 + $0x18] sm:$0xff] %v1247
      %1258 = vst [vmem:[%s302 + $0x20] sm:$0xff] %v1248
      %1259 = vst [vmem:[%s302 + $0x28] sm:$0xff] %v1249
      %1260 = vst [vmem:[%s302 + $0x30] sm:$0xff] %v1250
      %1261 = vst [vmem:[%s302 + $0x38] sm:$0xff] %v1251
      %1262 = vst [vmem:[%s302 + $0x40] sm:$0xff] %v1252
      %1263 = vst [vmem:[%s302 + $0x48] sm:$0xff] %v1253
      %s1264 = smul.u32 10, %s21
      %p1265 = scmp.lt.s32.totalorder %s20, 1
      %s1266 = scalar_select %p1265, %s20, 1
      %p1267 = scmp.lt.s32.totalorder %s1264, 9
      %s1268 = scalar_select %p1267, %s1264, 9
      %s1269 = smul.addr %s1266, 10
      %s1270 = sadd.s32 %s1268, %s1269
      %s1271 = smul.addr %s1270, 8
      %s1272 = scalar_lea.vmem %s5, %s1271
      // Predicated region
      $region41: #{cvt_attention_forward.9} parent=39 // pred_check
        %p1273 = pneg %p170
      $region42: #{cvt_attention_forward.9} parent=39 // pred_check_branch
        %1275 = sbr.rel (%p1273) target = $region44
      $region43: #{cvt_attention_forward.9} parent=39 // pred_region
        %s1276 = smul.u32 10, %s21
      $region44: #{cvt_attention_forward.9} parent=39 // pred_fallthru
        _
    $region40: #{cvt_attention_forward.9} parent=5 // pred_fallthru
      _
    %p1277 = scmp.le.s32.totalorder 2, %s11
    // Predicated region
    $region45: #{cvt_attention_forward.9} parent=5 // pred_check
      %p1278 = pneg %p1277
    $region46: #{cvt_attention_forward.9} parent=5 // pred_check_branch
      %1280 = sbr.rel (%p1278) target = $region48
    $region47: #{cvt_attention_forward.9} parent=5 // pred_region
      %s1281 = ssub.s32 %s11, 2
      // Predicated region
      $region49: #{cvt_attention_forward.9} parent=47 // pred_check
        %p1282 = pneg %p176
      $region50: #{cvt_attention_forward.9} parent=47 // pred_check_branch
        %1284 = sbr.rel (%p1282) target = $region52
      $region51: #{cvt_attention_forward.9} parent=47 // pred_region
        %s1285 = smul.u32 10, %s23
        %p1286 = scmp.lt.s32.totalorder %s22, 1
        %s1287 = scalar_select %p1286, %s22, 1
        %p1288 = scmp.lt.s32.totalorder %s1285, 9
        %s1289 = scalar_select %p1288, %s1285, 9
        %s1290 = smul.addr %s1287, 10
        %s1291 = sadd.s32 %s1289, %s1290
        %s1292 = smul.addr %s1291, 8
        %s1293 = scalar_lea.vmem %s5, %s1292
      $region52: #{cvt_attention_forward.9} parent=47 // pred_fallthru
        _
    $region48: #{cvt_attention_forward.9} parent=5 // pred_fallthru
      _
  $region6: #{cvt_attention_forward.9} parent=0 // loop_footer
    %s15 = sadd.s32 1, %s11
  $region7: #{cvt_attention_forward.9} parent=0 // loop_footer_branch
    %10 = sbr.rel target = $region3
  $region8: #{cvt_attention_forward.9} parent=0 // loop_exit
    _

</llo_original>
